<compile_context>
chip_gen: v5e
topology: v5e:2x2
jax: 0.10.0
libtpu: 0.0.40
codegen_flags: <defaults>
</compile_context>

<pallas_src>
import jax
import jax.numpy as jnp
from jax import lax
from jax.experimental import pallas as pl
from jax.experimental.pallas import tpu as pltpu

_PAD = 128  # aligned left/right halo width inside the padded scratch (>= W + 1 for every stage)


# ----------------------------------------------------------------------------
# In-kernel building blocks (flipped (C, H*W) layout, spatial on lanes)
# ----------------------------------------------------------------------------

def _conv3x3_lrelu(act, w_ref, b_ref, pad_ref, H, W):
    """3x3 conv (padding=1) + bias + LeakyReLU(0.2).

    act:     (Cin, H*W) bf16 value (spatial flattened on the lane axis)
    w_ref:   (9, Cout, Cin) bf16  -- tap k = dy*3+dx ; w[k,co,ci] == torch_w[co,ci,dy,dx]
    b_ref:   (Cout, 1) f32
    pad_ref: (Cmax, _PAD + Smax + _PAD) bf16 VMEM scratch (zero halo built here)
    returns  (Cout, H*W) f32
    """
    Cin, S = act.shape
    Cout = w_ref.shape[1]

    # Zero halo + aligned store of the activation into the padded scratch.
    pad_ref[...] = jnp.zeros_like(pad_ref)
    pad_ref[0:Cin, _PAD:_PAD + S] = act

    # Column-within-row index (W is a power of two -> cheap VPU bit ops).
    col = lax.broadcasted_iota(jnp.int32, (1, S), 1) & (W - 1)
    not_left = col >= 1            # valid positions when the tap looks one column left
    not_right = col <= W - 2       # valid positions when the tap looks one column right

    acc = jnp.zeros((Cout, S), jnp.float32)
    for k in range(9):
        dy, dx = divmod(k, 3)
        oy, ox = dy - 1, dx - 1
        off = _PAD + oy * W + ox                       # shifted flat-spatial read offset
        tap = pad_ref[0:Cin, off:off + S]              # (Cin, S) bf16
        if ox == -1:                                   # row-wrap guard (y-halo is zero-padded)
            tap = jnp.where(not_left, tap, jnp.zeros_like(tap))
        elif ox == 1:
            tap = jnp.where(not_right, tap, jnp.zeros_like(tap))
        acc = acc + jnp.dot(w_ref[k], tap, preferred_element_type=jnp.float32)

    acc = acc + b_ref[...]
    return jnp.where(acc >= 0.0, acc, 0.2 * acc)       # LeakyReLU(0.2)


def _resample_mats(H, W):
    """(H*W, H*W/4) f32 matrices for AvgPool2d(2,2) and bilinear-half (align_corners=True).

    Generated in-kernel from iota + bit arithmetic: no HBM constants, no DMA,
    no double-buffered O(H^2 W^2) kron matrices. H, W must be powers of two.
    """
    Ho, Wo = H // 2, W // 2
    S, So = H * W, Ho * Wo
    sh_w, sh_wo = W.bit_length() - 1, Wo.bit_length() - 1

    s = lax.broadcasted_iota(jnp.int32, (S, So), 0)
    so = lax.broadcasted_iota(jnp.int32, (S, So), 1)
    y, x = s >> sh_w, s & (W - 1)
    yo, xo = so >> sh_wo, so & (Wo - 1)

    # AvgPool2d(2, 2): 0.25 on the four source pixels of each output pixel.
    pool = jnp.where(((y >> 1) == yo) & ((x >> 1) == xo),
                     jnp.float32(0.25), jnp.float32(0.0))

    # Bilinear, align_corners=True: src = dst * (in-1)/(out-1); weights relu(1 - |p - src|).
    ry = (H - 1) / (Ho - 1) if Ho > 1 else 0.0
    rx = (W - 1) / (Wo - 1) if Wo > 1 else 0.0
    sy = yo.astype(jnp.float32) * jnp.float32(ry)
    sx = xo.astype(jnp.float32) * jnp.float32(rx)
    wy = jnp.maximum(0.0, 1.0 - jnp.abs(y.astype(jnp.float32) - sy))
    wx = jnp.maximum(0.0, 1.0 - jnp.abs(x.astype(jnp.float32) - sx))
    return pool, wy * wx


def _downblock(act, w1_ref, b1_ref, w2_ref, b2_ref, pad_ref, H, W):
    """res = ConvBlock(act); out = ConvBlock(AvgPool2d(2,2)(res)) + bilinear_half(res)."""
    res = _conv3x3_lrelu(act, w1_ref, b1_ref, pad_ref, H, W)            # (Cout, H*W) f32
    pool_m, bil_m = _resample_mats(H, W)                                # (H*W, H*W/4) f32
    pooled = jnp.dot(res, pool_m, preferred_element_type=jnp.float32)   # (Cout, Ho*Wo)
    half = jnp.dot(res, bil_m, preferred_element_type=jnp.float32)      # (Cout, Ho*Wo)
    main = _conv3x3_lrelu(pooled.astype(jnp.bfloat16), w2_ref, b2_ref,
                          pad_ref, H // 2, W // 2)
    return main + half                                                  # (Cout, Ho*Wo) f32


def _make_discriminator_kernel(n_blocks, H, W):
    def kernel(x_ref, *refs):
        pad_ref = refs[-1]          # VMEM scratch (padded activation buffer, reused per conv)
        o_ref = refs[-2]            # (1, 1, 1) output block
        wrefs = refs[:-2]

        act = x_ref[0].astype(jnp.bfloat16)            # (C0, H*W), spatial on lanes
        h, w = H, W
        for bi in range(n_blocks):                     # Encoder: fused DownBlocks
            w1, b1, w2, b2 = wrefs[4 * bi: 4 * bi + 4]
            act = _downblock(act, w1, b1, w2, b2, pad_ref, h, w).astype(jnp.bfloat16)
            h, w = h // 2, w // 2

        # Classifier: single ConvBlock (duplicate 'conv' registration collapses to one),
        # then GAP + Linear fused as lane/sublane reductions.
        wc, bc, lw, lb = wrefs[4 * n_blocks: 4 * n_blocks + 4]
        y = _conv3x3_lrelu(act, wc, bc, pad_ref, h, w)                 # (C, h*w) f32
        gap = jnp.sum(y * lw[...], axis=1, keepdims=True)              # (C, 1)
        out = jnp.sum(gap, axis=0, keepdims=True) * (1.0 / (h * w)) + lb[...]
        o_ref[0] = out                                                 # (1, 1)
    return kernel


# ----------------------------------------------------------------------------
# Wrapper (single pallas_call for the whole network)
# ----------------------------------------------------------------------------

def _full_spec(shape):
    nd = len(shape)
    return pl.BlockSpec(shape, lambda i: (0,) * nd)


def discriminator_forward(images_nchw, is_real, enc_params, cls_params):
    """forward(images, is_real) -> (labels, None); is_real is unused (as in PyTorch)."""
    del is_real
    B, C0, H, W = images_nchw.shape
    assert H == W and (H & (H - 1)) == 0, "square, power-of-two spatial size assumed"
    assert W + 1 <= _PAD, "halo width assumes W <= 127"

    x = images_nchw.reshape(B, C0, H * W)   # NCHW is already channel-major: just flatten spatial

    args = [x]
    in_specs = [pl.BlockSpec((1, C0, H * W), lambda i: (i, 0, 0))]

    def add_arg(a, to_bf16=False):
        a = a.astype(jnp.bfloat16) if to_bf16 else a
        args.append(a)
        in_specs.append(_full_spec(a.shape))

    channels = [C0]
    for p in enc_params:
        add_arg(p["conv_w"], True)
        add_arg(p["conv_b"])
        add_arg(p["main_w"], True)
        add_arg(p["main_b"])
        channels.append(p["conv_w"].shape[1])
    add_arg(cls_params["conv_w"], True)
    add_arg(cls_params["conv_b"])
    add_arg(cls_params["lin_w"])
    add_arg(cls_params["lin_b"])

    c_max = max(channels)
    kernel = _make_discriminator_kernel(len(enc_params), H, W)

    out = pl.pallas_call(
        kernel,
        out_shape=jax.ShapeDtypeStruct((B, 1, 1), jnp.float32),
        grid=(B,),
        in_specs=in_specs,
        out_specs=pl.BlockSpec((1, 1, 1), lambda i: (i, 0, 0)),
        scratch_shapes=[pltpu.VMEM((c_max, _PAD + H * W + _PAD), jnp.bfloat16)],
        compiler_params=pltpu.CompilerParams(dimension_semantics=("parallel",)),
    )(*args)
    return out.reshape(B, 1), None


# ----------------------------------------------------------------------------
# Parameter init (weight layout: (9, Cout, Cin); tap k = dy*3+dx)
# ----------------------------------------------------------------------------

def init_params(key, channels):
    enc = []
    for in_ch, out_ch in zip(channels, channels[1:]):
        key, k1, k2, k3, k4 = jax.random.split(key, 5)
        enc.append(dict(
            conv_w=0.1 * jax.random.normal(k1, (9, out_ch, in_ch), jnp.float32),
            conv_b=0.1 * jax.random.normal(k2, (out_ch, 1), jnp.float32),
            main_w=0.1 * jax.random.normal(k3, (9, out_ch, out_ch), jnp.float32),
            main_b=0.1 * jax.random.normal(k4, (out_ch, 1), jnp.float32),
        ))
    C = channels[-1]
    key, k1, k2, k3, k4 = jax.random.split(key, 5)
    cls = dict(
        conv_w=0.1 * jax.random.normal(k1, (9, C, C), jnp.float32),
        conv_b=0.1 * jax.random.normal(k2, (C, 1), jnp.float32),
        lin_w=0.1 * jax.random.normal(k3, (C, 1), jnp.float32),   # transposed vs torch (1, C)
        lin_b=0.1 * jax.random.normal(k4, (1, 1), jnp.float32),
    )
    return enc, cls


# ----------------------------------------------------------------------------
# Main
# ----------------------------------------------------------------------------

if __name__ == "__main__":
    channels = [4, 8, 16]                    # opt.fast_discriminator_channels
    B, H, W = 2, 16, 16

    key = jax.random.PRNGKey(0)
    key, k_img = jax.random.split(key)
    images = jax.random.normal(k_img, (B, channels[0], H, W), jnp.float32)   # NCHW, like PyTorch

    enc_params, cls_params = init_params(jax.random.PRNGKey(0), channels)

    fwd = jax.jit(lambda imgs: discriminator_forward(imgs, True, enc_params, cls_params))
    labels, aux = fwd(images)
    labels = jax.block_until_ready(labels)

    assert labels.shape == (B, 1)
    assert aux is None
    print("KERNEL_OK")
</pallas_src>

<mosaic_0001>
module attributes {stable_mosaic.version = 11 : i64} {
  func.func @kernel(%arg0: i32, %arg1: memref<1x4x256xf32, #tpu.memory_space<vmem>>, %arg2: memref<9x8x4xbf16, #tpu.memory_space<vmem>>, %arg3: memref<8x1xf32, #tpu.memory_space<vmem>>, %arg4: memref<9x8x8xbf16, #tpu.memory_space<vmem>>, %arg5: memref<8x1xf32, #tpu.memory_space<vmem>>, %arg6: memref<9x16x8xbf16, #tpu.memory_space<vmem>>, %arg7: memref<16x1xf32, #tpu.memory_space<vmem>>, %arg8: memref<9x16x16xbf16, #tpu.memory_space<vmem>>, %arg9: memref<16x1xf32, #tpu.memory_space<vmem>>, %arg10: memref<9x16x16xbf16, #tpu.memory_space<vmem>>, %arg11: memref<16x1xf32, #tpu.memory_space<vmem>>, %arg12: memref<16x1xf32, #tpu.memory_space<vmem>>, %arg13: memref<1x1xf32, #tpu.memory_space<vmem>>, %arg14: memref<1x1x1xf32, #tpu.memory_space<vmem>>, %arg15: memref<16x512xbf16, #tpu.memory_space<vmem>>) attributes {dimension_semantics = [#tpu.dimension_semantics<parallel>], iteration_bounds = array<i64: 2>, scalar_prefetch = 0 : i64, scratch_operands = 1 : i64, tpu.core_type = #tpu.core_type<tc>, window_params = [{transform_indices = @transform_0, window_bounds = array<i64: 1, 4, 256>}, {pipeline_mode = #tpu.pipeline_mode<synchronous>, transform_indices = @transform_1, window_bounds = array<i64: 9, 8, 4>}, {pipeline_mode = #tpu.pipeline_mode<synchronous>, transform_indices = @transform_2, window_bounds = array<i64: 8, 1>}, {pipeline_mode = #tpu.pipeline_mode<synchronous>, transform_indices = @transform_3, window_bounds = array<i64: 9, 8, 8>}, {pipeline_mode = #tpu.pipeline_mode<synchronous>, transform_indices = @transform_4, window_bounds = array<i64: 8, 1>}, {pipeline_mode = #tpu.pipeline_mode<synchronous>, transform_indices = @transform_5, window_bounds = array<i64: 9, 16, 8>}, {pipeline_mode = #tpu.pipeline_mode<synchronous>, transform_indices = @transform_6, window_bounds = array<i64: 16, 1>}, {pipeline_mode = #tpu.pipeline_mode<synchronous>, transform_indices = @transform_7, window_bounds = array<i64: 9, 16, 16>}, {pipeline_mode = #tpu.pipeline_mode<synchronous>, transform_indices = @transform_8, window_bounds = array<i64: 16, 1>}, {pipeline_mode = #tpu.pipeline_mode<synchronous>, transform_indices = @transform_9, window_bounds = array<i64: 9, 16, 16>}, {pipeline_mode = #tpu.pipeline_mode<synchronous>, transform_indices = @transform_10, window_bounds = array<i64: 16, 1>}, {pipeline_mode = #tpu.pipeline_mode<synchronous>, transform_indices = @transform_11, window_bounds = array<i64: 16, 1>}, {pipeline_mode = #tpu.pipeline_mode<synchronous>, transform_indices = @transform_12, window_bounds = array<i64: 1, 1>}, {transform_indices = @transform_13, window_bounds = array<i64: 1, 1, 1>}]} {
    %c0 = arith.constant 0 : index
    %c0_0 = arith.constant 0 : index
    %c0_1 = arith.constant 0 : index
    %0 = vector.load %arg1[%c0, %c0_0, %c0_1] : memref<1x4x256xf32, #tpu.memory_space<vmem>>, vector<1x4x256xf32>
    %1 = vector.shape_cast %0 : vector<1x4x256xf32> to vector<4x256xf32>
    %2 = arith.truncf %1 : vector<4x256xf32> to vector<4x256xbf16>
    %cst = arith.constant 0.000000e+00 : bf16
    %3 = vector.broadcast %cst : bf16 to vector<16x512xbf16>
    %c0_2 = arith.constant 0 : index
    %c0_3 = arith.constant 0 : index
    %4 = vector.load %arg15[%c0_2, %c0_3] : memref<16x512xbf16, #tpu.memory_space<vmem>>, vector<16x512xbf16>
    tpu.vector_store %arg15[%c0_2, %c0_3], %3 {strides = array<i32>} : memref<16x512xbf16, #tpu.memory_space<vmem>>, vector<16x512xbf16>,
    %c0_4 = arith.constant 0 : index
    %c128 = arith.constant 128 : index
    %5 = vector.load %arg15[%c0_4, %c128] : memref<16x512xbf16, #tpu.memory_space<vmem>>, vector<4x256xbf16>
    tpu.vector_store %arg15[%c0_4, %c128], %2 {strides = array<i32>} : memref<16x512xbf16, #tpu.memory_space<vmem>>, vector<4x256xbf16>,
    %6 = tpu.iota {dimensions = array<i32: 1>} : vector<1x256xi32>
    %c15_i32 = arith.constant 15 : i32
    %7 = vector.broadcast %c15_i32 : i32 to vector<1x256xi32>
    %8 = arith.andi %6, %7 : vector<1x256xi32>
    %c1_i32 = arith.constant 1 : i32
    %9 = vector.broadcast %c1_i32 : i32 to vector<1x256xi32>
    %10 = arith.cmpi sge, %8, %9 : vector<1x256xi32>
    %c14_i32 = arith.constant 14 : i32
    %11 = vector.broadcast %c14_i32 : i32 to vector<1x256xi32>
    %12 = arith.cmpi sle, %8, %11 : vector<1x256xi32>
    %cst_5 = arith.constant 0.000000e+00 : f32
    %13 = vector.broadcast %cst_5 : f32 to vector<8x256xf32>
    %c0_6 = arith.constant 0 : index
    %c111 = arith.constant 111 : index
    %14 = vector.load %arg15[%c0_6, %c111] : memref<16x512xbf16, #tpu.memory_space<vmem>>, vector<4x256xbf16>
    %cst_7 = arith.constant 0.000000e+00 : bf16
    %15 = vector.broadcast %cst_7 : bf16 to vector<4x256xbf16>
    %16 = vector.shape_cast %10 : vector<1x256xi1> to vector<1x256xi1>
    %17 = vector.broadcast %16 : vector<1x256xi1> to vector<4x256xi1>
    %18 = arith.select %17, %14, %15 : vector<4x256xi1>, vector<4x256xbf16>
    %c0_8 = arith.constant 0 : index
    %c0_9 = arith.constant 0 : index
    %c0_10 = arith.constant 0 : index
    %19 = vector.load %arg2[%c0_8, %c0_9, %c0_10] : memref<9x8x4xbf16, #tpu.memory_space<vmem>>, vector<1x8x4xbf16>
    %20 = vector.shape_cast %19 : vector<1x8x4xbf16> to vector<8x4xbf16>
    %cst_11 = arith.constant dense<0.000000e+00> : vector<8x256xf32>
    %21 = tpu.matmul %20, %18, %cst_11 {dimension_numbers = #tpu.dot_dimension_numbers<[1], [0], [0], [1], [0, 0, 1, 1], [], []>} : vector<8x4xbf16>, vector<4x256xbf16>, vector<8x256xf32> -> vector<8x256xf32>
    %22 = arith.addf %13, %21 : vector<8x256xf32>
    %c0_12 = arith.constant 0 : index
    %c112 = arith.constant 112 : index
    %23 = vector.load %arg15[%c0_12, %c112] : memref<16x512xbf16, #tpu.memory_space<vmem>>, vector<4x256xbf16>
    %c1 = arith.constant 1 : index
    %c0_13 = arith.constant 0 : index
    %c0_14 = arith.constant 0 : index
    %24 = vector.load %arg2[%c1, %c0_13, %c0_14] : memref<9x8x4xbf16, #tpu.memory_space<vmem>>, vector<1x8x4xbf16>
    %25 = vector.shape_cast %24 : vector<1x8x4xbf16> to vector<8x4xbf16>
    %cst_15 = arith.constant dense<0.000000e+00> : vector<8x256xf32>
    %26 = tpu.matmul %25, %23, %cst_15 {dimension_numbers = #tpu.dot_dimension_numbers<[1], [0], [0], [1], [0, 0, 1, 1], [], []>} : vector<8x4xbf16>, vector<4x256xbf16>, vector<8x256xf32> -> vector<8x256xf32>
    %27 = arith.addf %22, %26 : vector<8x256xf32>
    %c0_16 = arith.constant 0 : index
    %c113 = arith.constant 113 : index
    %28 = vector.load %arg15[%c0_16, %c113] : memref<16x512xbf16, #tpu.memory_space<vmem>>, vector<4x256xbf16>
    %cst_17 = arith.constant 0.000000e+00 : bf16
    %29 = vector.broadcast %cst_17 : bf16 to vector<4x256xbf16>
    %30 = vector.shape_cast %12 : vector<1x256xi1> to vector<1x256xi1>
    %31 = vector.broadcast %30 : vector<1x256xi1> to vector<4x256xi1>
    %32 = arith.select %31, %28, %29 : vector<4x256xi1>, vector<4x256xbf16>
    %c2 = arith.constant 2 : index
    %c0_18 = arith.constant 0 : index
    %c0_19 = arith.constant 0 : index
    %33 = vector.load %arg2[%c2, %c0_18, %c0_19] : memref<9x8x4xbf16, #tpu.memory_space<vmem>>, vector<1x8x4xbf16>
    %34 = vector.shape_cast %33 : vector<1x8x4xbf16> to vector<8x4xbf16>
    %cst_20 = arith.constant dense<0.000000e+00> : vector<8x256xf32>
    %35 = tpu.matmul %34, %32, %cst_20 {dimension_numbers = #tpu.dot_dimension_numbers<[1], [0], [0], [1], [0, 0, 1, 1], [], []>} : vector<8x4xbf16>, vector<4x256xbf16>, vector<8x256xf32> -> vector<8x256xf32>
    %36 = arith.addf %27, %35 : vector<8x256xf32>
    %c0_21 = arith.constant 0 : index
    %c127 = arith.constant 127 : index
    %37 = vector.load %arg15[%c0_21, %c127] : memref<16x512xbf16, #tpu.memory_space<vmem>>, vector<4x256xbf16>
    %cst_22 = arith.constant 0.000000e+00 : bf16
    %38 = vector.broadcast %cst_22 : bf16 to vector<4x256xbf16>
    %39 = vector.shape_cast %10 : vector<1x256xi1> to vector<1x256xi1>
    %40 = vector.broadcast %39 : vector<1x256xi1> to vector<4x256xi1>
    %41 = arith.select %40, %37, %38 : vector<4x256xi1>, vector<4x256xbf16>
    %c3 = arith.constant 3 : index
    %c0_23 = arith.constant 0 : index
    %c0_24 = arith.constant 0 : index
    %42 = vector.load %arg2[%c3, %c0_23, %c0_24] : memref<9x8x4xbf16, #tpu.memory_space<vmem>>, vector<1x8x4xbf16>
    %43 = vector.shape_cast %42 : vector<1x8x4xbf16> to vector<8x4xbf16>
    %cst_25 = arith.constant dense<0.000000e+00> : vector<8x256xf32>
    %44 = tpu.matmul %43, %41, %cst_25 {dimension_numbers = #tpu.dot_dimension_numbers<[1], [0], [0], [1], [0, 0, 1, 1], [], []>} : vector<8x4xbf16>, vector<4x256xbf16>, vector<8x256xf32> -> vector<8x256xf32>
    %45 = arith.addf %36, %44 : vector<8x256xf32>
    %c0_26 = arith.constant 0 : index
    %c128_27 = arith.constant 128 : index
    %46 = vector.load %arg15[%c0_26, %c128_27] : memref<16x512xbf16, #tpu.memory_space<vmem>>, vector<4x256xbf16>
    %c4 = arith.constant 4 : index
    %c0_28 = arith.constant 0 : index
    %c0_29 = arith.constant 0 : index
    %47 = vector.load %arg2[%c4, %c0_28, %c0_29] : memref<9x8x4xbf16, #tpu.memory_space<vmem>>, vector<1x8x4xbf16>
    %48 = vector.shape_cast %47 : vector<1x8x4xbf16> to vector<8x4xbf16>
    %cst_30 = arith.constant dense<0.000000e+00> : vector<8x256xf32>
    %49 = tpu.matmul %48, %46, %cst_30 {dimension_numbers = #tpu.dot_dimension_numbers<[1], [0], [0], [1], [0, 0, 1, 1], [], []>} : vector<8x4xbf16>, vector<4x256xbf16>, vector<8x256xf32> -> vector<8x256xf32>
    %50 = arith.addf %45, %49 : vector<8x256xf32>
    %c0_31 = arith.constant 0 : index
    %c129 = arith.constant 129 : index
    %51 = vector.load %arg15[%c0_31, %c129] : memref<16x512xbf16, #tpu.memory_space<vmem>>, vector<4x256xbf16>
    %cst_32 = arith.constant 0.000000e+00 : bf16
    %52 = vector.broadcast %cst_32 : bf16 to vector<4x256xbf16>
    %53 = vector.shape_cast %12 : vector<1x256xi1> to vector<1x256xi1>
    %54 = vector.broadcast %53 : vector<1x256xi1> to vector<4x256xi1>
    %55 = arith.select %54, %51, %52 : vector<4x256xi1>, vector<4x256xbf16>
    %c5 = arith.constant 5 : index
    %c0_33 = arith.constant 0 : index
    %c0_34 = arith.constant 0 : index
    %56 = vector.load %arg2[%c5, %c0_33, %c0_34] : memref<9x8x4xbf16, #tpu.memory_space<vmem>>, vector<1x8x4xbf16>
    %57 = vector.shape_cast %56 : vector<1x8x4xbf16> to vector<8x4xbf16>
    %cst_35 = arith.constant dense<0.000000e+00> : vector<8x256xf32>
    %58 = tpu.matmul %57, %55, %cst_35 {dimension_numbers = #tpu.dot_dimension_numbers<[1], [0], [0], [1], [0, 0, 1, 1], [], []>} : vector<8x4xbf16>, vector<4x256xbf16>, vector<8x256xf32> -> vector<8x256xf32>
    %59 = arith.addf %50, %58 : vector<8x256xf32>
    %c0_36 = arith.constant 0 : index
    %c143 = arith.constant 143 : index
    %60 = vector.load %arg15[%c0_36, %c143] : memref<16x512xbf16, #tpu.memory_space<vmem>>, vector<4x256xbf16>
    %cst_37 = arith.constant 0.000000e+00 : bf16
    %61 = vector.broadcast %cst_37 : bf16 to vector<4x256xbf16>
    %62 = vector.shape_cast %10 : vector<1x256xi1> to vector<1x256xi1>
    %63 = vector.broadcast %62 : vector<1x256xi1> to vector<4x256xi1>
    %64 = arith.select %63, %60, %61 : vector<4x256xi1>, vector<4x256xbf16>
    %c6 = arith.constant 6 : index
    %c0_38 = arith.constant 0 : index
    %c0_39 = arith.constant 0 : index
    %65 = vector.load %arg2[%c6, %c0_38, %c0_39] : memref<9x8x4xbf16, #tpu.memory_space<vmem>>, vector<1x8x4xbf16>
    %66 = vector.shape_cast %65 : vector<1x8x4xbf16> to vector<8x4xbf16>
    %cst_40 = arith.constant dense<0.000000e+00> : vector<8x256xf32>
    %67 = tpu.matmul %66, %64, %cst_40 {dimension_numbers = #tpu.dot_dimension_numbers<[1], [0], [0], [1], [0, 0, 1, 1], [], []>} : vector<8x4xbf16>, vector<4x256xbf16>, vector<8x256xf32> -> vector<8x256xf32>
    %68 = arith.addf %59, %67 : vector<8x256xf32>
    %c0_41 = arith.constant 0 : index
    %c144 = arith.constant 144 : index
    %69 = vector.load %arg15[%c0_41, %c144] : memref<16x512xbf16, #tpu.memory_space<vmem>>, vector<4x256xbf16>
    %c7 = arith.constant 7 : index
    %c0_42 = arith.constant 0 : index
    %c0_43 = arith.constant 0 : index
    %70 = vector.load %arg2[%c7, %c0_42, %c0_43] : memref<9x8x4xbf16, #tpu.memory_space<vmem>>, vector<1x8x4xbf16>
    %71 = vector.shape_cast %70 : vector<1x8x4xbf16> to vector<8x4xbf16>
    %cst_44 = arith.constant dense<0.000000e+00> : vector<8x256xf32>
    %72 = tpu.matmul %71, %69, %cst_44 {dimension_numbers = #tpu.dot_dimension_numbers<[1], [0], [0], [1], [0, 0, 1, 1], [], []>} : vector<8x4xbf16>, vector<4x256xbf16>, vector<8x256xf32> -> vector<8x256xf32>
    %73 = arith.addf %68, %72 : vector<8x256xf32>
    %c0_45 = arith.constant 0 : index
    %c145 = arith.constant 145 : index
    %74 = vector.load %arg15[%c0_45, %c145] : memref<16x512xbf16, #tpu.memory_space<vmem>>, vector<4x256xbf16>
    %cst_46 = arith.constant 0.000000e+00 : bf16
    %75 = vector.broadcast %cst_46 : bf16 to vector<4x256xbf16>
    %76 = vector.shape_cast %12 : vector<1x256xi1> to vector<1x256xi1>
    %77 = vector.broadcast %76 : vector<1x256xi1> to vector<4x256xi1>
    %78 = arith.select %77, %74, %75 : vector<4x256xi1>, vector<4x256xbf16>
    %c8 = arith.constant 8 : index
    %c0_47 = arith.constant 0 : index
    %c0_48 = arith.constant 0 : index
    %79 = vector.load %arg2[%c8, %c0_47, %c0_48] : memref<9x8x4xbf16, #tpu.memory_space<vmem>>, vector<1x8x4xbf16>
    %80 = vector.shape_cast %79 : vector<1x8x4xbf16> to vector<8x4xbf16>
    %cst_49 = arith.constant dense<0.000000e+00> : vector<8x256xf32>
    %81 = tpu.matmul %80, %78, %cst_49 {dimension_numbers = #tpu.dot_dimension_numbers<[1], [0], [0], [1], [0, 0, 1, 1], [], []>} : vector<8x4xbf16>, vector<4x256xbf16>, vector<8x256xf32> -> vector<8x256xf32>
    %82 = arith.addf %73, %81 : vector<8x256xf32>
    %c0_50 = arith.constant 0 : index
    %c0_51 = arith.constant 0 : index
    %83 = vector.load %arg3[%c0_50, %c0_51] : memref<8x1xf32, #tpu.memory_space<vmem>>, vector<8x1xf32>
    %84 = vector.broadcast %83 : vector<8x1xf32> to vector<8x256xf32>
    %85 = arith.addf %82, %84 : vector<8x256xf32>
    %cst_52 = arith.constant 0.000000e+00 : f32
    %86 = vector.broadcast %cst_52 : f32 to vector<8x256xf32>
    %87 = arith.cmpf oge, %85, %86 : vector<8x256xf32>
    %cst_53 = arith.constant 2.000000e-01 : f32
    %88 = vector.broadcast %cst_53 : f32 to vector<8x256xf32>
    %89 = arith.mulf %88, %85 : vector<8x256xf32>
    %90 = arith.select %87, %85, %89 : vector<8x256xi1>, vector<8x256xf32>
    %91 = tpu.iota {dimensions = array<i32: 0>} : vector<256x64xi32>
    %92 = tpu.iota {dimensions = array<i32: 1>} : vector<256x64xi32>
    %c4_i32 = arith.constant 4 : i32
    %93 = vector.broadcast %c4_i32 : i32 to vector<256x64xi32>
    %94 = arith.shrsi %91, %93 : vector<256x64xi32>
    %c15_i32_54 = arith.constant 15 : i32
    %95 = vector.broadcast %c15_i32_54 : i32 to vector<256x64xi32>
    %96 = arith.andi %91, %95 : vector<256x64xi32>
    %c3_i32 = arith.constant 3 : i32
    %97 = vector.broadcast %c3_i32 : i32 to vector<256x64xi32>
    %98 = arith.shrsi %92, %97 : vector<256x64xi32>
    %c7_i32 = arith.constant 7 : i32
    %99 = vector.broadcast %c7_i32 : i32 to vector<256x64xi32>
    %100 = arith.andi %92, %99 : vector<256x64xi32>
    %c1_i32_55 = arith.constant 1 : i32
    %101 = vector.broadcast %c1_i32_55 : i32 to vector<256x64xi32>
    %102 = arith.shrsi %94, %101 : vector<256x64xi32>
    %103 = arith.cmpi eq, %102, %98 : vector<256x64xi32>
    %c1_i32_56 = arith.constant 1 : i32
    %104 = vector.broadcast %c1_i32_56 : i32 to vector<256x64xi32>
    %105 = arith.shrsi %96, %104 : vector<256x64xi32>
    %106 = arith.cmpi eq, %105, %100 : vector<256x64xi32>
    %107 = arith.andi %103, %106 : vector<256x64xi1>
    %cst_57 = arith.constant 2.500000e-01 : f32
    %cst_58 = arith.constant 0.000000e+00 : f32
    %108 = vector.broadcast %cst_57 : f32 to vector<256x64xf32>
    %109 = vector.broadcast %cst_58 : f32 to vector<256x64xf32>
    %110 = arith.select %107, %108, %109 : vector<256x64xi1>, vector<256x64xf32>
    %111 = arith.sitofp %98 : vector<256x64xi32> to vector<256x64xf32>
    %cst_59 = arith.constant 2.14285707 : f32
    %112 = vector.broadcast %cst_59 : f32 to vector<256x64xf32>
    %113 = arith.mulf %111, %112 : vector<256x64xf32>
    %114 = arith.sitofp %100 : vector<256x64xi32> to vector<256x64xf32>
    %cst_60 = arith.constant 2.14285707 : f32
    %115 = vector.broadcast %cst_60 : f32 to vector<256x64xf32>
    %116 = arith.mulf %114, %115 : vector<256x64xf32>
    %117 = arith.sitofp %94 : vector<256x64xi32> to vector<256x64xf32>
    %118 = arith.subf %117, %113 : vector<256x64xf32>
    %119 = math.absf %118 : vector<256x64xf32>
    %cst_61 = arith.constant 1.000000e+00 : f32
    %120 = vector.broadcast %cst_61 : f32 to vector<256x64xf32>
    %121 = arith.subf %120, %119 : vector<256x64xf32>
    %cst_62 = arith.constant 0.000000e+00 : f32
    %122 = vector.broadcast %cst_62 : f32 to vector<256x64xf32>
    %123 = arith.maximumf %122, %121 : vector<256x64xf32>
    %124 = arith.sitofp %96 : vector<256x64xi32> to vector<256x64xf32>
    %125 = arith.subf %124, %116 : vector<256x64xf32>
    %126 = math.absf %125 : vector<256x64xf32>
    %cst_63 = arith.constant 1.000000e+00 : f32
    %127 = vector.broadcast %cst_63 : f32 to vector<256x64xf32>
    %128 = arith.subf %127, %126 : vector<256x64xf32>
    %cst_64 = arith.constant 0.000000e+00 : f32
    %129 = vector.broadcast %cst_64 : f32 to vector<256x64xf32>
    %130 = arith.maximumf %129, %128 : vector<256x64xf32>
    %131 = arith.mulf %123, %130 : vector<256x64xf32>
    %cst_65 = arith.constant dense<0.000000e+00> : vector<8x64xf32>
    %132 = tpu.matmul %90, %110, %cst_65 {dimension_numbers = #tpu.dot_dimension_numbers<[1], [0], [0], [1], [0, 0, 1, 1], [], []>} : vector<8x256xf32>, vector<256x64xf32>, vector<8x64xf32> -> vector<8x64xf32>
    %cst_66 = arith.constant dense<0.000000e+00> : vector<8x64xf32>
    %133 = tpu.matmul %90, %131, %cst_66 {dimension_numbers = #tpu.dot_dimension_numbers<[1], [0], [0], [1], [0, 0, 1, 1], [], []>} : vector<8x256xf32>, vector<256x64xf32>, vector<8x64xf32> -> vector<8x64xf32>
    %134 = arith.truncf %132 : vector<8x64xf32> to vector<8x64xbf16>
    %cst_67 = arith.constant 0.000000e+00 : bf16
    %135 = vector.broadcast %cst_67 : bf16 to vector<16x512xbf16>
    %c0_68 = arith.constant 0 : index
    %c0_69 = arith.constant 0 : index
    %136 = vector.load %arg15[%c0_68, %c0_69] : memref<16x512xbf16, #tpu.memory_space<vmem>>, vector<16x512xbf16>
    tpu.vector_store %arg15[%c0_68, %c0_69], %135 {strides = array<i32>} : memref<16x512xbf16, #tpu.memory_space<vmem>>, vector<16x512xbf16>,
    %c0_70 = arith.constant 0 : index
    %c128_71 = arith.constant 128 : index
    %137 = vector.load %arg15[%c0_70, %c128_71] : memref<16x512xbf16, #tpu.memory_space<vmem>>, vector<8x64xbf16>
    tpu.vector_store %arg15[%c0_70, %c128_71], %134 {strides = array<i32>} : memref<16x512xbf16, #tpu.memory_space<vmem>>, vector<8x64xbf16>,
    %138 = tpu.iota {dimensions = array<i32: 1>} : vector<1x64xi32>
    %c7_i32_72 = arith.constant 7 : i32
    %139 = vector.broadcast %c7_i32_72 : i32 to vector<1x64xi32>
    %140 = arith.andi %138, %139 : vector<1x64xi32>
    %c1_i32_73 = arith.constant 1 : i32
    %141 = vector.broadcast %c1_i32_73 : i32 to vector<1x64xi32>
    %142 = arith.cmpi sge, %140, %141 : vector<1x64xi32>
    %c6_i32 = arith.constant 6 : i32
    %143 = vector.broadcast %c6_i32 : i32 to vector<1x64xi32>
    %144 = arith.cmpi sle, %140, %143 : vector<1x64xi32>
    %cst_74 = arith.constant 0.000000e+00 : f32
    %145 = vector.broadcast %cst_74 : f32 to vector<8x64xf32>
    %c0_75 = arith.constant 0 : index
    %c119 = arith.constant 119 : index
    %146 = vector.load %arg15[%c0_75, %c119] : memref<16x512xbf16, #tpu.memory_space<vmem>>, vector<8x64xbf16>
    %cst_76 = arith.constant 0.000000e+00 : bf16
    %147 = vector.broadcast %cst_76 : bf16 to vector<8x64xbf16>
    %148 = vector.shape_cast %142 : vector<1x64xi1> to vector<1x64xi1>
    %149 = vector.broadcast %148 : vector<1x64xi1> to vector<8x64xi1>
    %150 = arith.select %149, %146, %147 : vector<8x64xi1>, vector<8x64xbf16>
    %c0_77 = arith.constant 0 : index
    %c0_78 = arith.constant 0 : index
    %c0_79 = arith.constant 0 : index
    %151 = vector.load %arg4[%c0_77, %c0_78, %c0_79] : memref<9x8x8xbf16, #tpu.memory_space<vmem>>, vector<1x8x8xbf16>
    %152 = vector.shape_cast %151 : vector<1x8x8xbf16> to vector<8x8xbf16>
    %cst_80 = arith.constant dense<0.000000e+00> : vector<8x64xf32>
    %153 = tpu.matmul %152, %150, %cst_80 {dimension_numbers = #tpu.dot_dimension_numbers<[1], [0], [0], [1], [0, 0, 1, 1], [], []>} : vector<8x8xbf16>, vector<8x64xbf16>, vector<8x64xf32> -> vector<8x64xf32>
    %154 = arith.addf %145, %153 : vector<8x64xf32>
    %c0_81 = arith.constant 0 : index
    %c120 = arith.constant 120 : index
    %155 = vector.load %arg15[%c0_81, %c120] : memref<16x512xbf16, #tpu.memory_space<vmem>>, vector<8x64xbf16>
    %c1_82 = arith.constant 1 : index
    %c0_83 = arith.constant 0 : index
    %c0_84 = arith.constant 0 : index
    %156 = vector.load %arg4[%c1_82, %c0_83, %c0_84] : memref<9x8x8xbf16, #tpu.memory_space<vmem>>, vector<1x8x8xbf16>
    %157 = vector.shape_cast %156 : vector<1x8x8xbf16> to vector<8x8xbf16>
    %cst_85 = arith.constant dense<0.000000e+00> : vector<8x64xf32>
    %158 = tpu.matmul %157, %155, %cst_85 {dimension_numbers = #tpu.dot_dimension_numbers<[1], [0], [0], [1], [0, 0, 1, 1], [], []>} : vector<8x8xbf16>, vector<8x64xbf16>, vector<8x64xf32> -> vector<8x64xf32>
    %159 = arith.addf %154, %158 : vector<8x64xf32>
    %c0_86 = arith.constant 0 : index
    %c121 = arith.constant 121 : index
    %160 = vector.load %arg15[%c0_86, %c121] : memref<16x512xbf16, #tpu.memory_space<vmem>>, vector<8x64xbf16>
    %cst_87 = arith.constant 0.000000e+00 : bf16
    %161 = vector.broadcast %cst_87 : bf16 to vector<8x64xbf16>
    %162 = vector.shape_cast %144 : vector<1x64xi1> to vector<1x64xi1>
    %163 = vector.broadcast %162 : vector<1x64xi1> to vector<8x64xi1>
    %164 = arith.select %163, %160, %161 : vector<8x64xi1>, vector<8x64xbf16>
    %c2_88 = arith.constant 2 : index
    %c0_89 = arith.constant 0 : index
    %c0_90 = arith.constant 0 : index
    %165 = vector.load %arg4[%c2_88, %c0_89, %c0_90] : memref<9x8x8xbf16, #tpu.memory_space<vmem>>, vector<1x8x8xbf16>
    %166 = vector.shape_cast %165 : vector<1x8x8xbf16> to vector<8x8xbf16>
    %cst_91 = arith.constant dense<0.000000e+00> : vector<8x64xf32>
    %167 = tpu.matmul %166, %164, %cst_91 {dimension_numbers = #tpu.dot_dimension_numbers<[1], [0], [0], [1], [0, 0, 1, 1], [], []>} : vector<8x8xbf16>, vector<8x64xbf16>, vector<8x64xf32> -> vector<8x64xf32>
    %168 = arith.addf %159, %167 : vector<8x64xf32>
    %c0_92 = arith.constant 0 : index
    %c127_93 = arith.constant 127 : index
    %169 = vector.load %arg15[%c0_92, %c127_93] : memref<16x512xbf16, #tpu.memory_space<vmem>>, vector<8x64xbf16>
    %cst_94 = arith.constant 0.000000e+00 : bf16
    %170 = vector.broadcast %cst_94 : bf16 to vector<8x64xbf16>
    %171 = vector.shape_cast %142 : vector<1x64xi1> to vector<1x64xi1>
    %172 = vector.broadcast %171 : vector<1x64xi1> to vector<8x64xi1>
    %173 = arith.select %172, %169, %170 : vector<8x64xi1>, vector<8x64xbf16>
    %c3_95 = arith.constant 3 : index
    %c0_96 = arith.constant 0 : index
    %c0_97 = arith.constant 0 : index
    %174 = vector.load %arg4[%c3_95, %c0_96, %c0_97] : memref<9x8x8xbf16, #tpu.memory_space<vmem>>, vector<1x8x8xbf16>
    %175 = vector.shape_cast %174 : vector<1x8x8xbf16> to vector<8x8xbf16>
    %cst_98 = arith.constant dense<0.000000e+00> : vector<8x64xf32>
    %176 = tpu.matmul %175, %173, %cst_98 {dimension_numbers = #tpu.dot_dimension_numbers<[1], [0], [0], [1], [0, 0, 1, 1], [], []>} : vector<8x8xbf16>, vector<8x64xbf16>, vector<8x64xf32> -> vector<8x64xf32>
    %177 = arith.addf %168, %176 : vector<8x64xf32>
    %c0_99 = arith.constant 0 : index
    %c128_100 = arith.constant 128 : index
    %178 = vector.load %arg15[%c0_99, %c128_100] : memref<16x512xbf16, #tpu.memory_space<vmem>>, vector<8x64xbf16>
    %c4_101 = arith.constant 4 : index
    %c0_102 = arith.constant 0 : index
    %c0_103 = arith.constant 0 : index
    %179 = vector.load %arg4[%c4_101, %c0_102, %c0_103] : memref<9x8x8xbf16, #tpu.memory_space<vmem>>, vector<1x8x8xbf16>
    %180 = vector.shape_cast %179 : vector<1x8x8xbf16> to vector<8x8xbf16>
    %cst_104 = arith.constant dense<0.000000e+00> : vector<8x64xf32>
    %181 = tpu.matmul %180, %178, %cst_104 {dimension_numbers = #tpu.dot_dimension_numbers<[1], [0], [0], [1], [0, 0, 1, 1], [], []>} : vector<8x8xbf16>, vector<8x64xbf16>, vector<8x64xf32> -> vector<8x64xf32>
    %182 = arith.addf %177, %181 : vector<8x64xf32>
    %c0_105 = arith.constant 0 : index
    %c129_106 = arith.constant 129 : index
    %183 = vector.load %arg15[%c0_105, %c129_106] : memref<16x512xbf16, #tpu.memory_space<vmem>>, vector<8x64xbf16>
    %cst_107 = arith.constant 0.000000e+00 : bf16
    %184 = vector.broadcast %cst_107 : bf16 to vector<8x64xbf16>
    %185 = vector.shape_cast %144 : vector<1x64xi1> to vector<1x64xi1>
    %186 = vector.broadcast %185 : vector<1x64xi1> to vector<8x64xi1>
    %187 = arith.select %186, %183, %184 : vector<8x64xi1>, vector<8x64xbf16>
    %c5_108 = arith.constant 5 : index
    %c0_109 = arith.constant 0 : index
    %c0_110 = arith.constant 0 : index
    %188 = vector.load %arg4[%c5_108, %c0_109, %c0_110] : memref<9x8x8xbf16, #tpu.memory_space<vmem>>, vector<1x8x8xbf16>
    %189 = vector.shape_cast %188 : vector<1x8x8xbf16> to vector<8x8xbf16>
    %cst_111 = arith.constant dense<0.000000e+00> : vector<8x64xf32>
    %190 = tpu.matmul %189, %187, %cst_111 {dimension_numbers = #tpu.dot_dimension_numbers<[1], [0], [0], [1], [0, 0, 1, 1], [], []>} : vector<8x8xbf16>, vector<8x64xbf16>, vector<8x64xf32> -> vector<8x64xf32>
    %191 = arith.addf %182, %190 : vector<8x64xf32>
    %c0_112 = arith.constant 0 : index
    %c135 = arith.constant 135 : index
    %192 = vector.load %arg15[%c0_112, %c135] : memref<16x512xbf16, #tpu.memory_space<vmem>>, vector<8x64xbf16>
    %cst_113 = arith.constant 0.000000e+00 : bf16
    %193 = vector.broadcast %cst_113 : bf16 to vector<8x64xbf16>
    %194 = vector.shape_cast %142 : vector<1x64xi1> to vector<1x64xi1>
    %195 = vector.broadcast %194 : vector<1x64xi1> to vector<8x64xi1>
    %196 = arith.select %195, %192, %193 : vector<8x64xi1>, vector<8x64xbf16>
    %c6_114 = arith.constant 6 : index
    %c0_115 = arith.constant 0 : index
    %c0_116 = arith.constant 0 : index
    %197 = vector.load %arg4[%c6_114, %c0_115, %c0_116] : memref<9x8x8xbf16, #tpu.memory_space<vmem>>, vector<1x8x8xbf16>
    %198 = vector.shape_cast %197 : vector<1x8x8xbf16> to vector<8x8xbf16>
    %cst_117 = arith.constant dense<0.000000e+00> : vector<8x64xf32>
    %199 = tpu.matmul %198, %196, %cst_117 {dimension_numbers = #tpu.dot_dimension_numbers<[1], [0], [0], [1], [0, 0, 1, 1], [], []>} : vector<8x8xbf16>, vector<8x64xbf16>, vector<8x64xf32> -> vector<8x64xf32>
    %200 = arith.addf %191, %199 : vector<8x64xf32>
    %c0_118 = arith.constant 0 : index
    %c136 = arith.constant 136 : index
    %201 = vector.load %arg15[%c0_118, %c136] : memref<16x512xbf16, #tpu.memory_space<vmem>>, vector<8x64xbf16>
    %c7_119 = arith.constant 7 : index
    %c0_120 = arith.constant 0 : index
    %c0_121 = arith.constant 0 : index
    %202 = vector.load %arg4[%c7_119, %c0_120, %c0_121] : memref<9x8x8xbf16, #tpu.memory_space<vmem>>, vector<1x8x8xbf16>
    %203 = vector.shape_cast %202 : vector<1x8x8xbf16> to vector<8x8xbf16>
    %cst_122 = arith.constant dense<0.000000e+00> : vector<8x64xf32>
    %204 = tpu.matmul %203, %201, %cst_122 {dimension_numbers = #tpu.dot_dimension_numbers<[1], [0], [0], [1], [0, 0, 1, 1], [], []>} : vector<8x8xbf16>, vector<8x64xbf16>, vector<8x64xf32> -> vector<8x64xf32>
    %205 = arith.addf %200, %204 : vector<8x64xf32>
    %c0_123 = arith.constant 0 : index
    %c137 = arith.constant 137 : index
    %206 = vector.load %arg15[%c0_123, %c137] : memref<16x512xbf16, #tpu.memory_space<vmem>>, vector<8x64xbf16>
    %cst_124 = arith.constant 0.000000e+00 : bf16
    %207 = vector.broadcast %cst_124 : bf16 to vector<8x64xbf16>
    %208 = vector.shape_cast %144 : vector<1x64xi1> to vector<1x64xi1>
    %209 = vector.broadcast %208 : vector<1x64xi1> to vector<8x64xi1>
    %210 = arith.select %209, %206, %207 : vector<8x64xi1>, vector<8x64xbf16>
    %c8_125 = arith.constant 8 : index
    %c0_126 = arith.constant 0 : index
    %c0_127 = arith.constant 0 : index
    %211 = vector.load %arg4[%c8_125, %c0_126, %c0_127] : memref<9x8x8xbf16, #tpu.memory_space<vmem>>, vector<1x8x8xbf16>
    %212 = vector.shape_cast %211 : vector<1x8x8xbf16> to vector<8x8xbf16>
    %cst_128 = arith.constant dense<0.000000e+00> : vector<8x64xf32>
    %213 = tpu.matmul %212, %210, %cst_128 {dimension_numbers = #tpu.dot_dimension_numbers<[1], [0], [0], [1], [0, 0, 1, 1], [], []>} : vector<8x8xbf16>, vector<8x64xbf16>, vector<8x64xf32> -> vector<8x64xf32>
    %214 = arith.addf %205, %213 : vector<8x64xf32>
    %c0_129 = arith.constant 0 : index
    %c0_130 = arith.constant 0 : index
    %215 = vector.load %arg5[%c0_129, %c0_130] : memref<8x1xf32, #tpu.memory_space<vmem>>, vector<8x1xf32>
    %216 = vector.broadcast %215 : vector<8x1xf32> to vector<8x64xf32>
    %217 = arith.addf %214, %216 : vector<8x64xf32>
    %cst_131 = arith.constant 0.000000e+00 : f32
    %218 = vector.broadcast %cst_131 : f32 to vector<8x64xf32>
    %219 = arith.cmpf oge, %217, %218 : vector<8x64xf32>
    %cst_132 = arith.constant 2.000000e-01 : f32
    %220 = vector.broadcast %cst_132 : f32 to vector<8x64xf32>
    %221 = arith.mulf %220, %217 : vector<8x64xf32>
    %222 = arith.select %219, %217, %221 : vector<8x64xi1>, vector<8x64xf32>
    %223 = arith.addf %222, %133 : vector<8x64xf32>
    %224 = arith.truncf %223 : vector<8x64xf32> to vector<8x64xbf16>
    %cst_133 = arith.constant 0.000000e+00 : bf16
    %225 = vector.broadcast %cst_133 : bf16 to vector<16x512xbf16>
    %c0_134 = arith.constant 0 : index
    %c0_135 = arith.constant 0 : index
    %226 = vector.load %arg15[%c0_134, %c0_135] : memref<16x512xbf16, #tpu.memory_space<vmem>>, vector<16x512xbf16>
    tpu.vector_store %arg15[%c0_134, %c0_135], %225 {strides = array<i32>} : memref<16x512xbf16, #tpu.memory_space<vmem>>, vector<16x512xbf16>,
    %c0_136 = arith.constant 0 : index
    %c128_137 = arith.constant 128 : index
    %227 = vector.load %arg15[%c0_136, %c128_137] : memref<16x512xbf16, #tpu.memory_space<vmem>>, vector<8x64xbf16>
    tpu.vector_store %arg15[%c0_136, %c128_137], %224 {strides = array<i32>} : memref<16x512xbf16, #tpu.memory_space<vmem>>, vector<8x64xbf16>,
    %228 = tpu.iota {dimensions = array<i32: 1>} : vector<1x64xi32>
    %c7_i32_138 = arith.constant 7 : i32
    %229 = vector.broadcast %c7_i32_138 : i32 to vector<1x64xi32>
    %230 = arith.andi %228, %229 : vector<1x64xi32>
    %c1_i32_139 = arith.constant 1 : i32
    %231 = vector.broadcast %c1_i32_139 : i32 to vector<1x64xi32>
    %232 = arith.cmpi sge, %230, %231 : vector<1x64xi32>
    %c6_i32_140 = arith.constant 6 : i32
    %233 = vector.broadcast %c6_i32_140 : i32 to vector<1x64xi32>
    %234 = arith.cmpi sle, %230, %233 : vector<1x64xi32>
    %cst_141 = arith.constant 0.000000e+00 : f32
    %235 = vector.broadcast %cst_141 : f32 to vector<16x64xf32>
    %c0_142 = arith.constant 0 : index
    %c119_143 = arith.constant 119 : index
    %236 = vector.load %arg15[%c0_142, %c119_143] : memref<16x512xbf16, #tpu.memory_space<vmem>>, vector<8x64xbf16>
    %cst_144 = arith.constant 0.000000e+00 : bf16
    %237 = vector.broadcast %cst_144 : bf16 to vector<8x64xbf16>
    %238 = vector.shape_cast %232 : vector<1x64xi1> to vector<1x64xi1>
    %239 = vector.broadcast %238 : vector<1x64xi1> to vector<8x64xi1>
    %240 = arith.select %239, %236, %237 : vector<8x64xi1>, vector<8x64xbf16>
    %c0_145 = arith.constant 0 : index
    %c0_146 = arith.constant 0 : index
    %c0_147 = arith.constant 0 : index
    %241 = vector.load %arg6[%c0_145, %c0_146, %c0_147] : memref<9x16x8xbf16, #tpu.memory_space<vmem>>, vector<1x16x8xbf16>
    %242 = vector.shape_cast %241 : vector<1x16x8xbf16> to vector<16x8xbf16>
    %cst_148 = arith.constant dense<0.000000e+00> : vector<16x64xf32>
    %243 = tpu.matmul %242, %240, %cst_148 {dimension_numbers = #tpu.dot_dimension_numbers<[1], [0], [0], [1], [0, 0, 1, 1], [], []>} : vector<16x8xbf16>, vector<8x64xbf16>, vector<16x64xf32> -> vector<16x64xf32>
    %244 = arith.addf %235, %243 : vector<16x64xf32>
    %c0_149 = arith.constant 0 : index
    %c120_150 = arith.constant 120 : index
    %245 = vector.load %arg15[%c0_149, %c120_150] : memref<16x512xbf16, #tpu.memory_space<vmem>>, vector<8x64xbf16>
    %c1_151 = arith.constant 1 : index
    %c0_152 = arith.constant 0 : index
    %c0_153 = arith.constant 0 : index
    %246 = vector.load %arg6[%c1_151, %c0_152, %c0_153] : memref<9x16x8xbf16, #tpu.memory_space<vmem>>, vector<1x16x8xbf16>
    %247 = vector.shape_cast %246 : vector<1x16x8xbf16> to vector<16x8xbf16>
    %cst_154 = arith.constant dense<0.000000e+00> : vector<16x64xf32>
    %248 = tpu.matmul %247, %245, %cst_154 {dimension_numbers = #tpu.dot_dimension_numbers<[1], [0], [0], [1], [0, 0, 1, 1], [], []>} : vector<16x8xbf16>, vector<8x64xbf16>, vector<16x64xf32> -> vector<16x64xf32>
    %249 = arith.addf %244, %248 : vector<16x64xf32>
    %c0_155 = arith.constant 0 : index
    %c121_156 = arith.constant 121 : index
    %250 = vector.load %arg15[%c0_155, %c121_156] : memref<16x512xbf16, #tpu.memory_space<vmem>>, vector<8x64xbf16>
    %cst_157 = arith.constant 0.000000e+00 : bf16
    %251 = vector.broadcast %cst_157 : bf16 to vector<8x64xbf16>
    %252 = vector.shape_cast %234 : vector<1x64xi1> to vector<1x64xi1>
    %253 = vector.broadcast %252 : vector<1x64xi1> to vector<8x64xi1>
    %254 = arith.select %253, %250, %251 : vector<8x64xi1>, vector<8x64xbf16>
    %c2_158 = arith.constant 2 : index
    %c0_159 = arith.constant 0 : index
    %c0_160 = arith.constant 0 : index
    %255 = vector.load %arg6[%c2_158, %c0_159, %c0_160] : memref<9x16x8xbf16, #tpu.memory_space<vmem>>, vector<1x16x8xbf16>
    %256 = vector.shape_cast %255 : vector<1x16x8xbf16> to vector<16x8xbf16>
    %cst_161 = arith.constant dense<0.000000e+00> : vector<16x64xf32>
    %257 = tpu.matmul %256, %254, %cst_161 {dimension_numbers = #tpu.dot_dimension_numbers<[1], [0], [0], [1], [0, 0, 1, 1], [], []>} : vector<16x8xbf16>, vector<8x64xbf16>, vector<16x64xf32> -> vector<16x64xf32>
    %258 = arith.addf %249, %257 : vector<16x64xf32>
    %c0_162 = arith.constant 0 : index
    %c127_163 = arith.constant 127 : index
    %259 = vector.load %arg15[%c0_162, %c127_163] : memref<16x512xbf16, #tpu.memory_space<vmem>>, vector<8x64xbf16>
    %cst_164 = arith.constant 0.000000e+00 : bf16
    %260 = vector.broadcast %cst_164 : bf16 to vector<8x64xbf16>
    %261 = vector.shape_cast %232 : vector<1x64xi1> to vector<1x64xi1>
    %262 = vector.broadcast %261 : vector<1x64xi1> to vector<8x64xi1>
    %263 = arith.select %262, %259, %260 : vector<8x64xi1>, vector<8x64xbf16>
    %c3_165 = arith.constant 3 : index
    %c0_166 = arith.constant 0 : index
    %c0_167 = arith.constant 0 : index
    %264 = vector.load %arg6[%c3_165, %c0_166, %c0_167] : memref<9x16x8xbf16, #tpu.memory_space<vmem>>, vector<1x16x8xbf16>
    %265 = vector.shape_cast %264 : vector<1x16x8xbf16> to vector<16x8xbf16>
    %cst_168 = arith.constant dense<0.000000e+00> : vector<16x64xf32>
    %266 = tpu.matmul %265, %263, %cst_168 {dimension_numbers = #tpu.dot_dimension_numbers<[1], [0], [0], [1], [0, 0, 1, 1], [], []>} : vector<16x8xbf16>, vector<8x64xbf16>, vector<16x64xf32> -> vector<16x64xf32>
    %267 = arith.addf %258, %266 : vector<16x64xf32>
    %c0_169 = arith.constant 0 : index
    %c128_170 = arith.constant 128 : index
    %268 = vector.load %arg15[%c0_169, %c128_170] : memref<16x512xbf16, #tpu.memory_space<vmem>>, vector<8x64xbf16>
    %c4_171 = arith.constant 4 : index
    %c0_172 = arith.constant 0 : index
    %c0_173 = arith.constant 0 : index
    %269 = vector.load %arg6[%c4_171, %c0_172, %c0_173] : memref<9x16x8xbf16, #tpu.memory_space<vmem>>, vector<1x16x8xbf16>
    %270 = vector.shape_cast %269 : vector<1x16x8xbf16> to vector<16x8xbf16>
    %cst_174 = arith.constant dense<0.000000e+00> : vector<16x64xf32>
    %271 = tpu.matmul %270, %268, %cst_174 {dimension_numbers = #tpu.dot_dimension_numbers<[1], [0], [0], [1], [0, 0, 1, 1], [], []>} : vector<16x8xbf16>, vector<8x64xbf16>, vector<16x64xf32> -> vector<16x64xf32>
    %272 = arith.addf %267, %271 : vector<16x64xf32>
    %c0_175 = arith.constant 0 : index
    %c129_176 = arith.constant 129 : index
    %273 = vector.load %arg15[%c0_175, %c129_176] : memref<16x512xbf16, #tpu.memory_space<vmem>>, vector<8x64xbf16>
    %cst_177 = arith.constant 0.000000e+00 : bf16
    %274 = vector.broadcast %cst_177 : bf16 to vector<8x64xbf16>
    %275 = vector.shape_cast %234 : vector<1x64xi1> to vector<1x64xi1>
    %276 = vector.broadcast %275 : vector<1x64xi1> to vector<8x64xi1>
    %277 = arith.select %276, %273, %274 : vector<8x64xi1>, vector<8x64xbf16>
    %c5_178 = arith.constant 5 : index
    %c0_179 = arith.constant 0 : index
    %c0_180 = arith.constant 0 : index
    %278 = vector.load %arg6[%c5_178, %c0_179, %c0_180] : memref<9x16x8xbf16, #tpu.memory_space<vmem>>, vector<1x16x8xbf16>
    %279 = vector.shape_cast %278 : vector<1x16x8xbf16> to vector<16x8xbf16>
    %cst_181 = arith.constant dense<0.000000e+00> : vector<16x64xf32>
    %280 = tpu.matmul %279, %277, %cst_181 {dimension_numbers = #tpu.dot_dimension_numbers<[1], [0], [0], [1], [0, 0, 1, 1], [], []>} : vector<16x8xbf16>, vector<8x64xbf16>, vector<16x64xf32> -> vector<16x64xf32>
    %281 = arith.addf %272, %280 : vector<16x64xf32>
    %c0_182 = arith.constant 0 : index
    %c135_183 = arith.constant 135 : index
    %282 = vector.load %arg15[%c0_182, %c135_183] : memref<16x512xbf16, #tpu.memory_space<vmem>>, vector<8x64xbf16>
    %cst_184 = arith.constant 0.000000e+00 : bf16
    %283 = vector.broadcast %cst_184 : bf16 to vector<8x64xbf16>
    %284 = vector.shape_cast %232 : vector<1x64xi1> to vector<1x64xi1>
    %285 = vector.broadcast %284 : vector<1x64xi1> to vector<8x64xi1>
    %286 = arith.select %285, %282, %283 : vector<8x64xi1>, vector<8x64xbf16>
    %c6_185 = arith.constant 6 : index
    %c0_186 = arith.constant 0 : index
    %c0_187 = arith.constant 0 : index
    %287 = vector.load %arg6[%c6_185, %c0_186, %c0_187] : memref<9x16x8xbf16, #tpu.memory_space<vmem>>, vector<1x16x8xbf16>
    %288 = vector.shape_cast %287 : vector<1x16x8xbf16> to vector<16x8xbf16>
    %cst_188 = arith.constant dense<0.000000e+00> : vector<16x64xf32>
    %289 = tpu.matmul %288, %286, %cst_188 {dimension_numbers = #tpu.dot_dimension_numbers<[1], [0], [0], [1], [0, 0, 1, 1], [], []>} : vector<16x8xbf16>, vector<8x64xbf16>, vector<16x64xf32> -> vector<16x64xf32>
    %290 = arith.addf %281, %289 : vector<16x64xf32>
    %c0_189 = arith.constant 0 : index
    %c136_190 = arith.constant 136 : index
    %291 = vector.load %arg15[%c0_189, %c136_190] : memref<16x512xbf16, #tpu.memory_space<vmem>>, vector<8x64xbf16>
    %c7_191 = arith.constant 7 : index
    %c0_192 = arith.constant 0 : index
    %c0_193 = arith.constant 0 : index
    %292 = vector.load %arg6[%c7_191, %c0_192, %c0_193] : memref<9x16x8xbf16, #tpu.memory_space<vmem>>, vector<1x16x8xbf16>
    %293 = vector.shape_cast %292 : vector<1x16x8xbf16> to vector<16x8xbf16>
    %cst_194 = arith.constant dense<0.000000e+00> : vector<16x64xf32>
    %294 = tpu.matmul %293, %291, %cst_194 {dimension_numbers = #tpu.dot_dimension_numbers<[1], [0], [0], [1], [0, 0, 1, 1], [], []>} : vector<16x8xbf16>, vector<8x64xbf16>, vector<16x64xf32> -> vector<16x64xf32>
    %295 = arith.addf %290, %294 : vector<16x64xf32>
    %c0_195 = arith.constant 0 : index
    %c137_196 = arith.constant 137 : index
    %296 = vector.load %arg15[%c0_195, %c137_196] : memref<16x512xbf16, #tpu.memory_space<vmem>>, vector<8x64xbf16>
    %cst_197 = arith.constant 0.000000e+00 : bf16
    %297 = vector.broadcast %cst_197 : bf16 to vector<8x64xbf16>
    %298 = vector.shape_cast %234 : vector<1x64xi1> to vector<1x64xi1>
    %299 = vector.broadcast %298 : vector<1x64xi1> to vector<8x64xi1>
    %300 = arith.select %299, %296, %297 : vector<8x64xi1>, vector<8x64xbf16>
    %c8_198 = arith.constant 8 : index
    %c0_199 = arith.constant 0 : index
    %c0_200 = arith.constant 0 : index
    %301 = vector.load %arg6[%c8_198, %c0_199, %c0_200] : memref<9x16x8xbf16, #tpu.memory_space<vmem>>, vector<1x16x8xbf16>
    %302 = vector.shape_cast %301 : vector<1x16x8xbf16> to vector<16x8xbf16>
    %cst_201 = arith.constant dense<0.000000e+00> : vector<16x64xf32>
    %303 = tpu.matmul %302, %300, %cst_201 {dimension_numbers = #tpu.dot_dimension_numbers<[1], [0], [0], [1], [0, 0, 1, 1], [], []>} : vector<16x8xbf16>, vector<8x64xbf16>, vector<16x64xf32> -> vector<16x64xf32>
    %304 = arith.addf %295, %303 : vector<16x64xf32>
    %c0_202 = arith.constant 0 : index
    %c0_203 = arith.constant 0 : index
    %305 = vector.load %arg7[%c0_202, %c0_203] : memref<16x1xf32, #tpu.memory_space<vmem>>, vector<16x1xf32>
    %306 = vector.broadcast %305 : vector<16x1xf32> to vector<16x64xf32>
    %307 = arith.addf %304, %306 : vector<16x64xf32>
    %cst_204 = arith.constant 0.000000e+00 : f32
    %308 = vector.broadcast %cst_204 : f32 to vector<16x64xf32>
    %309 = arith.cmpf oge, %307, %308 : vector<16x64xf32>
    %cst_205 = arith.constant 2.000000e-01 : f32
    %310 = vector.broadcast %cst_205 : f32 to vector<16x64xf32>
    %311 = arith.mulf %310, %307 : vector<16x64xf32>
    %312 = arith.select %309, %307, %311 : vector<16x64xi1>, vector<16x64xf32>
    %313 = tpu.iota {dimensions = array<i32: 0>} : vector<64x16xi32>
    %314 = tpu.iota {dimensions = array<i32: 1>} : vector<64x16xi32>
    %c3_i32_206 = arith.constant 3 : i32
    %315 = vector.broadcast %c3_i32_206 : i32 to vector<64x16xi32>
    %316 = arith.shrsi %313, %315 : vector<64x16xi32>
    %c7_i32_207 = arith.constant 7 : i32
    %317 = vector.broadcast %c7_i32_207 : i32 to vector<64x16xi32>
    %318 = arith.andi %313, %317 : vector<64x16xi32>
    %c2_i32 = arith.constant 2 : i32
    %319 = vector.broadcast %c2_i32 : i32 to vector<64x16xi32>
    %320 = arith.shrsi %314, %319 : vector<64x16xi32>
    %c3_i32_208 = arith.constant 3 : i32
    %321 = vector.broadcast %c3_i32_208 : i32 to vector<64x16xi32>
    %322 = arith.andi %314, %321 : vector<64x16xi32>
    %c1_i32_209 = arith.constant 1 : i32
    %323 = vector.broadcast %c1_i32_209 : i32 to vector<64x16xi32>
    %324 = arith.shrsi %316, %323 : vector<64x16xi32>
    %325 = arith.cmpi eq, %324, %320 : vector<64x16xi32>
    %c1_i32_210 = arith.constant 1 : i32
    %326 = vector.broadcast %c1_i32_210 : i32 to vector<64x16xi32>
    %327 = arith.shrsi %318, %326 : vector<64x16xi32>
    %328 = arith.cmpi eq, %327, %322 : vector<64x16xi32>
    %329 = arith.andi %325, %328 : vector<64x16xi1>
    %cst_211 = arith.constant 2.500000e-01 : f32
    %cst_212 = arith.constant 0.000000e+00 : f32
    %330 = vector.broadcast %cst_211 : f32 to vector<64x16xf32>
    %331 = vector.broadcast %cst_212 : f32 to vector<64x16xf32>
    %332 = arith.select %329, %330, %331 : vector<64x16xi1>, vector<64x16xf32>
    %333 = arith.sitofp %320 : vector<64x16xi32> to vector<64x16xf32>
    %cst_213 = arith.constant 2.33333325 : f32
    %334 = vector.broadcast %cst_213 : f32 to vector<64x16xf32>
    %335 = arith.mulf %333, %334 : vector<64x16xf32>
    %336 = arith.sitofp %322 : vector<64x16xi32> to vector<64x16xf32>
    %cst_214 = arith.constant 2.33333325 : f32
    %337 = vector.broadcast %cst_214 : f32 to vector<64x16xf32>
    %338 = arith.mulf %336, %337 : vector<64x16xf32>
    %339 = arith.sitofp %316 : vector<64x16xi32> to vector<64x16xf32>
    %340 = arith.subf %339, %335 : vector<64x16xf32>
    %341 = math.absf %340 : vector<64x16xf32>
    %cst_215 = arith.constant 1.000000e+00 : f32
    %342 = vector.broadcast %cst_215 : f32 to vector<64x16xf32>
    %343 = arith.subf %342, %341 : vector<64x16xf32>
    %cst_216 = arith.constant 0.000000e+00 : f32
    %344 = vector.broadcast %cst_216 : f32 to vector<64x16xf32>
    %345 = arith.maximumf %344, %343 : vector<64x16xf32>
    %346 = arith.sitofp %318 : vector<64x16xi32> to vector<64x16xf32>
    %347 = arith.subf %346, %338 : vector<64x16xf32>
    %348 = math.absf %347 : vector<64x16xf32>
    %cst_217 = arith.constant 1.000000e+00 : f32
    %349 = vector.broadcast %cst_217 : f32 to vector<64x16xf32>
    %350 = arith.subf %349, %348 : vector<64x16xf32>
    %cst_218 = arith.constant 0.000000e+00 : f32
    %351 = vector.broadcast %cst_218 : f32 to vector<64x16xf32>
    %352 = arith.maximumf %351, %350 : vector<64x16xf32>
    %353 = arith.mulf %345, %352 : vector<64x16xf32>
    %cst_219 = arith.constant dense<0.000000e+00> : vector<16x16xf32>
    %354 = tpu.matmul %312, %332, %cst_219 {dimension_numbers = #tpu.dot_dimension_numbers<[1], [0], [0], [1], [0, 0, 1, 1], [], []>} : vector<16x64xf32>, vector<64x16xf32>, vector<16x16xf32> -> vector<16x16xf32>
    %cst_220 = arith.constant dense<0.000000e+00> : vector<16x16xf32>
    %355 = tpu.matmul %312, %353, %cst_220 {dimension_numbers = #tpu.dot_dimension_numbers<[1], [0], [0], [1], [0, 0, 1, 1], [], []>} : vector<16x64xf32>, vector<64x16xf32>, vector<16x16xf32> -> vector<16x16xf32>
    %356 = arith.truncf %354 : vector<16x16xf32> to vector<16x16xbf16>
    %cst_221 = arith.constant 0.000000e+00 : bf16
    %357 = vector.broadcast %cst_221 : bf16 to vector<16x512xbf16>
    %c0_222 = arith.constant 0 : index
    %c0_223 = arith.constant 0 : index
    %358 = vector.load %arg15[%c0_222, %c0_223] : memref<16x512xbf16, #tpu.memory_space<vmem>>, vector<16x512xbf16>
    tpu.vector_store %arg15[%c0_222, %c0_223], %357 {strides = array<i32>} : memref<16x512xbf16, #tpu.memory_space<vmem>>, vector<16x512xbf16>,
    %c0_224 = arith.constant 0 : index
    %c128_225 = arith.constant 128 : index
    %359 = vector.load %arg15[%c0_224, %c128_225] : memref<16x512xbf16, #tpu.memory_space<vmem>>, vector<16x16xbf16>
    tpu.vector_store %arg15[%c0_224, %c128_225], %356 {strides = array<i32>} : memref<16x512xbf16, #tpu.memory_space<vmem>>, vector<16x16xbf16>,
    %360 = tpu.iota {dimensions = array<i32: 1>} : vector<1x16xi32>
    %c3_i32_226 = arith.constant 3 : i32
    %361 = vector.broadcast %c3_i32_226 : i32 to vector<1x16xi32>
    %362 = arith.andi %360, %361 : vector<1x16xi32>
    %c1_i32_227 = arith.constant 1 : i32
    %363 = vector.broadcast %c1_i32_227 : i32 to vector<1x16xi32>
    %364 = arith.cmpi sge, %362, %363 : vector<1x16xi32>
    %c2_i32_228 = arith.constant 2 : i32
    %365 = vector.broadcast %c2_i32_228 : i32 to vector<1x16xi32>
    %366 = arith.cmpi sle, %362, %365 : vector<1x16xi32>
    %cst_229 = arith.constant 0.000000e+00 : f32
    %367 = vector.broadcast %cst_229 : f32 to vector<16x16xf32>
    %c0_230 = arith.constant 0 : index
    %c123 = arith.constant 123 : index
    %368 = vector.load %arg15[%c0_230, %c123] : memref<16x512xbf16, #tpu.memory_space<vmem>>, vector<16x16xbf16>
    %cst_231 = arith.constant 0.000000e+00 : bf16
    %369 = vector.broadcast %cst_231 : bf16 to vector<16x16xbf16>
    %370 = vector.shape_cast %364 : vector<1x16xi1> to vector<1x16xi1>
    %371 = vector.broadcast %370 : vector<1x16xi1> to vector<16x16xi1>
    %372 = arith.select %371, %368, %369 : vector<16x16xi1>, vector<16x16xbf16>
    %c0_232 = arith.constant 0 : index
    %c0_233 = arith.constant 0 : index
    %c0_234 = arith.constant 0 : index
    %373 = vector.load %arg8[%c0_232, %c0_233, %c0_234] : memref<9x16x16xbf16, #tpu.memory_space<vmem>>, vector<1x16x16xbf16>
    %374 = vector.shape_cast %373 : vector<1x16x16xbf16> to vector<16x16xbf16>
    %cst_235 = arith.constant dense<0.000000e+00> : vector<16x16xf32>
    %375 = tpu.matmul %374, %372, %cst_235 {dimension_numbers = #tpu.dot_dimension_numbers<[1], [0], [0], [1], [0, 0, 1, 1], [], []>} : vector<16x16xbf16>, vector<16x16xbf16>, vector<16x16xf32> -> vector<16x16xf32>
    %376 = arith.addf %367, %375 : vector<16x16xf32>
    %c0_236 = arith.constant 0 : index
    %c124 = arith.constant 124 : index
    %377 = vector.load %arg15[%c0_236, %c124] : memref<16x512xbf16, #tpu.memory_space<vmem>>, vector<16x16xbf16>
    %c1_237 = arith.constant 1 : index
    %c0_238 = arith.constant 0 : index
    %c0_239 = arith.constant 0 : index
    %378 = vector.load %arg8[%c1_237, %c0_238, %c0_239] : memref<9x16x16xbf16, #tpu.memory_space<vmem>>, vector<1x16x16xbf16>
    %379 = vector.shape_cast %378 : vector<1x16x16xbf16> to vector<16x16xbf16>
    %cst_240 = arith.constant dense<0.000000e+00> : vector<16x16xf32>
    %380 = tpu.matmul %379, %377, %cst_240 {dimension_numbers = #tpu.dot_dimension_numbers<[1], [0], [0], [1], [0, 0, 1, 1], [], []>} : vector<16x16xbf16>, vector<16x16xbf16>, vector<16x16xf32> -> vector<16x16xf32>
    %381 = arith.addf %376, %380 : vector<16x16xf32>
    %c0_241 = arith.constant 0 : index
    %c125 = arith.constant 125 : index
    %382 = vector.load %arg15[%c0_241, %c125] : memref<16x512xbf16, #tpu.memory_space<vmem>>, vector<16x16xbf16>
    %cst_242 = arith.constant 0.000000e+00 : bf16
    %383 = vector.broadcast %cst_242 : bf16 to vector<16x16xbf16>
    %384 = vector.shape_cast %366 : vector<1x16xi1> to vector<1x16xi1>
    %385 = vector.broadcast %384 : vector<1x16xi1> to vector<16x16xi1>
    %386 = arith.select %385, %382, %383 : vector<16x16xi1>, vector<16x16xbf16>
    %c2_243 = arith.constant 2 : index
    %c0_244 = arith.constant 0 : index
    %c0_245 = arith.constant 0 : index
    %387 = vector.load %arg8[%c2_243, %c0_244, %c0_245] : memref<9x16x16xbf16, #tpu.memory_space<vmem>>, vector<1x16x16xbf16>
    %388 = vector.shape_cast %387 : vector<1x16x16xbf16> to vector<16x16xbf16>
    %cst_246 = arith.constant dense<0.000000e+00> : vector<16x16xf32>
    %389 = tpu.matmul %388, %386, %cst_246 {dimension_numbers = #tpu.dot_dimension_numbers<[1], [0], [0], [1], [0, 0, 1, 1], [], []>} : vector<16x16xbf16>, vector<16x16xbf16>, vector<16x16xf32> -> vector<16x16xf32>
    %390 = arith.addf %381, %389 : vector<16x16xf32>
    %c0_247 = arith.constant 0 : index
    %c127_248 = arith.constant 127 : index
    %391 = vector.load %arg15[%c0_247, %c127_248] : memref<16x512xbf16, #tpu.memory_space<vmem>>, vector<16x16xbf16>
    %cst_249 = arith.constant 0.000000e+00 : bf16
    %392 = vector.broadcast %cst_249 : bf16 to vector<16x16xbf16>
    %393 = vector.shape_cast %364 : vector<1x16xi1> to vector<1x16xi1>
    %394 = vector.broadcast %393 : vector<1x16xi1> to vector<16x16xi1>
    %395 = arith.select %394, %391, %392 : vector<16x16xi1>, vector<16x16xbf16>
    %c3_250 = arith.constant 3 : index
    %c0_251 = arith.constant 0 : index
    %c0_252 = arith.constant 0 : index
    %396 = vector.load %arg8[%c3_250, %c0_251, %c0_252] : memref<9x16x16xbf16, #tpu.memory_space<vmem>>, vector<1x16x16xbf16>
    %397 = vector.shape_cast %396 : vector<1x16x16xbf16> to vector<16x16xbf16>
    %cst_253 = arith.constant dense<0.000000e+00> : vector<16x16xf32>
    %398 = tpu.matmul %397, %395, %cst_253 {dimension_numbers = #tpu.dot_dimension_numbers<[1], [0], [0], [1], [0, 0, 1, 1], [], []>} : vector<16x16xbf16>, vector<16x16xbf16>, vector<16x16xf32> -> vector<16x16xf32>
    %399 = arith.addf %390, %398 : vector<16x16xf32>
    %c0_254 = arith.constant 0 : index
    %c128_255 = arith.constant 128 : index
    %400 = vector.load %arg15[%c0_254, %c128_255] : memref<16x512xbf16, #tpu.memory_space<vmem>>, vector<16x16xbf16>
    %c4_256 = arith.constant 4 : index
    %c0_257 = arith.constant 0 : index
    %c0_258 = arith.constant 0 : index
    %401 = vector.load %arg8[%c4_256, %c0_257, %c0_258] : memref<9x16x16xbf16, #tpu.memory_space<vmem>>, vector<1x16x16xbf16>
    %402 = vector.shape_cast %401 : vector<1x16x16xbf16> to vector<16x16xbf16>
    %cst_259 = arith.constant dense<0.000000e+00> : vector<16x16xf32>
    %403 = tpu.matmul %402, %400, %cst_259 {dimension_numbers = #tpu.dot_dimension_numbers<[1], [0], [0], [1], [0, 0, 1, 1], [], []>} : vector<16x16xbf16>, vector<16x16xbf16>, vector<16x16xf32> -> vector<16x16xf32>
    %404 = arith.addf %399, %403 : vector<16x16xf32>
    %c0_260 = arith.constant 0 : index
    %c129_261 = arith.constant 129 : index
    %405 = vector.load %arg15[%c0_260, %c129_261] : memref<16x512xbf16, #tpu.memory_space<vmem>>, vector<16x16xbf16>
    %cst_262 = arith.constant 0.000000e+00 : bf16
    %406 = vector.broadcast %cst_262 : bf16 to vector<16x16xbf16>
    %407 = vector.shape_cast %366 : vector<1x16xi1> to vector<1x16xi1>
    %408 = vector.broadcast %407 : vector<1x16xi1> to vector<16x16xi1>
    %409 = arith.select %408, %405, %406 : vector<16x16xi1>, vector<16x16xbf16>
    %c5_263 = arith.constant 5 : index
    %c0_264 = arith.constant 0 : index
    %c0_265 = arith.constant 0 : index
    %410 = vector.load %arg8[%c5_263, %c0_264, %c0_265] : memref<9x16x16xbf16, #tpu.memory_space<vmem>>, vector<1x16x16xbf16>
    %411 = vector.shape_cast %410 : vector<1x16x16xbf16> to vector<16x16xbf16>
    %cst_266 = arith.constant dense<0.000000e+00> : vector<16x16xf32>
    %412 = tpu.matmul %411, %409, %cst_266 {dimension_numbers = #tpu.dot_dimension_numbers<[1], [0], [0], [1], [0, 0, 1, 1], [], []>} : vector<16x16xbf16>, vector<16x16xbf16>, vector<16x16xf32> -> vector<16x16xf32>
    %413 = arith.addf %404, %412 : vector<16x16xf32>
    %c0_267 = arith.constant 0 : index
    %c131 = arith.constant 131 : index
    %414 = vector.load %arg15[%c0_267, %c131] : memref<16x512xbf16, #tpu.memory_space<vmem>>, vector<16x16xbf16>
    %cst_268 = arith.constant 0.000000e+00 : bf16
    %415 = vector.broadcast %cst_268 : bf16 to vector<16x16xbf16>
    %416 = vector.shape_cast %364 : vector<1x16xi1> to vector<1x16xi1>
    %417 = vector.broadcast %416 : vector<1x16xi1> to vector<16x16xi1>
    %418 = arith.select %417, %414, %415 : vector<16x16xi1>, vector<16x16xbf16>
    %c6_269 = arith.constant 6 : index
    %c0_270 = arith.constant 0 : index
    %c0_271 = arith.constant 0 : index
    %419 = vector.load %arg8[%c6_269, %c0_270, %c0_271] : memref<9x16x16xbf16, #tpu.memory_space<vmem>>, vector<1x16x16xbf16>
    %420 = vector.shape_cast %419 : vector<1x16x16xbf16> to vector<16x16xbf16>
    %cst_272 = arith.constant dense<0.000000e+00> : vector<16x16xf32>
    %421 = tpu.matmul %420, %418, %cst_272 {dimension_numbers = #tpu.dot_dimension_numbers<[1], [0], [0], [1], [0, 0, 1, 1], [], []>} : vector<16x16xbf16>, vector<16x16xbf16>, vector<16x16xf32> -> vector<16x16xf32>
    %422 = arith.addf %413, %421 : vector<16x16xf32>
    %c0_273 = arith.constant 0 : index
    %c132 = arith.constant 132 : index
    %423 = vector.load %arg15[%c0_273, %c132] : memref<16x512xbf16, #tpu.memory_space<vmem>>, vector<16x16xbf16>
    %c7_274 = arith.constant 7 : index
    %c0_275 = arith.constant 0 : index
    %c0_276 = arith.constant 0 : index
    %424 = vector.load %arg8[%c7_274, %c0_275, %c0_276] : memref<9x16x16xbf16, #tpu.memory_space<vmem>>, vector<1x16x16xbf16>
    %425 = vector.shape_cast %424 : vector<1x16x16xbf16> to vector<16x16xbf16>
    %cst_277 = arith.constant dense<0.000000e+00> : vector<16x16xf32>
    %426 = tpu.matmul %425, %423, %cst_277 {dimension_numbers = #tpu.dot_dimension_numbers<[1], [0], [0], [1], [0, 0, 1, 1], [], []>} : vector<16x16xbf16>, vector<16x16xbf16>, vector<16x16xf32> -> vector<16x16xf32>
    %427 = arith.addf %422, %426 : vector<16x16xf32>
    %c0_278 = arith.constant 0 : index
    %c133 = arith.constant 133 : index
    %428 = vector.load %arg15[%c0_278, %c133] : memref<16x512xbf16, #tpu.memory_space<vmem>>, vector<16x16xbf16>
    %cst_279 = arith.constant 0.000000e+00 : bf16
    %429 = vector.broadcast %cst_279 : bf16 to vector<16x16xbf16>
    %430 = vector.shape_cast %366 : vector<1x16xi1> to vector<1x16xi1>
    %431 = vector.broadcast %430 : vector<1x16xi1> to vector<16x16xi1>
    %432 = arith.select %431, %428, %429 : vector<16x16xi1>, vector<16x16xbf16>
    %c8_280 = arith.constant 8 : index
    %c0_281 = arith.constant 0 : index
    %c0_282 = arith.constant 0 : index
    %433 = vector.load %arg8[%c8_280, %c0_281, %c0_282] : memref<9x16x16xbf16, #tpu.memory_space<vmem>>, vector<1x16x16xbf16>
    %434 = vector.shape_cast %433 : vector<1x16x16xbf16> to vector<16x16xbf16>
    %cst_283 = arith.constant dense<0.000000e+00> : vector<16x16xf32>
    %435 = tpu.matmul %434, %432, %cst_283 {dimension_numbers = #tpu.dot_dimension_numbers<[1], [0], [0], [1], [0, 0, 1, 1], [], []>} : vector<16x16xbf16>, vector<16x16xbf16>, vector<16x16xf32> -> vector<16x16xf32>
    %436 = arith.addf %427, %435 : vector<16x16xf32>
    %c0_284 = arith.constant 0 : index
    %c0_285 = arith.constant 0 : index
    %437 = vector.load %arg9[%c0_284, %c0_285] : memref<16x1xf32, #tpu.memory_space<vmem>>, vector<16x1xf32>
    %438 = vector.broadcast %437 : vector<16x1xf32> to vector<16x16xf32>
    %439 = arith.addf %436, %438 : vector<16x16xf32>
    %cst_286 = arith.constant 0.000000e+00 : f32
    %440 = vector.broadcast %cst_286 : f32 to vector<16x16xf32>
    %441 = arith.cmpf oge, %439, %440 : vector<16x16xf32>
    %cst_287 = arith.constant 2.000000e-01 : f32
    %442 = vector.broadcast %cst_287 : f32 to vector<16x16xf32>
    %443 = arith.mulf %442, %439 : vector<16x16xf32>
    %444 = arith.select %441, %439, %443 : vector<16x16xi1>, vector<16x16xf32>
    %445 = arith.addf %444, %355 : vector<16x16xf32>
    %446 = arith.truncf %445 : vector<16x16xf32> to vector<16x16xbf16>
    %cst_288 = arith.constant 0.000000e+00 : bf16
    %447 = vector.broadcast %cst_288 : bf16 to vector<16x512xbf16>
    %c0_289 = arith.constant 0 : index
    %c0_290 = arith.constant 0 : index
    %448 = vector.load %arg15[%c0_289, %c0_290] : memref<16x512xbf16, #tpu.memory_space<vmem>>, vector<16x512xbf16>
    tpu.vector_store %arg15[%c0_289, %c0_290], %447 {strides = array<i32>} : memref<16x512xbf16, #tpu.memory_space<vmem>>, vector<16x512xbf16>,
    %c0_291 = arith.constant 0 : index
    %c128_292 = arith.constant 128 : index
    %449 = vector.load %arg15[%c0_291, %c128_292] : memref<16x512xbf16, #tpu.memory_space<vmem>>, vector<16x16xbf16>
    tpu.vector_store %arg15[%c0_291, %c128_292], %446 {strides = array<i32>} : memref<16x512xbf16, #tpu.memory_space<vmem>>, vector<16x16xbf16>,
    %450 = tpu.iota {dimensions = array<i32: 1>} : vector<1x16xi32>
    %c3_i32_293 = arith.constant 3 : i32
    %451 = vector.broadcast %c3_i32_293 : i32 to vector<1x16xi32>
    %452 = arith.andi %450, %451 : vector<1x16xi32>
    %c1_i32_294 = arith.constant 1 : i32
    %453 = vector.broadcast %c1_i32_294 : i32 to vector<1x16xi32>
    %454 = arith.cmpi sge, %452, %453 : vector<1x16xi32>
    %c2_i32_295 = arith.constant 2 : i32
    %455 = vector.broadcast %c2_i32_295 : i32 to vector<1x16xi32>
    %456 = arith.cmpi sle, %452, %455 : vector<1x16xi32>
    %cst_296 = arith.constant 0.000000e+00 : f32
    %457 = vector.broadcast %cst_296 : f32 to vector<16x16xf32>
    %c0_297 = arith.constant 0 : index
    %c123_298 = arith.constant 123 : index
    %458 = vector.load %arg15[%c0_297, %c123_298] : memref<16x512xbf16, #tpu.memory_space<vmem>>, vector<16x16xbf16>
    %cst_299 = arith.constant 0.000000e+00 : bf16
    %459 = vector.broadcast %cst_299 : bf16 to vector<16x16xbf16>
    %460 = vector.shape_cast %454 : vector<1x16xi1> to vector<1x16xi1>
    %461 = vector.broadcast %460 : vector<1x16xi1> to vector<16x16xi1>
    %462 = arith.select %461, %458, %459 : vector<16x16xi1>, vector<16x16xbf16>
    %c0_300 = arith.constant 0 : index
    %c0_301 = arith.constant 0 : index
    %c0_302 = arith.constant 0 : index
    %463 = vector.load %arg10[%c0_300, %c0_301, %c0_302] : memref<9x16x16xbf16, #tpu.memory_space<vmem>>, vector<1x16x16xbf16>
    %464 = vector.shape_cast %463 : vector<1x16x16xbf16> to vector<16x16xbf16>
    %cst_303 = arith.constant dense<0.000000e+00> : vector<16x16xf32>
    %465 = tpu.matmul %464, %462, %cst_303 {dimension_numbers = #tpu.dot_dimension_numbers<[1], [0], [0], [1], [0, 0, 1, 1], [], []>} : vector<16x16xbf16>, vector<16x16xbf16>, vector<16x16xf32> -> vector<16x16xf32>
    %466 = arith.addf %457, %465 : vector<16x16xf32>
    %c0_304 = arith.constant 0 : index
    %c124_305 = arith.constant 124 : index
    %467 = vector.load %arg15[%c0_304, %c124_305] : memref<16x512xbf16, #tpu.memory_space<vmem>>, vector<16x16xbf16>
    %c1_306 = arith.constant 1 : index
    %c0_307 = arith.constant 0 : index
    %c0_308 = arith.constant 0 : index
    %468 = vector.load %arg10[%c1_306, %c0_307, %c0_308] : memref<9x16x16xbf16, #tpu.memory_space<vmem>>, vector<1x16x16xbf16>
    %469 = vector.shape_cast %468 : vector<1x16x16xbf16> to vector<16x16xbf16>
    %cst_309 = arith.constant dense<0.000000e+00> : vector<16x16xf32>
    %470 = tpu.matmul %469, %467, %cst_309 {dimension_numbers = #tpu.dot_dimension_numbers<[1], [0], [0], [1], [0, 0, 1, 1], [], []>} : vector<16x16xbf16>, vector<16x16xbf16>, vector<16x16xf32> -> vector<16x16xf32>
    %471 = arith.addf %466, %470 : vector<16x16xf32>
    %c0_310 = arith.constant 0 : index
    %c125_311 = arith.constant 125 : index
    %472 = vector.load %arg15[%c0_310, %c125_311] : memref<16x512xbf16, #tpu.memory_space<vmem>>, vector<16x16xbf16>
    %cst_312 = arith.constant 0.000000e+00 : bf16
    %473 = vector.broadcast %cst_312 : bf16 to vector<16x16xbf16>
    %474 = vector.shape_cast %456 : vector<1x16xi1> to vector<1x16xi1>
    %475 = vector.broadcast %474 : vector<1x16xi1> to vector<16x16xi1>
    %476 = arith.select %475, %472, %473 : vector<16x16xi1>, vector<16x16xbf16>
    %c2_313 = arith.constant 2 : index
    %c0_314 = arith.constant 0 : index
    %c0_315 = arith.constant 0 : index
    %477 = vector.load %arg10[%c2_313, %c0_314, %c0_315] : memref<9x16x16xbf16, #tpu.memory_space<vmem>>, vector<1x16x16xbf16>
    %478 = vector.shape_cast %477 : vector<1x16x16xbf16> to vector<16x16xbf16>
    %cst_316 = arith.constant dense<0.000000e+00> : vector<16x16xf32>
    %479 = tpu.matmul %478, %476, %cst_316 {dimension_numbers = #tpu.dot_dimension_numbers<[1], [0], [0], [1], [0, 0, 1, 1], [], []>} : vector<16x16xbf16>, vector<16x16xbf16>, vector<16x16xf32> -> vector<16x16xf32>
    %480 = arith.addf %471, %479 : vector<16x16xf32>
    %c0_317 = arith.constant 0 : index
    %c127_318 = arith.constant 127 : index
    %481 = vector.load %arg15[%c0_317, %c127_318] : memref<16x512xbf16, #tpu.memory_space<vmem>>, vector<16x16xbf16>
    %cst_319 = arith.constant 0.000000e+00 : bf16
    %482 = vector.broadcast %cst_319 : bf16 to vector<16x16xbf16>
    %483 = vector.shape_cast %454 : vector<1x16xi1> to vector<1x16xi1>
    %484 = vector.broadcast %483 : vector<1x16xi1> to vector<16x16xi1>
    %485 = arith.select %484, %481, %482 : vector<16x16xi1>, vector<16x16xbf16>
    %c3_320 = arith.constant 3 : index
    %c0_321 = arith.constant 0 : index
    %c0_322 = arith.constant 0 : index
    %486 = vector.load %arg10[%c3_320, %c0_321, %c0_322] : memref<9x16x16xbf16, #tpu.memory_space<vmem>>, vector<1x16x16xbf16>
    %487 = vector.shape_cast %486 : vector<1x16x16xbf16> to vector<16x16xbf16>
    %cst_323 = arith.constant dense<0.000000e+00> : vector<16x16xf32>
    %488 = tpu.matmul %487, %485, %cst_323 {dimension_numbers = #tpu.dot_dimension_numbers<[1], [0], [0], [1], [0, 0, 1, 1], [], []>} : vector<16x16xbf16>, vector<16x16xbf16>, vector<16x16xf32> -> vector<16x16xf32>
    %489 = arith.addf %480, %488 : vector<16x16xf32>
    %c0_324 = arith.constant 0 : index
    %c128_325 = arith.constant 128 : index
    %490 = vector.load %arg15[%c0_324, %c128_325] : memref<16x512xbf16, #tpu.memory_space<vmem>>, vector<16x16xbf16>
    %c4_326 = arith.constant 4 : index
    %c0_327 = arith.constant 0 : index
    %c0_328 = arith.constant 0 : index
    %491 = vector.load %arg10[%c4_326, %c0_327, %c0_328] : memref<9x16x16xbf16, #tpu.memory_space<vmem>>, vector<1x16x16xbf16>
    %492 = vector.shape_cast %491 : vector<1x16x16xbf16> to vector<16x16xbf16>
    %cst_329 = arith.constant dense<0.000000e+00> : vector<16x16xf32>
    %493 = tpu.matmul %492, %490, %cst_329 {dimension_numbers = #tpu.dot_dimension_numbers<[1], [0], [0], [1], [0, 0, 1, 1], [], []>} : vector<16x16xbf16>, vector<16x16xbf16>, vector<16x16xf32> -> vector<16x16xf32>
    %494 = arith.addf %489, %493 : vector<16x16xf32>
    %c0_330 = arith.constant 0 : index
    %c129_331 = arith.constant 129 : index
    %495 = vector.load %arg15[%c0_330, %c129_331] : memref<16x512xbf16, #tpu.memory_space<vmem>>, vector<16x16xbf16>
    %cst_332 = arith.constant 0.000000e+00 : bf16
    %496 = vector.broadcast %cst_332 : bf16 to vector<16x16xbf16>
    %497 = vector.shape_cast %456 : vector<1x16xi1> to vector<1x16xi1>
    %498 = vector.broadcast %497 : vector<1x16xi1> to vector<16x16xi1>
    %499 = arith.select %498, %495, %496 : vector<16x16xi1>, vector<16x16xbf16>
    %c5_333 = arith.constant 5 : index
    %c0_334 = arith.constant 0 : index
    %c0_335 = arith.constant 0 : index
    %500 = vector.load %arg10[%c5_333, %c0_334, %c0_335] : memref<9x16x16xbf16, #tpu.memory_space<vmem>>, vector<1x16x16xbf16>
    %501 = vector.shape_cast %500 : vector<1x16x16xbf16> to vector<16x16xbf16>
    %cst_336 = arith.constant dense<0.000000e+00> : vector<16x16xf32>
    %502 = tpu.matmul %501, %499, %cst_336 {dimension_numbers = #tpu.dot_dimension_numbers<[1], [0], [0], [1], [0, 0, 1, 1], [], []>} : vector<16x16xbf16>, vector<16x16xbf16>, vector<16x16xf32> -> vector<16x16xf32>
    %503 = arith.addf %494, %502 : vector<16x16xf32>
    %c0_337 = arith.constant 0 : index
    %c131_338 = arith.constant 131 : index
    %504 = vector.load %arg15[%c0_337, %c131_338] : memref<16x512xbf16, #tpu.memory_space<vmem>>, vector<16x16xbf16>
    %cst_339 = arith.constant 0.000000e+00 : bf16
    %505 = vector.broadcast %cst_339 : bf16 to vector<16x16xbf16>
    %506 = vector.shape_cast %454 : vector<1x16xi1> to vector<1x16xi1>
    %507 = vector.broadcast %506 : vector<1x16xi1> to vector<16x16xi1>
    %508 = arith.select %507, %504, %505 : vector<16x16xi1>, vector<16x16xbf16>
    %c6_340 = arith.constant 6 : index
    %c0_341 = arith.constant 0 : index
    %c0_342 = arith.constant 0 : index
    %509 = vector.load %arg10[%c6_340, %c0_341, %c0_342] : memref<9x16x16xbf16, #tpu.memory_space<vmem>>, vector<1x16x16xbf16>
    %510 = vector.shape_cast %509 : vector<1x16x16xbf16> to vector<16x16xbf16>
    %cst_343 = arith.constant dense<0.000000e+00> : vector<16x16xf32>
    %511 = tpu.matmul %510, %508, %cst_343 {dimension_numbers = #tpu.dot_dimension_numbers<[1], [0], [0], [1], [0, 0, 1, 1], [], []>} : vector<16x16xbf16>, vector<16x16xbf16>, vector<16x16xf32> -> vector<16x16xf32>
    %512 = arith.addf %503, %511 : vector<16x16xf32>
    %c0_344 = arith.constant 0 : index
    %c132_345 = arith.constant 132 : index
    %513 = vector.load %arg15[%c0_344, %c132_345] : memref<16x512xbf16, #tpu.memory_space<vmem>>, vector<16x16xbf16>
    %c7_346 = arith.constant 7 : index
    %c0_347 = arith.constant 0 : index
    %c0_348 = arith.constant 0 : index
    %514 = vector.load %arg10[%c7_346, %c0_347, %c0_348] : memref<9x16x16xbf16, #tpu.memory_space<vmem>>, vector<1x16x16xbf16>
    %515 = vector.shape_cast %514 : vector<1x16x16xbf16> to vector<16x16xbf16>
    %cst_349 = arith.constant dense<0.000000e+00> : vector<16x16xf32>
    %516 = tpu.matmul %515, %513, %cst_349 {dimension_numbers = #tpu.dot_dimension_numbers<[1], [0], [0], [1], [0, 0, 1, 1], [], []>} : vector<16x16xbf16>, vector<16x16xbf16>, vector<16x16xf32> -> vector<16x16xf32>
    %517 = arith.addf %512, %516 : vector<16x16xf32>
    %c0_350 = arith.constant 0 : index
    %c133_351 = arith.constant 133 : index
    %518 = vector.load %arg15[%c0_350, %c133_351] : memref<16x512xbf16, #tpu.memory_space<vmem>>, vector<16x16xbf16>
    %cst_352 = arith.constant 0.000000e+00 : bf16
    %519 = vector.broadcast %cst_352 : bf16 to vector<16x16xbf16>
    %520 = vector.shape_cast %456 : vector<1x16xi1> to vector<1x16xi1>
    %521 = vector.broadcast %520 : vector<1x16xi1> to vector<16x16xi1>
    %522 = arith.select %521, %518, %519 : vector<16x16xi1>, vector<16x16xbf16>
    %c8_353 = arith.constant 8 : index
    %c0_354 = arith.constant 0 : index
    %c0_355 = arith.constant 0 : index
    %523 = vector.load %arg10[%c8_353, %c0_354, %c0_355] : memref<9x16x16xbf16, #tpu.memory_space<vmem>>, vector<1x16x16xbf16>
    %524 = vector.shape_cast %523 : vector<1x16x16xbf16> to vector<16x16xbf16>
    %cst_356 = arith.constant dense<0.000000e+00> : vector<16x16xf32>
    %525 = tpu.matmul %524, %522, %cst_356 {dimension_numbers = #tpu.dot_dimension_numbers<[1], [0], [0], [1], [0, 0, 1, 1], [], []>} : vector<16x16xbf16>, vector<16x16xbf16>, vector<16x16xf32> -> vector<16x16xf32>
    %526 = arith.addf %517, %525 : vector<16x16xf32>
    %c0_357 = arith.constant 0 : index
    %c0_358 = arith.constant 0 : index
    %527 = vector.load %arg11[%c0_357, %c0_358] : memref<16x1xf32, #tpu.memory_space<vmem>>, vector<16x1xf32>
    %528 = vector.broadcast %527 : vector<16x1xf32> to vector<16x16xf32>
    %529 = arith.addf %526, %528 : vector<16x16xf32>
    %cst_359 = arith.constant 0.000000e+00 : f32
    %530 = vector.broadcast %cst_359 : f32 to vector<16x16xf32>
    %531 = arith.cmpf oge, %529, %530 : vector<16x16xf32>
    %cst_360 = arith.constant 2.000000e-01 : f32
    %532 = vector.broadcast %cst_360 : f32 to vector<16x16xf32>
    %533 = arith.mulf %532, %529 : vector<16x16xf32>
    %534 = arith.select %531, %529, %533 : vector<16x16xi1>, vector<16x16xf32>
    %c0_361 = arith.constant 0 : index
    %c0_362 = arith.constant 0 : index
    %535 = vector.load %arg12[%c0_361, %c0_362] : memref<16x1xf32, #tpu.memory_space<vmem>>, vector<16x1xf32>
    %536 = vector.broadcast %535 : vector<16x1xf32> to vector<16x16xf32>
    %537 = arith.mulf %534, %536 : vector<16x16xf32>
    %cst_363 = arith.constant dense<0.000000e+00> : vector<16xf32>
    %538 = vector.multi_reduction <add>, %537, %cst_363 [1] : vector<16x16xf32> to vector<16xf32>
    %539 = vector.shape_cast %538 : vector<16xf32> to vector<16x1xf32>
    %cst_364 = arith.constant dense<0.000000e+00> : vector<1xf32>
    %540 = vector.multi_reduction <add>, %539, %cst_364 [0] : vector<16x1xf32> to vector<1xf32>
    %541 = vector.shape_cast %540 : vector<1xf32> to vector<1x1xf32>
    %cst_365 = arith.constant 6.250000e-02 : f32
    %542 = vector.broadcast %cst_365 : f32 to vector<1x1xf32>
    %543 = arith.mulf %541, %542 : vector<1x1xf32>
    %c0_366 = arith.constant 0 : index
    %c0_367 = arith.constant 0 : index
    %544 = vector.load %arg13[%c0_366, %c0_367] : memref<1x1xf32, #tpu.memory_space<vmem>>, vector<1x1xf32>
    %545 = arith.addf %543, %544 : vector<1x1xf32>
    %c0_368 = arith.constant 0 : index
    %c0_369 = arith.constant 0 : index
    %c0_370 = arith.constant 0 : index
    %546 = vector.load %arg14[%c0_368, %c0_369, %c0_370] : memref<1x1x1xf32, #tpu.memory_space<vmem>>, vector<1x1x1xf32>
    %547 = vector.shape_cast %546 : vector<1x1x1xf32> to vector<1x1xf32>
    %548 = vector.shape_cast %545 : vector<1x1xf32> to vector<1x1x1xf32>
    tpu.vector_store %arg14[%c0_368, %c0_369, %c0_370], %548 {strides = array<i32>} : memref<1x1x1xf32, #tpu.memory_space<vmem>>, vector<1x1x1xf32>,
    return
  }
  func.func @transform_0(%arg0: i32) -> (i32, i32, i32) {
    %c0_i32 = arith.constant 0 : i32
    %c0_i32_0 = arith.constant 0 : i32
    %c0_i32_1 = arith.constant 0 : i32
    return %arg0, %c0_i32, %c0_i32_0 : i32, i32, i32
  }
  func.func @transform_1(%arg0: i32) -> (i32, i32, i32) {
    %c0_i32 = arith.constant 0 : i32
    %c0_i32_0 = arith.constant 0 : i32
    %c0_i32_1 = arith.constant 0 : i32
    %c0_i32_2 = arith.constant 0 : i32
    return %c0_i32, %c0_i32_0, %c0_i32_1 : i32, i32, i32
  }
  func.func @transform_2(%arg0: i32) -> (i32, i32) {
    %c0_i32 = arith.constant 0 : i32
    %c0_i32_0 = arith.constant 0 : i32
    %c0_i32_1 = arith.constant 0 : i32
    return %c0_i32, %c0_i32_0 : i32, i32
  }
  func.func @transform_3(%arg0: i32) -> (i32, i32, i32) {
    %c0_i32 = arith.constant 0 : i32
    %c0_i32_0 = arith.constant 0 : i32
    %c0_i32_1 = arith.constant 0 : i32
    %c0_i32_2 = arith.constant 0 : i32
    return %c0_i32, %c0_i32_0, %c0_i32_1 : i32, i32, i32
  }
  func.func @transform_4(%arg0: i32) -> (i32, i32) {
    %c0_i32 = arith.constant 0 : i32
    %c0_i32_0 = arith.constant 0 : i32
    %c0_i32_1 = arith.constant 0 : i32
    return %c0_i32, %c0_i32_0 : i32, i32
  }
  func.func @transform_5(%arg0: i32) -> (i32, i32, i32) {
    %c0_i32 = arith.constant 0 : i32
    %c0_i32_0 = arith.constant 0 : i32
    %c0_i32_1 = arith.constant 0 : i32
    %c0_i32_2 = arith.constant 0 : i32
    return %c0_i32, %c0_i32_0, %c0_i32_1 : i32, i32, i32
  }
  func.func @transform_6(%arg0: i32) -> (i32, i32) {
    %c0_i32 = arith.constant 0 : i32
    %c0_i32_0 = arith.constant 0 : i32
    %c0_i32_1 = arith.constant 0 : i32
    return %c0_i32, %c0_i32_0 : i32, i32
  }
  func.func @transform_7(%arg0: i32) -> (i32, i32, i32) {
    %c0_i32 = arith.constant 0 : i32
    %c0_i32_0 = arith.constant 0 : i32
    %c0_i32_1 = arith.constant 0 : i32
    %c0_i32_2 = arith.constant 0 : i32
    return %c0_i32, %c0_i32_0, %c0_i32_1 : i32, i32, i32
  }
  func.func @transform_8(%arg0: i32) -> (i32, i32) {
    %c0_i32 = arith.constant 0 : i32
    %c0_i32_0 = arith.constant 0 : i32
    %c0_i32_1 = arith.constant 0 : i32
    return %c0_i32, %c0_i32_0 : i32, i32
  }
  func.func @transform_9(%arg0: i32) -> (i32, i32, i32) {
    %c0_i32 = arith.constant 0 : i32
    %c0_i32_0 = arith.constant 0 : i32
    %c0_i32_1 = arith.constant 0 : i32
    %c0_i32_2 = arith.constant 0 : i32
    return %c0_i32, %c0_i32_0, %c0_i32_1 : i32, i32, i32
  }
  func.func @transform_10(%arg0: i32) -> (i32, i32) {
    %c0_i32 = arith.constant 0 : i32
    %c0_i32_0 = arith.constant 0 : i32
    %c0_i32_1 = arith.constant 0 : i32
    return %c0_i32, %c0_i32_0 : i32, i32
  }
  func.func @transform_11(%arg0: i32) -> (i32, i32) {
    %c0_i32 = arith.constant 0 : i32
    %c0_i32_0 = arith.constant 0 : i32
    %c0_i32_1 = arith.constant 0 : i32
    return %c0_i32, %c0_i32_0 : i32, i32
  }
  func.func @transform_12(%arg0: i32) -> (i32, i32) {
    %c0_i32 = arith.constant 0 : i32
    %c0_i32_0 = arith.constant 0 : i32
    %c0_i32_1 = arith.constant 0 : i32
    return %c0_i32, %c0_i32_0 : i32, i32
  }
  func.func @transform_13(%arg0: i32) -> (i32, i32, i32) {
    %c0_i32 = arith.constant 0 : i32
    %c0_i32_0 = arith.constant 0 : i32
    %c0_i32_1 = arith.constant 0 : i32
    return %arg0, %c0_i32, %c0_i32_0 : i32, i32, i32
  }
}

</mosaic_0001>

<llo_original>
// kernel: _lambda_.1
$region0: #{_lambda_.1}
  #allocation0 [shape = 'u32[]', space=smem, size = 0x4, offset = 0x4, fixed_abs, tag = 'smem constant byte address 0x4 - core index']
  #allocation1 [shape = 'u32[72,128]{1,0:T(1,128)}', space=vmem, size = 0x9000, scoped, tag = 'internal scratch']
  #allocation2 [shape = 'bf16[16,512]{1,0:T(8,128)(2,1)}', space=vmem, size = 0x4000, scoped, tag = 'scratch operand']
  #allocation3 [shape = 'f32[1,1]{1,0:T(1,128)S(1)}', space=vmem, size = 0x200, scoped, tag = 'scoped memory for _lambda_.1']
  %s0 = inlined_call_operand.vmem [shape: f32[2,4,256], index: 0, kind: input, shape index: {}]
  %s1 = inlined_call_operand.hbm [shape: bf16[9,8,4], index: 1, kind: input, shape index: {}]
  %s2 = inlined_call_operand.hbm [shape: f32[8,1], index: 2, kind: input, shape index: {}]
  %s3 = inlined_call_operand.hbm [shape: bf16[9,8,8], index: 3, kind: input, shape index: {}]
  %s4 = inlined_call_operand.hbm [shape: f32[8,1], index: 4, kind: input, shape index: {}]
  %s5 = inlined_call_operand.vmem [shape: bf16[9,16,8], index: 5, kind: input, shape index: {}]
  %s6 = inlined_call_operand.hbm [shape: f32[16,1], index: 6, kind: input, shape index: {}]
  %s7 = inlined_call_operand.vmem [shape: bf16[9,16,16], index: 7, kind: input, shape index: {}]
  %s8 = inlined_call_operand.hbm [shape: f32[16,1], index: 8, kind: input, shape index: {}]
  %s9 = inlined_call_operand.hbm [shape: bf16[9,16,16], index: 9, kind: input, shape index: {}]
  %s10 = inlined_call_operand.hbm [shape: f32[16,1], index: 10, kind: input, shape index: {}]
  %s11 = inlined_call_operand.hbm [shape: f32[16,1], index: 11, kind: input, shape index: {}]
  %s12 = inlined_call_operand.<no memory space> [shape: f32[1,1], index: 12, kind: input, shape index: {}]
  %s13 = inlined_call_operand.vmem [shape: f32[2,1,1], index: 13, kind: output, shape index: {}]
  %s14 = sld [smem:[#allocation0]]
  $region121: #{_lambda_.1} parent=0
    _
  %s16 = ssub.s32 1, %s14
  %s17 = scalar_select 0, %s16, %s14
  %v18 = vstv %s12
  %19 = vst [vmem:[#allocation3] sm:$0x1] %v18
  $region1: #{_lambda_.1} parent=0
    #allocation4 [shape = 'u8[18432]{0}', space=vmem, size = 0x4800, scoped, tag = 'input window, operand 1, single buffered']
    #allocation5 [shape = 's32[2]{0}', space=sflag, size = 0x8, scoped, tag = 'scoped memory for _lambda_.1']
    #allocation6 [shape = 'u8[4096]{0}', space=vmem, size = 0x1000, scoped, tag = 'input window, operand 2, single buffered']
    #allocation7 [shape = 's32[1]{0}', space=sflag, size = 0x4, scoped, tag = 'scoped memory for _lambda_.1']
    #allocation8 [shape = 'u8[18432]{0}', space=vmem, size = 0x4800, scoped, tag = 'input window, operand 3, single buffered']
    #allocation9 [shape = 'u8[4096]{0}', space=vmem, size = 0x1000, scoped, tag = 'input window, operand 4, single buffered']
    #allocation10 [shape = 's32[1]{0}', space=sflag, size = 0x4, scoped, tag = 'scoped memory for _lambda_.1']
    #allocation11 [shape = 'u8[8192]{0}', space=vmem, size = 0x2000, scoped, tag = 'input window, operand 6, single buffered']
    #allocation12 [shape = 'u8[8192]{0}', space=vmem, size = 0x2000, scoped, tag = 'input window, operand 8, single buffered']
    #allocation13 [shape = 's32[1]{0}', space=sflag, size = 0x4, scoped, tag = 'scoped memory for _lambda_.1']
    #allocation14 [shape = 'u8[36864]{0}', space=vmem, size = 0x9000, scoped, tag = 'input window, operand 9, single buffered']
    #allocation15 [shape = 'u8[8192]{0}', space=vmem, size = 0x2000, scoped, tag = 'input window, operand 10, single buffered']
    #allocation16 [shape = 's32[1]{0}', space=sflag, size = 0x4, scoped, tag = 'scoped memory for _lambda_.1']
    #allocation17 [shape = 'u8[8192]{0}', space=vmem, size = 0x2000, scoped, tag = 'input window, operand 11, single buffered']
    %20 = vsyncpa [#allocation5], 0
    %21 = vsyncpa [#allocation7], 0
    %22 = vsyncpa [#allocation10], 0
    %23 = vsyncpa [#allocation13], 0
    %24 = vsyncpa [#allocation16], 0
    loop: start=0, step=1, limit=4
    $region2: #{_lambda_.1} parent=1 // loop_pre_header
      _
    $region3: #{_lambda_.1} parent=1 // loop_header
      %s26 = sphi 0, %s30
      %p27 = scmp.ge.s32.totalorder %s26, 4
      %s36 = sphi 0, %s38
      %s39 = sphi 0, %s36
      %s40 = sphi 0, %s39
      %s56 = sphi 0, %s40
      %s60 = sphi 0, %s60
      %s62 = sphi 0, %s60
      %s63 = sphi 0, %s62
      %s77 = sphi 0, %s63
      %s81 = sphi 0, %s81
      %s83 = sphi 0, %s81
      %s84 = sphi 0, %s83
      %s98 = sphi 0, %s84
      %s102 = sphi 0, %s102
      %s104 = sphi 0, %s102
      %s105 = sphi 0, %s104
      %s119 = sphi 0, %s105
      %s123 = sphi 0, %s123
      %s125 = sphi 0, %s123
      %s126 = sphi 0, %s125
      %s140 = sphi 0, %s126
      %s144 = sphi 0, %s144
      %s146 = sphi 0, %s144
      %s147 = sphi 0, %s146
      %s161 = sphi 0, %s147
      %s165 = sphi 0, %s165
      %s167 = sphi 0, %s165
      %s168 = sphi 0, %s167
      %s182 = sphi 0, %s168
      %s186 = sphi 0, %s186
      %s188 = sphi 0, %s186
      %s189 = sphi 0, %s188
      %s203 = sphi 0, %s189
      %s207 = sphi 0, %s207
      %s209 = sphi 0, %s207
      %s210 = sphi 0, %s209
      %s224 = sphi 0, %s210
      %s228 = sphi 0, %s228
      %s230 = sphi 0, %s228
      %s231 = sphi 0, %s230
      %s245 = sphi 0, %s231
      %s249 = sphi 0, %s249
      %s251 = sphi 0, %s249
      %s252 = sphi 0, %s251
      %s266 = sphi 0, %s252
      %s270 = sphi 0, %s270
      %s272 = sphi 0, %s270
      %s273 = sphi 0, %s272
      %s287 = sphi 0, %s273
      %s291 = sphi 0, %s291
      %s293 = sphi 0, %s291
      %s294 = sphi 0, %s293
      %s308 = sphi 0, %s294
      %s314 = sphi 0, %s316
      %s317 = sphi 0, %s314
      %s318 = sphi 0, %s317
      %s334 = sphi 0, %s318
    $region4: #{_lambda_.1} parent=1 // loop_header_branch
      %29 = sbr.rel (%p27) target = $region8
    $region5: #{_lambda_.1} parent=1 // loop_body
      %s31 = ssub.s32 %s26, 1
      %s32 = ssub.s32 %s26, 2
      %s33 = sadd.s32 %s26, 1
      %s34 = ssub.s32 %s26, %s33
      %p35 = scmp.eq.s32.totalorder %s34, 0
      %s37 = sadd.s32 %s36, 1
      %s38 = scalar_select %p35, %s36, %s37
      %p41 = pneg %p35
      %p42 = scmp.eq.s32.totalorder %s26, 1
      %p43 = por %p41, %p42
      %p44 = scmp.ne.s32.totalorder %s36, %s39
      %p45 = scmp.eq.s32.totalorder %s26, 0
      %p46 = por %p44, %p45
      %p47 = scmp.ne.s32.totalorder %s36, %s39
      %p48 = scmp.eq.s32.totalorder %s31, 1
      %p49 = por %p47, %p48
      %p50 = scmp.ne.s32.totalorder %s39, %s40
      %p51 = scmp.eq.s32.totalorder %s31, 0
      %p52 = por %p50, %p51
      %p53 = scmp.ne.s32.totalorder %s39, %s40
      %p54 = scmp.eq.s32.totalorder %s32, 1
      %p55 = por %p53, %p54
      %p57 = scmp.ne.s32.totalorder %s40, %s56
      %p58 = scmp.eq.s32.totalorder %s32, 0
      %p59 = por %p57, %p58
      %s61 = sadd.s32 %s60, 1
      %p64 = scmp.eq.s32.totalorder %s26, 1
      %p65 = scmp.ne.s32.totalorder %s60, %s62
      %p66 = scmp.eq.s32.totalorder %s26, 0
      %p67 = por %p65, %p66
      %p68 = scmp.ne.s32.totalorder %s60, %s62
      %p69 = scmp.eq.s32.totalorder %s31, 1
      %p70 = por %p68, %p69
      %p71 = scmp.ne.s32.totalorder %s62, %s63
      %p72 = scmp.eq.s32.totalorder %s31, 0
      %p73 = por %p71, %p72
      %p74 = scmp.ne.s32.totalorder %s62, %s63
      %p75 = scmp.eq.s32.totalorder %s32, 1
      %p76 = por %p74, %p75
      %p78 = scmp.ne.s32.totalorder %s63, %s77
      %p79 = scmp.eq.s32.totalorder %s32, 0
      %p80 = por %p78, %p79
      %s82 = sadd.s32 %s81, 1
      %p85 = scmp.eq.s32.totalorder %s26, 1
      %p86 = scmp.ne.s32.totalorder %s81, %s83
      %p87 = scmp.eq.s32.totalorder %s26, 0
      %p88 = por %p86, %p87
      %p89 = scmp.ne.s32.totalorder %s81, %s83
      %p90 = scmp.eq.s32.totalorder %s31, 1
      %p91 = por %p89, %p90
      %p92 = scmp.ne.s32.totalorder %s83, %s84
      %p93 = scmp.eq.s32.totalorder %s31, 0
      %p94 = por %p92, %p93
      %p95 = scmp.ne.s32.totalorder %s83, %s84
      %p96 = scmp.eq.s32.totalorder %s32, 1
      %p97 = por %p95, %p96
      %p99 = scmp.ne.s32.totalorder %s84, %s98
      %p100 = scmp.eq.s32.totalorder %s32, 0
      %p101 = por %p99, %p100
      %s103 = sadd.s32 %s102, 1
      %p106 = scmp.eq.s32.totalorder %s26, 1
      %p107 = scmp.ne.s32.totalorder %s102, %s104
      %p108 = scmp.eq.s32.totalorder %s26, 0
      %p109 = por %p107, %p108
      %p110 = scmp.ne.s32.totalorder %s102, %s104
      %p111 = scmp.eq.s32.totalorder %s31, 1
      %p112 = por %p110, %p111
      %p113 = scmp.ne.s32.totalorder %s104, %s105
      %p114 = scmp.eq.s32.totalorder %s31, 0
      %p115 = por %p113, %p114
      %p116 = scmp.ne.s32.totalorder %s104, %s105
      %p117 = scmp.eq.s32.totalorder %s32, 1
      %p118 = por %p116, %p117
      %p120 = scmp.ne.s32.totalorder %s105, %s119
      %p121 = scmp.eq.s32.totalorder %s32, 0
      %p122 = por %p120, %p121
      %s124 = sadd.s32 %s123, 1
      %p127 = scmp.eq.s32.totalorder %s26, 1
      %p128 = scmp.ne.s32.totalorder %s123, %s125
      %p129 = scmp.eq.s32.totalorder %s26, 0
      %p130 = por %p128, %p129
      %p131 = scmp.ne.s32.totalorder %s123, %s125
      %p132 = scmp.eq.s32.totalorder %s31, 1
      %p133 = por %p131, %p132
      %p134 = scmp.ne.s32.totalorder %s125, %s126
      %p135 = scmp.eq.s32.totalorder %s31, 0
      %p136 = por %p134, %p135
      %p137 = scmp.ne.s32.totalorder %s125, %s126
      %p138 = scmp.eq.s32.totalorder %s32, 1
      %p139 = por %p137, %p138
      %p141 = scmp.ne.s32.totalorder %s126, %s140
      %p142 = scmp.eq.s32.totalorder %s32, 0
      %p143 = por %p141, %p142
      %s145 = sadd.s32 %s144, 1
      %p148 = scmp.eq.s32.totalorder %s26, 1
      %p149 = scmp.ne.s32.totalorder %s144, %s146
      %p150 = scmp.eq.s32.totalorder %s26, 0
      %p151 = por %p149, %p150
      %p152 = scmp.ne.s32.totalorder %s144, %s146
      %p153 = scmp.eq.s32.totalorder %s31, 1
      %p154 = por %p152, %p153
      %p155 = scmp.ne.s32.totalorder %s146, %s147
      %p156 = scmp.eq.s32.totalorder %s31, 0
      %p157 = por %p155, %p156
      %p158 = scmp.ne.s32.totalorder %s146, %s147
      %p159 = scmp.eq.s32.totalorder %s32, 1
      %p160 = por %p158, %p159
      %p162 = scmp.ne.s32.totalorder %s147, %s161
      %p163 = scmp.eq.s32.totalorder %s32, 0
      %p164 = por %p162, %p163
      %s166 = sadd.s32 %s165, 1
      %p169 = scmp.eq.s32.totalorder %s26, 1
      %p170 = scmp.ne.s32.totalorder %s165, %s167
      %p171 = scmp.eq.s32.totalorder %s26, 0
      %p172 = por %p170, %p171
      %p173 = scmp.ne.s32.totalorder %s165, %s167
      %p174 = scmp.eq.s32.totalorder %s31, 1
      %p175 = por %p173, %p174
      %p176 = scmp.ne.s32.totalorder %s167, %s168
      %p177 = scmp.eq.s32.totalorder %s31, 0
      %p178 = por %p176, %p177
      %p179 = scmp.ne.s32.totalorder %s167, %s168
      %p180 = scmp.eq.s32.totalorder %s32, 1
      %p181 = por %p179, %p180
      %p183 = scmp.ne.s32.totalorder %s168, %s182
      %p184 = scmp.eq.s32.totalorder %s32, 0
      %p185 = por %p183, %p184
      %s187 = sadd.s32 %s186, 1
      %p190 = scmp.eq.s32.totalorder %s26, 1
      %p191 = scmp.ne.s32.totalorder %s186, %s188
      %p192 = scmp.eq.s32.totalorder %s26, 0
      %p193 = por %p191, %p192
      %p194 = scmp.ne.s32.totalorder %s186, %s188
      %p195 = scmp.eq.s32.totalorder %s31, 1
      %p196 = por %p194, %p195
      %p197 = scmp.ne.s32.totalorder %s188, %s189
      %p198 = scmp.eq.s32.totalorder %s31, 0
      %p199 = por %p197, %p198
      %p200 = scmp.ne.s32.totalorder %s188, %s189
      %p201 = scmp.eq.s32.totalorder %s32, 1
      %p202 = por %p200, %p201
      %p204 = scmp.ne.s32.totalorder %s189, %s203
      %p205 = scmp.eq.s32.totalorder %s32, 0
      %p206 = por %p204, %p205
      %s208 = sadd.s32 %s207, 1
      %p211 = scmp.eq.s32.totalorder %s26, 1
      %p212 = scmp.ne.s32.totalorder %s207, %s209
      %p213 = scmp.eq.s32.totalorder %s26, 0
      %p214 = por %p212, %p213
      %p215 = scmp.ne.s32.totalorder %s207, %s209
      %p216 = scmp.eq.s32.totalorder %s31, 1
      %p217 = por %p215, %p216
      %p218 = scmp.ne.s32.totalorder %s209, %s210
      %p219 = scmp.eq.s32.totalorder %s31, 0
      %p220 = por %p218, %p219
      %p221 = scmp.ne.s32.totalorder %s209, %s210
      %p222 = scmp.eq.s32.totalorder %s32, 1
      %p223 = por %p221, %p222
      %p225 = scmp.ne.s32.totalorder %s210, %s224
      %p226 = scmp.eq.s32.totalorder %s32, 0
      %p227 = por %p225, %p226
      %s229 = sadd.s32 %s228, 1
      %p232 = scmp.eq.s32.totalorder %s26, 1
      %p233 = scmp.ne.s32.totalorder %s228, %s230
      %p234 = scmp.eq.s32.totalorder %s26, 0
      %p235 = por %p233, %p234
      %p236 = scmp.ne.s32.totalorder %s228, %s230
      %p237 = scmp.eq.s32.totalorder %s31, 1
      %p238 = por %p236, %p237
      %p239 = scmp.ne.s32.totalorder %s230, %s231
      %p240 = scmp.eq.s32.totalorder %s31, 0
      %p241 = por %p239, %p240
      %p242 = scmp.ne.s32.totalorder %s230, %s231
      %p243 = scmp.eq.s32.totalorder %s32, 1
      %p244 = por %p242, %p243
      %p246 = scmp.ne.s32.totalorder %s231, %s245
      %p247 = scmp.eq.s32.totalorder %s32, 0
      %p248 = por %p246, %p247
      %s250 = sadd.s32 %s249, 1
      %p253 = scmp.eq.s32.totalorder %s26, 1
      %p254 = scmp.ne.s32.totalorder %s249, %s251
      %p255 = scmp.eq.s32.totalorder %s26, 0
      %p256 = por %p254, %p255
      %p257 = scmp.ne.s32.totalorder %s249, %s251
      %p258 = scmp.eq.s32.totalorder %s31, 1
      %p259 = por %p257, %p258
      %p260 = scmp.ne.s32.totalorder %s251, %s252
      %p261 = scmp.eq.s32.totalorder %s31, 0
      %p262 = por %p260, %p261
      %p263 = scmp.ne.s32.totalorder %s251, %s252
      %p264 = scmp.eq.s32.totalorder %s32, 1
      %p265 = por %p263, %p264
      %p267 = scmp.ne.s32.totalorder %s252, %s266
      %p268 = scmp.eq.s32.totalorder %s32, 0
      %p269 = por %p267, %p268
      %s271 = sadd.s32 %s270, 1
      %p274 = scmp.eq.s32.totalorder %s26, 1
      %p275 = scmp.ne.s32.totalorder %s270, %s272
      %p276 = scmp.eq.s32.totalorder %s26, 0
      %p277 = por %p275, %p276
      %p278 = scmp.ne.s32.totalorder %s270, %s272
      %p279 = scmp.eq.s32.totalorder %s31, 1
      %p280 = por %p278, %p279
      %p281 = scmp.ne.s32.totalorder %s272, %s273
      %p282 = scmp.eq.s32.totalorder %s31, 0
      %p283 = por %p281, %p282
      %p284 = scmp.ne.s32.totalorder %s272, %s273
      %p285 = scmp.eq.s32.totalorder %s32, 1
      %p286 = por %p284, %p285
      %p288 = scmp.ne.s32.totalorder %s273, %s287
      %p289 = scmp.eq.s32.totalorder %s32, 0
      %p290 = por %p288, %p289
      %s292 = sadd.s32 %s291, 1
      %p295 = scmp.eq.s32.totalorder %s26, 1
      %p296 = scmp.ne.s32.totalorder %s291, %s293
      %p297 = scmp.eq.s32.totalorder %s26, 0
      %p298 = por %p296, %p297
      %p299 = scmp.ne.s32.totalorder %s291, %s293
      %p300 = scmp.eq.s32.totalorder %s31, 1
      %p301 = por %p299, %p300
      %p302 = scmp.ne.s32.totalorder %s293, %s294
      %p303 = scmp.eq.s32.totalorder %s31, 0
      %p304 = por %p302, %p303
      %p305 = scmp.ne.s32.totalorder %s293, %s294
      %p306 = scmp.eq.s32.totalorder %s32, 1
      %p307 = por %p305, %p306
      %p309 = scmp.ne.s32.totalorder %s294, %s308
      %p310 = scmp.eq.s32.totalorder %s32, 0
      %p311 = por %p309, %p310
      %s312 = ssub.s32 %s26, %s33
      %p313 = scmp.eq.s32.totalorder %s312, 0
      %s315 = sadd.s32 %s314, 1
      %s316 = scalar_select %p313, %s314, %s315
      %p319 = pneg %p313
      %p320 = scmp.eq.s32.totalorder %s26, 1
      %p321 = por %p319, %p320
      %p322 = scmp.ne.s32.totalorder %s314, %s317
      %p323 = scmp.eq.s32.totalorder %s26, 0
      %p324 = por %p322, %p323
      %p325 = scmp.ne.s32.totalorder %s314, %s317
      %p326 = scmp.eq.s32.totalorder %s31, 1
      %p327 = por %p325, %p326
      %p328 = scmp.ne.s32.totalorder %s317, %s318
      %p329 = scmp.eq.s32.totalorder %s31, 0
      %p330 = por %p328, %p329
      %p331 = scmp.ne.s32.totalorder %s317, %s318
      %p332 = scmp.eq.s32.totalorder %s32, 1
      %p333 = por %p331, %p332
      %p335 = scmp.ne.s32.totalorder %s318, %s334
      %p336 = scmp.eq.s32.totalorder %s32, 0
      %p337 = por %p335, %p336
      %p338 = scmp.le.s32.totalorder 1, %s26
      %p339 = scmp.lt.s32.totalorder %s26, 3
      %p340 = pnand %p338, %p339
      %p341 = pneg %p340
      // Predicated region
      $region9: #{_lambda_.1} parent=5 // pred_check
        _
      $region10: #{_lambda_.1} parent=5 // pred_check_branch
        %343 = sbr.rel (%p340) target = $region12
      $region11: #{_lambda_.1} parent=5 // pred_region
        %s344 = ssub.s32 %s26, 1
        // Predicated region
        $region13: #{_lambda_.1} parent=11 // pred_check
          %p345 = pneg %p73
        $region14: #{_lambda_.1} parent=11 // pred_check_branch
          %347 = sbr.rel (%p345) target = $region16
        $region15: #{_lambda_.1} parent=11 // pred_region
          %349 = vsyncadd [#allocation5], 0
          %s350 = sshll.u32 %s1, 4
          %s351 = int_to_ptr.hbm [resolvable:$true] %s350
          %s352 = sshll.u32 [#allocation4], 4
          %s353 = int_to_ptr.vmem [resolvable:$true] %s352
          %358 = dma.hbm_to_vmem [thread:$0]  %s351, 576, %s353, [#allocation5], 64, 64, 4
        $region16: #{_lambda_.1} parent=11 // pred_fallthru
          _
        // Predicated region
        $region17: #{_lambda_.1} parent=11 // pred_check
          %p359 = pneg %p94
        $region18: #{_lambda_.1} parent=11 // pred_check_branch
          %361 = sbr.rel (%p359) target = $region20
        $region19: #{_lambda_.1} parent=11 // pred_region
          %363 = vsyncadd [#allocation7], 0
          %s365 = sshll.u32 %s2, 4
          %s366 = int_to_ptr.hbm [resolvable:$true] %s365
          %s367 = sshll.u32 [#allocation6], 4
          %s368 = int_to_ptr.vmem [resolvable:$true] %s367
          %370 = dma.hbm_to_vmem [thread:$0]  %s366, 128, %s368, [#allocation7]
        $region20: #{_lambda_.1} parent=11 // pred_fallthru
          _
        // Predicated region
        $region21: #{_lambda_.1} parent=11 // pred_check
          %p371 = pneg %p115
        $region22: #{_lambda_.1} parent=11 // pred_check_branch
          %373 = sbr.rel (%p371) target = $region24
        $region23: #{_lambda_.1} parent=11 // pred_region
          %375 = vsyncadd [#allocation7], 0
          %s376 = sshll.u32 %s3, 4
          %s377 = int_to_ptr.hbm [resolvable:$true] %s376
          %s378 = sshll.u32 [#allocation8], 4
          %s379 = int_to_ptr.vmem [resolvable:$true] %s378
          %384 = dma.hbm_to_vmem [thread:$0]  %s377, 576, %s379, [#allocation7], 64, 64, 4
        $region24: #{_lambda_.1} parent=11 // pred_fallthru
          _
        // Predicated region
        $region25: #{_lambda_.1} parent=11 // pred_check
          %p385 = pneg %p136
        $region26: #{_lambda_.1} parent=11 // pred_check_branch
          %387 = sbr.rel (%p385) target = $region28
        $region27: #{_lambda_.1} parent=11 // pred_region
          %389 = vsyncadd [#allocation10], 0
          %s391 = sshll.u32 %s4, 4
          %s392 = int_to_ptr.hbm [resolvable:$true] %s391
          %s393 = sshll.u32 [#allocation9], 4
          %s394 = int_to_ptr.vmem [resolvable:$true] %s393
          %396 = dma.hbm_to_vmem [thread:$0]  %s392, 128, %s394, [#allocation10]
        $region28: #{_lambda_.1} parent=11 // pred_fallthru
          _
        // Predicated region
        $region29: #{_lambda_.1} parent=11 // pred_check
          %p397 = pneg %p157
        $region30: #{_lambda_.1} parent=11 // pred_check_branch
          %399 = sbr.rel (%p397) target = $region32
        $region31: #{_lambda_.1} parent=11 // pred_region
          _
        $region32: #{_lambda_.1} parent=11 // pred_fallthru
          _
        // Predicated region
        $region33: #{_lambda_.1} parent=11 // pred_check
          %p400 = pneg %p178
        $region34: #{_lambda_.1} parent=11 // pred_check_branch
          %402 = sbr.rel (%p400) target = $region36
        $region35: #{_lambda_.1} parent=11 // pred_region
          %404 = vsyncadd [#allocation10], 0
          %s405 = sshll.u32 %s6, 4
          %s406 = int_to_ptr.hbm [resolvable:$true] %s405
          %s407 = sshll.u32 [#allocation11], 4
          %s408 = int_to_ptr.vmem [resolvable:$true] %s407
          %413 = dma.hbm_to_vmem [thread:$0]  %s406, 256, %s408, [#allocation10], 128, 128, 8
        $region36: #{_lambda_.1} parent=11 // pred_fallthru
          _
        // Predicated region
        $region37: #{_lambda_.1} parent=11 // pred_check
          %p414 = pneg %p199
        $region38: #{_lambda_.1} parent=11 // pred_check_branch
          %416 = sbr.rel (%p414) target = $region40
        $region39: #{_lambda_.1} parent=11 // pred_region
          _
        $region40: #{_lambda_.1} parent=11 // pred_fallthru
          _
        // Predicated region
        $region41: #{_lambda_.1} parent=11 // pred_check
          %p417 = pneg %p220
        $region42: #{_lambda_.1} parent=11 // pred_check_branch
          %419 = sbr.rel (%p417) target = $region44
        $region43: #{_lambda_.1} parent=11 // pred_region
          %421 = vsyncadd [#allocation13], 0
          %s422 = sshll.u32 %s8, 4
          %s423 = int_to_ptr.hbm [resolvable:$true] %s422
          %s424 = sshll.u32 [#allocation12], 4
          %s425 = int_to_ptr.vmem [resolvable:$true] %s424
          %430 = dma.hbm_to_vmem [thread:$0]  %s423, 256, %s425, [#allocation13], 128, 128, 8
        $region44: #{_lambda_.1} parent=11 // pred_fallthru
          _
        // Predicated region
        $region45: #{_lambda_.1} parent=11 // pred_check
          %p431 = pneg %p241
        $region46: #{_lambda_.1} parent=11 // pred_check_branch
          %433 = sbr.rel (%p431) target = $region48
        $region47: #{_lambda_.1} parent=11 // pred_region
          %435 = vsyncadd [#allocation13], 0
          %s436 = sshll.u32 %s9, 4
          %s437 = int_to_ptr.hbm [resolvable:$true] %s436
          %s438 = sshll.u32 [#allocation14], 4
          %s439 = int_to_ptr.vmem [resolvable:$true] %s438
          %444 = dma.hbm_to_vmem [thread:$0]  %s437, 1152, %s439, [#allocation13], 64, 64, 4
        $region48: #{_lambda_.1} parent=11 // pred_fallthru
          _
        // Predicated region
        $region49: #{_lambda_.1} parent=11 // pred_check
          %p445 = pneg %p262
        $region50: #{_lambda_.1} parent=11 // pred_check_branch
          %447 = sbr.rel (%p445) target = $region52
        $region51: #{_lambda_.1} parent=11 // pred_region
          %449 = vsyncadd [#allocation16], 0
          %s450 = sshll.u32 %s10, 4
          %s451 = int_to_ptr.hbm [resolvable:$true] %s450
          %s452 = sshll.u32 [#allocation15], 4
          %s453 = int_to_ptr.vmem [resolvable:$true] %s452
          %458 = dma.hbm_to_vmem [thread:$0]  %s451, 256, %s453, [#allocation16], 128, 128, 8
        $region52: #{_lambda_.1} parent=11 // pred_fallthru
          _
        // Predicated region
        $region53: #{_lambda_.1} parent=11 // pred_check
          %p459 = pneg %p283
        $region54: #{_lambda_.1} parent=11 // pred_check_branch
          %461 = sbr.rel (%p459) target = $region56
        $region55: #{_lambda_.1} parent=11 // pred_region
          %463 = vsyncadd [#allocation16], 0
          %s464 = sshll.u32 %s11, 4
          %s465 = int_to_ptr.hbm [resolvable:$true] %s464
          %s466 = sshll.u32 [#allocation17], 4
          %s467 = int_to_ptr.vmem [resolvable:$true] %s466
          %472 = dma.hbm_to_vmem [thread:$0]  %s465, 256, %s467, [#allocation16], 128, 128, 8
        $region56: #{_lambda_.1} parent=11 // pred_fallthru
          _
        // Predicated region
        $region57: #{_lambda_.1} parent=11 // pred_check
          %p473 = pneg %p304
        $region58: #{_lambda_.1} parent=11 // pred_check_branch
          %475 = sbr.rel (%p473) target = $region60
        $region59: #{_lambda_.1} parent=11 // pred_region
          _
        $region60: #{_lambda_.1} parent=11 // pred_fallthru
          _
      $region12: #{_lambda_.1} parent=5 // pred_fallthru
        _
      %p476 = scmp.lt.s32.totalorder %s26, 2
      // Predicated region
      $region61: #{_lambda_.1} parent=5 // pred_check
        %p477 = pneg %p476
      $region62: #{_lambda_.1} parent=5 // pred_check_branch
        %479 = sbr.rel (%p477) target = $region64
      $region63: #{_lambda_.1} parent=5 // pred_region
        // Predicated region
        $region65: #{_lambda_.1} parent=63 // pred_check
          %p480 = pneg %p46
        $region66: #{_lambda_.1} parent=63 // pred_check_branch
          %482 = sbr.rel (%p480) target = $region68
        $region67: #{_lambda_.1} parent=63 // pred_region
          %p483 = scmp.lt.s32.totalorder %s26, 1
          %s484 = scalar_select %p483, %s26, 1
          %s485 = smul.addr %s484, 2
          %s486 = smul.addr %s485, 4
          %s487 = scalar_lea.vmem %s0, %s486
        $region68: #{_lambda_.1} parent=63 // pred_fallthru
          _
      $region64: #{_lambda_.1} parent=5 // pred_fallthru
        _
      %p488 = scmp.le.s32.totalorder 1, %s26
      %p489 = scmp.lt.s32.totalorder %s26, 3
      %p490 = pnand %p488, %p489
      %p491 = pneg %p490
      // Predicated region
      $region69: #{_lambda_.1} parent=5 // pred_check
        _
      $region70: #{_lambda_.1} parent=5 // pred_check_branch
        %493 = sbr.rel (%p490) target = $region72
      $region71: #{_lambda_.1} parent=5 // pred_region
        %s494 = ssub.s32 %s26, 1
        // Predicated region
        $region73: #{_lambda_.1} parent=71 // pred_check
          %p495 = pneg %p73
        $region74: #{_lambda_.1} parent=71 // pred_check_branch
          %497 = sbr.rel (%p495) target = $region76
        $region75: #{_lambda_.1} parent=71 // pred_region
          %499 = dma.done [#allocation5], 576
        $region76: #{_lambda_.1} parent=71 // pred_fallthru
          _
        // Predicated region
        $region77: #{_lambda_.1} parent=71 // pred_check
          %p500 = pneg %p94
        $region78: #{_lambda_.1} parent=71 // pred_check_branch
          %502 = sbr.rel (%p500) target = $region80
        $region79: #{_lambda_.1} parent=71 // pred_region
          %504 = dma.done [#allocation7], 128
        $region80: #{_lambda_.1} parent=71 // pred_fallthru
          _
        // Predicated region
        $region81: #{_lambda_.1} parent=71 // pred_check
          %p505 = pneg %p115
        $region82: #{_lambda_.1} parent=71 // pred_check_branch
          %507 = sbr.rel (%p505) target = $region84
        $region83: #{_lambda_.1} parent=71 // pred_region
          %509 = dma.done [#allocation7], 576
        $region84: #{_lambda_.1} parent=71 // pred_fallthru
          _
        // Predicated region
        $region85: #{_lambda_.1} parent=71 // pred_check
          %p510 = pneg %p136
        $region86: #{_lambda_.1} parent=71 // pred_check_branch
          %512 = sbr.rel (%p510) target = $region88
        $region87: #{_lambda_.1} parent=71 // pred_region
          %514 = dma.done [#allocation10], 128
        $region88: #{_lambda_.1} parent=71 // pred_fallthru
          _
        // Predicated region
        $region89: #{_lambda_.1} parent=71 // pred_check
          %p515 = pneg %p178
        $region90: #{_lambda_.1} parent=71 // pred_check_branch
          %517 = sbr.rel (%p515) target = $region92
        $region91: #{_lambda_.1} parent=71 // pred_region
          %519 = dma.done [#allocation10], 256
        $region92: #{_lambda_.1} parent=71 // pred_fallthru
          _
        // Predicated region
        $region93: #{_lambda_.1} parent=71 // pred_check
          %p520 = pneg %p220
        $region94: #{_lambda_.1} parent=71 // pred_check_branch
          %522 = sbr.rel (%p520) target = $region96
        $region95: #{_lambda_.1} parent=71 // pred_region
          %524 = dma.done [#allocation13], 256
        $region96: #{_lambda_.1} parent=71 // pred_fallthru
          _
        // Predicated region
        $region97: #{_lambda_.1} parent=71 // pred_check
          %p525 = pneg %p241
        $region98: #{_lambda_.1} parent=71 // pred_check_branch
          %527 = sbr.rel (%p525) target = $region100
        $region99: #{_lambda_.1} parent=71 // pred_region
          %529 = dma.done [#allocation13], 1152
        $region100: #{_lambda_.1} parent=71 // pred_fallthru
          _
        // Predicated region
        $region101: #{_lambda_.1} parent=71 // pred_check
          %p530 = pneg %p262
        $region102: #{_lambda_.1} parent=71 // pred_check_branch
          %532 = sbr.rel (%p530) target = $region104
        $region103: #{_lambda_.1} parent=71 // pred_region
          %534 = dma.done [#allocation16], 256
        $region104: #{_lambda_.1} parent=71 // pred_fallthru
          _
        // Predicated region
        $region105: #{_lambda_.1} parent=71 // pred_check
          %p535 = pneg %p283
        $region106: #{_lambda_.1} parent=71 // pred_check_branch
          %537 = sbr.rel (%p535) target = $region108
        $region107: #{_lambda_.1} parent=71 // pred_region
          %539 = dma.done [#allocation16], 256
        $region108: #{_lambda_.1} parent=71 // pred_fallthru
          _
        %p540 = scmp.lt.s32.totalorder %s31, 1
        %s541 = scalar_select %p540, %s31, 1
        %s542 = smul.addr %s541, 2
        %s543 = smul.addr %s542, 4
        %s544 = scalar_lea.vmem %s0, %s543
        %p545 = pneg %p52
        %p546 = pneg %p49
        %p547 = pneg %p73
        %p548 = pneg %p70
        %p549 = pneg %p94
        %p550 = pneg %p91
        %p551 = pneg %p115
        %p552 = pneg %p112
        %p553 = pneg %p136
        %p554 = pneg %p133
        %p555 = pneg %p157
        %p556 = pneg %p154
        %p557 = pneg %p178
        %p558 = pneg %p175
        %p559 = pneg %p199
        %p560 = pneg %p196
        %p561 = pneg %p220
        %p562 = pneg %p217
        %p563 = pneg %p241
        %p564 = pneg %p238
        %p565 = pneg %p262
        %p566 = pneg %p259
        %p567 = pneg %p283
        %p568 = pneg %p280
        %p569 = pneg %p304
        %p570 = pneg %p301
        %p571 = pneg %p330
        %p572 = pneg %p327
        %p573 = scmp.lt.s32.totalorder %s31, 1
        %s574 = scalar_select %p573, %s31, 1
        %s575 = scalar_lea.vmem %s13, %s574
        %p576 = scmp.lt.s32.totalorder %s31, 1
        %s577 = scalar_select %p576, %s31, 1
        %s578 = smul.addr %s577, 2
        %s579 = smul.addr %s578, 4
        %s580 = scalar_lea.vmem %s0, %s579
        %p581 = scmp.lt.s32.totalorder %s31, 1
        %s582 = scalar_select %p581, %s31, 1
        %s583 = scalar_lea.vmem %s13, %s582
        %v587 = vld [vmem:[%s580] sm:$0xff]
        %589 = vst [vmem:[#allocation1] ss:$2 sm:$0xff] %v587
        %v590 = vld.sshfl [vmem:[#allocation1] sm:$0xff pattern:$0x75316420]
        %v591 = vld.sshfl [vmem:[#allocation1 + $0x8] sm:$0xff pattern:$0x75316420]
        %v594 = vpack.c.bf16 %v591, %v590
        %595 = vst [vmem:[#allocation2] sm:$0xff] 0
        %596 = vst [vmem:[#allocation2 + $0x8] sm:$0xff] 0
        %597 = vst [vmem:[#allocation2 + $0x10] sm:$0xff] 0
        %598 = vst [vmem:[#allocation2 + $0x18] sm:$0xff] 0
        %599 = vst [vmem:[#allocation2 + $0x4] sm:$0x33] %v594
        %v600 = vlaneseq
        %v601 = vand.u32 %v600, 127
        %v602 = vadd.s32 %v601, 128
        %v603 = vand.u32 %v601, 15
        %v604 = vand.u32 %v602, 15
        %vm605 = vcmp.ge.s32.totalorder %v603, 1
        %vm606 = vcmp.ge.s32.totalorder %v604, 1
        %vm607 = vcmp.le.s32.totalorder %v603, 14
        %vm608 = vcmp.le.s32.totalorder %v604, 14
        %v609 = vld [vmem:[#allocation2] sm:$0x33]
        %v610 = vld [vmem:[#allocation2 + $0x8] sm:$0x3]
        %v611 = vsel %vm605, 1, 0
        %v612 = vsel %vm606, 1, 0
        %vm613 = vcmp.eq.s32.totalorder %v611, 1
        %vm614 = vcmp.eq.s32.totalorder %v612, 1
        %vm615 = vmpackc.low %vm614, %vm613
        %v616 = vsel %vm615, 65537, 0
        %617 = vrot.lane.b32.xlu0 %v616, 111
        %v618 = vpop.permute.xlu0 %617
        %v619 = vrot.slane %v618, 4
        %vm620 = vcmask 908288
        %v621 = vsel %vm620, %v619, %v618
        %v622 = vunpack.c.l.b16 %v621
        %v623 = vunpack.c.h.b16 %v621
        %v624 = vunpack.c.l.b16 0
        %v625 = vunpack.c.h.b16 0
        %vm626 = vcmp.ne.s32.totalorder %v622, %v624
        %vm627 = vcmp.ne.s32.totalorder %v623, %v625
        %vm628 = vmpackc.low %vm627, %vm626
        %v629 = vunpack.c.l.b16 %v619
        %v630 = vunpack.c.h.b16 %v619
        %v631 = vunpack.c.l.b16 0
        %v632 = vunpack.c.h.b16 0
        %vm633 = vcmp.ne.s32.totalorder %v629, %v631
        %vm634 = vcmp.ne.s32.totalorder %v630, %v632
        %vm635 = vmpackc.low %vm634, %vm633
        %v636 = vsel %vm628, %v609, 0
        %v637 = vsel %vm635, %v610, 0
        %v638 = vld [vmem:[#allocation4] sm:$0xf]
        %s639 = scalar_lea.vmem [#allocation4], 4
        %v640 = vld [vmem:[%s639] sm:$0xf]
        %v643 = vunpack.c.l.b16 %v609
        %v644 = vunpack.c.h.b16 %v609
        %v645 = vunpack.c.l.b16 %v610
        %v646 = vpack.c.b16 %v643, %v643
        %v647 = vpack.c.b16 %v644, %v644
        %v648 = vpack.c.b16 %v645, %v645
        %649 = vrot.lane.b32.xlu0 %v646, 16
        %v650 = vpop.permute.xlu0 %649
        %651 = vrot.lane.b32.xlu0 %v647, 16
        %v652 = vpop.permute.xlu0 %651
        %653 = vrot.lane.b32.xlu0 %v648, 16
        %v654 = vpop.permute.xlu0 %653
        %vm655 = vcmask 130048
        %v656 = vsel %vm655, %v650, %v652
        %v657 = vsel %vm655, %v652, %v654
        %vm658 = vcmask 31744
        %v660 = vsel %vm658, %v640, 0
        %vm662 = vcmask 1041408
        %v664 = vsel %vm662, %v656, 0
        %v667 = vsel %vm662, %v657, 0
        %669 = vmatpush.bf16.msra.mxu0 0
        %670 = vmatpush.bf16.msra.mxu0 0
        %671 = vmatpush.bf16.msra.mxu0 0
        %672 = vmatpush.bf16.msra.mxu0 0
        %673 = vmatpush.bf16.msra.mxu0 0
        %674 = vmatpush.bf16.msra.mxu0 0
        %675 = vmatpush.bf16.msra.mxu0 0
        %676 = vmatpush.bf16.msra.mxu0 %v664
        %677 = vmatmul.bf16.gmra.mxu0 %v660
        %v678 = vpop.f32.mrf.mxu0
        %v679 = vadd.f32 0.0, %v678
        %v680 = vpop.f32.mrf.mxu0
        %681 = vdwg.mxu0
        %682 = vmatpush.bf16.msra.mxu0 0
        %683 = vmatpush.bf16.msra.mxu0 0
        %684 = vmatpush.bf16.msra.mxu0 0
        %685 = vmatpush.bf16.msra.mxu0 0
        %686 = vmatpush.bf16.msra.mxu0 0
        %687 = vmatpush.bf16.msra.mxu0 0
        %688 = vmatpush.bf16.msra.mxu0 0
        %689 = vmatpush.bf16.msra.mxu0 %v667
        %690 = vmatmul.bf16.gmra.mxu0 %v660
        %v691 = vpop.f32.mrf.mxu0
        %v692 = vadd.f32 0.0, %v691
        %v693 = vpop.f32.mrf.mxu0
        %694 = vdwg.mxu0
        %v697 = vunpack.c.l.b16 %v636
        %v698 = vunpack.c.h.b16 %v636
        %v699 = vunpack.c.l.b16 %v637
        %v700 = vpack.c.b16 %v697, %v697
        %v701 = vpack.c.b16 %v698, %v698
        %v702 = vpack.c.b16 %v699, %v699
        %703 = vrot.lane.b32.xlu0 %v700, 17
        %v704 = vpop.permute.xlu0 %703
        %705 = vrot.lane.b32.xlu0 %v701, 17
        %v706 = vpop.permute.xlu0 %705
        %707 = vrot.lane.b32.xlu0 %v702, 17
        %v708 = vpop.permute.xlu0 %707
        %vm709 = vcmask 138240
        %v710 = vsel %vm709, %v704, %v706
        %v711 = vsel %vm709, %v706, %v708
        %v713 = vsel %vm658, %v638, 0
        %v716 = vsel %vm662, %v710, 0
        %v719 = vsel %vm662, %v711, 0
        %721 = vmatpush.bf16.msra.mxu0 0
        %722 = vmatpush.bf16.msra.mxu0 0
        %723 = vmatpush.bf16.msra.mxu0 0
        %724 = vmatpush.bf16.msra.mxu0 0
        %725 = vmatpush.bf16.msra.mxu0 0
        %726 = vmatpush.bf16.msra.mxu0 0
        %727 = vmatpush.bf16.msra.mxu0 0
        %728 = vmatpush.bf16.msra.mxu0 %v716
        %729 = vmatmul.bf16.gmra.mxu0 %v713
        %v730 = vpop.f32.mrf.mxu0
        %v731 = vadd.f32 %v679, %v730
        %v732 = vpop.f32.mrf.mxu0
        %733 = vdwg.mxu0
        %734 = vmatpush.bf16.msra.mxu0 0
        %735 = vmatpush.bf16.msra.mxu0 0
        %736 = vmatpush.bf16.msra.mxu0 0
        %737 = vmatpush.bf16.msra.mxu0 0
        %738 = vmatpush.bf16.msra.mxu0 0
        %739 = vmatpush.bf16.msra.mxu0 0
        %740 = vmatpush.bf16.msra.mxu0 0
        %741 = vmatpush.bf16.msra.mxu0 %v719
        %742 = vmatmul.bf16.gmra.mxu0 %v713
        %v743 = vpop.f32.mrf.mxu0
        %v744 = vadd.f32 %v692, %v743
        %v745 = vpop.f32.mrf.mxu0
        %746 = vdwg.mxu0
        %v747 = vsel %vm607, 1, 0
        %v748 = vsel %vm608, 1, 0
        %vm749 = vcmp.eq.s32.totalorder %v747, 1
        %vm750 = vcmp.eq.s32.totalorder %v748, 1
        %vm751 = vmpackc.low %vm750, %vm749
        %v752 = vsel %vm751, 65537, 0
        %753 = vrot.lane.b32.xlu0 %v752, 113
        %v754 = vpop.permute.xlu0 %753
        %v755 = vrot.slane %v754, 4
        %vm756 = vcmask 924672
        %v757 = vsel %vm756, %v755, %v754
        %v758 = vunpack.c.l.b16 %v757
        %v759 = vunpack.c.h.b16 %v757
        %v760 = vunpack.c.l.b16 0
        %v761 = vunpack.c.h.b16 0
        %vm762 = vcmp.ne.s32.totalorder %v758, %v760
        %vm763 = vcmp.ne.s32.totalorder %v759, %v761
        %vm764 = vmpackc.low %vm763, %vm762
        %v765 = vunpack.c.l.b16 %v755
        %v766 = vunpack.c.h.b16 %v755
        %v767 = vunpack.c.l.b16 0
        %v768 = vunpack.c.h.b16 0
        %vm769 = vcmp.ne.s32.totalorder %v765, %v767
        %vm770 = vcmp.ne.s32.totalorder %v766, %v768
        %vm771 = vmpackc.low %vm770, %vm769
        %v772 = vsel %vm764, %v609, 0
        %v773 = vsel %vm771, %v610, 0
        %s774 = scalar_lea.vmem [#allocation4], 8
        %v775 = vld [vmem:[%s774] sm:$0xf]
        %v778 = vunpack.c.l.b16 %v772
        %v779 = vunpack.c.h.b16 %v772
        %v780 = vunpack.c.l.b16 %v773
        %v781 = vpack.c.b16 %v778, %v778
        %v782 = vpack.c.b16 %v779, %v779
        %v783 = vpack.c.b16 %v780, %v780
        %784 = vrot.lane.b32.xlu0 %v781, 15
        %v785 = vpop.permute.xlu0 %784
        %786 = vrot.lane.b32.xlu0 %v782, 15
        %v787 = vpop.permute.xlu0 %786
        %788 = vrot.lane.b32.xlu0 %v783, 15
        %v789 = vpop.permute.xlu0 %788
        %vm790 = vcmask 121856
        %v791 = vsel %vm790, %v785, %v787
        %v792 = vsel %vm790, %v787, %v789
        %v794 = vsel %vm658, %v775, 0
        %v797 = vsel %vm662, %v791, 0
        %v800 = vsel %vm662, %v792, 0
        %802 = vmatpush.bf16.msra.mxu0 0
        %803 = vmatpush.bf16.msra.mxu0 0
        %804 = vmatpush.bf16.msra.mxu0 0
        %805 = vmatpush.bf16.msra.mxu0 0
        %806 = vmatpush.bf16.msra.mxu0 0
        %807 = vmatpush.bf16.msra.mxu0 0
        %808 = vmatpush.bf16.msra.mxu0 0
        %809 = vmatpush.bf16.msra.mxu0 %v797
        %810 = vmatmul.bf16.gmra.mxu0 %v794
        %v811 = vpop.f32.mrf.mxu0
        %v812 = vadd.f32 0.0, %v811
        %v813 = vpop.f32.mrf.mxu0
        %814 = vdwg.mxu0
        %815 = vmatpush.bf16.msra.mxu0 0
        %816 = vmatpush.bf16.msra.mxu0 0
        %817 = vmatpush.bf16.msra.mxu0 0
        %818 = vmatpush.bf16.msra.mxu0 0
        %819 = vmatpush.bf16.msra.mxu0 0
        %820 = vmatpush.bf16.msra.mxu0 0
        %821 = vmatpush.bf16.msra.mxu0 0
        %822 = vmatpush.bf16.msra.mxu0 %v800
        %823 = vmatmul.bf16.gmra.mxu0 %v794
        %v824 = vpop.f32.mrf.mxu0
        %v825 = vadd.f32 0.0, %v824
        %v826 = vpop.f32.mrf.mxu0
        %827 = vdwg.mxu0
        %v828 = vadd.f32 %v731, %v812
        %v829 = vadd.f32 %v744, %v825
        %830 = vrot.lane.b32.xlu0 %v616, 127
        %v831 = vpop.permute.xlu0 %830
        %v832 = vrot.slane %v831, 4
        %vm833 = vcmask 1039360
        %v834 = vsel %vm833, %v832, %v831
        %v835 = vunpack.c.l.b16 %v834
        %v836 = vunpack.c.h.b16 %v834
        %v837 = vunpack.c.l.b16 0
        %v838 = vunpack.c.h.b16 0
        %vm839 = vcmp.ne.s32.totalorder %v835, %v837
        %vm840 = vcmp.ne.s32.totalorder %v836, %v838
        %vm841 = vmpackc.low %vm840, %vm839
        %v842 = vunpack.c.l.b16 %v832
        %v843 = vunpack.c.h.b16 %v832
        %v844 = vunpack.c.l.b16 0
        %v845 = vunpack.c.h.b16 0
        %vm846 = vcmp.ne.s32.totalorder %v842, %v844
        %vm847 = vcmp.ne.s32.totalorder %v843, %v845
        %vm848 = vmpackc.low %vm847, %vm846
        %v849 = vsel %vm841, %v609, 0
        %v850 = vsel %vm848, %v610, 0
        %s851 = scalar_lea.vmem [#allocation4], 12
        %v852 = vld [vmem:[%s851] sm:$0xf]
        %v855 = vunpack.c.l.b16 %v849
        %v856 = vunpack.c.h.b16 %v849
        %v857 = vunpack.c.l.b16 %v850
        %v858 = vpack.c.b16 %v855, %v855
        %v859 = vpack.c.b16 %v856, %v856
        %v860 = vpack.c.b16 %v857, %v857
        %861 = vrot.lane.b32.xlu0 %v858, 1
        %v862 = vpop.permute.xlu0 %861
        %863 = vrot.lane.b32.xlu0 %v859, 1
        %v864 = vpop.permute.xlu0 %863
        %865 = vrot.lane.b32.xlu0 %v860, 1
        %v866 = vpop.permute.xlu0 %865
        %vm867 = vcmask 7168
        %v868 = vsel %vm867, %v862, %v864
        %v869 = vsel %vm867, %v864, %v866
        %v871 = vsel %vm658, %v852, 0
        %v874 = vsel %vm662, %v868, 0
        %v877 = vsel %vm662, %v869, 0
        %879 = vmatpush.bf16.msra.mxu0 0
        %880 = vmatpush.bf16.msra.mxu0 0
        %881 = vmatpush.bf16.msra.mxu0 0
        %882 = vmatpush.bf16.msra.mxu0 0
        %883 = vmatpush.bf16.msra.mxu0 0
        %884 = vmatpush.bf16.msra.mxu0 0
        %885 = vmatpush.bf16.msra.mxu0 0
        %886 = vmatpush.bf16.msra.mxu0 %v874
        %887 = vmatmul.bf16.gmra.mxu0 %v871
        %v888 = vpop.f32.mrf.mxu0
        %v889 = vadd.f32 0.0, %v888
        %v890 = vpop.f32.mrf.mxu0
        %891 = vdwg.mxu0
        %892 = vmatpush.bf16.msra.mxu0 0
        %893 = vmatpush.bf16.msra.mxu0 0
        %894 = vmatpush.bf16.msra.mxu0 0
        %895 = vmatpush.bf16.msra.mxu0 0
        %896 = vmatpush.bf16.msra.mxu0 0
        %897 = vmatpush.bf16.msra.mxu0 0
        %898 = vmatpush.bf16.msra.mxu0 0
        %899 = vmatpush.bf16.msra.mxu0 %v877
        %900 = vmatmul.bf16.gmra.mxu0 %v871
        %v901 = vpop.f32.mrf.mxu0
        %v902 = vadd.f32 0.0, %v901
        %v903 = vpop.f32.mrf.mxu0
        %904 = vdwg.mxu0
        %v905 = vadd.f32 %v828, %v889
        %v906 = vadd.f32 %v829, %v902
        %v907 = vld [vmem:[#allocation2 + $0x4] sm:$0x33]
        %s908 = scalar_lea.vmem [#allocation4], 16
        %v909 = vld [vmem:[%s908] sm:$0xf]
        %v911 = vunpack.c.l.b16 %v907
        %v912 = vunpack.c.h.b16 %v907
        %v913 = vpack.c.b16 %v911, %v911
        %v914 = vpack.c.b16 %v912, %v912
        %v916 = vsel %vm658, %v909, 0
        %v919 = vsel %vm662, %v913, 0
        %v922 = vsel %vm662, %v914, 0
        %924 = vmatpush.bf16.msra.mxu0 0
        %925 = vmatpush.bf16.msra.mxu0 0
        %926 = vmatpush.bf16.msra.mxu0 0
        %927 = vmatpush.bf16.msra.mxu0 0
        %928 = vmatpush.bf16.msra.mxu0 0
        %929 = vmatpush.bf16.msra.mxu0 0
        %930 = vmatpush.bf16.msra.mxu0 0
        %931 = vmatpush.bf16.msra.mxu0 %v919
        %932 = vmatmul.bf16.gmra.mxu0 %v916
        %v933 = vpop.f32.mrf.mxu0
        %v934 = vadd.f32 0.0, %v933
        %v935 = vpop.f32.mrf.mxu0
        %936 = vdwg.mxu0
        %937 = vmatpush.bf16.msra.mxu0 0
        %938 = vmatpush.bf16.msra.mxu0 0
        %939 = vmatpush.bf16.msra.mxu0 0
        %940 = vmatpush.bf16.msra.mxu0 0
        %941 = vmatpush.bf16.msra.mxu0 0
        %942 = vmatpush.bf16.msra.mxu0 0
        %943 = vmatpush.bf16.msra.mxu0 0
        %944 = vmatpush.bf16.msra.mxu0 %v922
        %945 = vmatmul.bf16.gmra.mxu0 %v916
        %v946 = vpop.f32.mrf.mxu0
        %v947 = vadd.f32 0.0, %v946
        %v948 = vpop.f32.mrf.mxu0
        %949 = vdwg.mxu0
        %v950 = vadd.f32 %v905, %v934
        %v951 = vadd.f32 %v906, %v947
        %v952 = vld [vmem:[#allocation2 + $0x4] sm:$0x33]
        %v953 = vld [vmem:[#allocation2 + $0xc] sm:$0x3]
        %954 = vrot.lane.b32.xlu0 %v752, 1
        %v955 = vpop.permute.xlu0 %954
        %v956 = vrot.slane %v955, 4
        %v957 = vsel %vm867, %v956, %v955
        %v958 = vunpack.c.l.b16 %v957
        %v959 = vunpack.c.h.b16 %v957
        %v960 = vunpack.c.l.b16 0
        %v961 = vunpack.c.h.b16 0
        %vm962 = vcmp.ne.s32.totalorder %v958, %v960
        %vm963 = vcmp.ne.s32.totalorder %v959, %v961
        %vm964 = vmpackc.low %vm963, %vm962
        %v965 = vunpack.c.l.b16 %v956
        %v966 = vunpack.c.h.b16 %v956
        %v967 = vunpack.c.l.b16 0
        %v968 = vunpack.c.h.b16 0
        %vm969 = vcmp.ne.s32.totalorder %v965, %v967
        %vm970 = vcmp.ne.s32.totalorder %v966, %v968
        %vm971 = vmpackc.low %vm970, %vm969
        %v972 = vsel %vm964, %v952, 0
        %v973 = vsel %vm971, %v953, 0
        %s974 = scalar_lea.vmem [#allocation4], 20
        %v975 = vld [vmem:[%s974] sm:$0xf]
        %v978 = vunpack.c.l.b16 %v972
        %v979 = vunpack.c.h.b16 %v972
        %v980 = vunpack.c.l.b16 %v973
        %v981 = vpack.c.b16 %v978, %v978
        %v982 = vpack.c.b16 %v979, %v979
        %v983 = vpack.c.b16 %v980, %v980
        %984 = vrot.lane.b32.xlu0 %v981, 127
        %v985 = vpop.permute.xlu0 %984
        %986 = vrot.lane.b32.xlu0 %v982, 127
        %v987 = vpop.permute.xlu0 %986
        %988 = vrot.lane.b32.xlu0 %v983, 127
        %v989 = vpop.permute.xlu0 %988
        %v990 = vsel %vm833, %v985, %v987
        %v991 = vsel %vm833, %v987, %v989
        %v993 = vsel %vm658, %v975, 0
        %v996 = vsel %vm662, %v990, 0
        %v999 = vsel %vm662, %v991, 0
        %1001 = vmatpush.bf16.msra.mxu0 0
        %1002 = vmatpush.bf16.msra.mxu0 0
        %1003 = vmatpush.bf16.msra.mxu0 0
        %1004 = vmatpush.bf16.msra.mxu0 0
        %1005 = vmatpush.bf16.msra.mxu0 0
        %1006 = vmatpush.bf16.msra.mxu0 0
        %1007 = vmatpush.bf16.msra.mxu0 0
        %1008 = vmatpush.bf16.msra.mxu0 %v996
        %1009 = vmatmul.bf16.gmra.mxu0 %v993
        %v1010 = vpop.f32.mrf.mxu0
        %v1011 = vadd.f32 0.0, %v1010
        %v1012 = vpop.f32.mrf.mxu0
        %1013 = vdwg.mxu0
        %1014 = vmatpush.bf16.msra.mxu0 0
        %1015 = vmatpush.bf16.msra.mxu0 0
        %1016 = vmatpush.bf16.msra.mxu0 0
        %1017 = vmatpush.bf16.msra.mxu0 0
        %1018 = vmatpush.bf16.msra.mxu0 0
        %1019 = vmatpush.bf16.msra.mxu0 0
        %1020 = vmatpush.bf16.msra.mxu0 0
        %1021 = vmatpush.bf16.msra.mxu0 %v999
        %1022 = vmatmul.bf16.gmra.mxu0 %v993
        %v1023 = vpop.f32.mrf.mxu0
        %v1024 = vadd.f32 0.0, %v1023
        %v1025 = vpop.f32.mrf.mxu0
        %1026 = vdwg.mxu0
        %v1027 = vadd.f32 %v950, %v1011
        %v1028 = vadd.f32 %v951, %v1024
        %1029 = vrot.lane.b32.xlu0 %v616, 15
        %v1030 = vpop.permute.xlu0 %1029
        %v1031 = vrot.slane %v1030, 4
        %v1032 = vsel %vm790, %v1031, %v1030
        %v1033 = vunpack.c.l.b16 %v1032
        %v1034 = vunpack.c.h.b16 %v1032
        %v1035 = vunpack.c.l.b16 0
        %v1036 = vunpack.c.h.b16 0
        %vm1037 = vcmp.ne.s32.totalorder %v1033, %v1035
        %vm1038 = vcmp.ne.s32.totalorder %v1034, %v1036
        %vm1039 = vmpackc.low %vm1038, %vm1037
        %v1040 = vunpack.c.l.b16 %v1031
        %v1041 = vunpack.c.h.b16 %v1031
        %v1042 = vunpack.c.l.b16 0
        %v1043 = vunpack.c.h.b16 0
        %vm1044 = vcmp.ne.s32.totalorder %v1040, %v1042
        %vm1045 = vcmp.ne.s32.totalorder %v1041, %v1043
        %vm1046 = vmpackc.low %vm1045, %vm1044
        %v1047 = vsel %vm1039, %v952, 0
        %v1048 = vsel %vm1046, %v953, 0
        %s1049 = scalar_lea.vmem [#allocation4], 24
        %v1050 = vld [vmem:[%s1049] sm:$0xf]
        %v1053 = vunpack.c.l.b16 %v1047
        %v1054 = vunpack.c.h.b16 %v1047
        %v1055 = vunpack.c.l.b16 %v1048
        %v1056 = vpack.c.b16 %v1053, %v1053
        %v1057 = vpack.c.b16 %v1054, %v1054
        %v1058 = vpack.c.b16 %v1055, %v1055
        %1059 = vrot.lane.b32.xlu0 %v1056, 113
        %v1060 = vpop.permute.xlu0 %1059
        %1061 = vrot.lane.b32.xlu0 %v1057, 113
        %v1062 = vpop.permute.xlu0 %1061
        %1063 = vrot.lane.b32.xlu0 %v1058, 113
        %v1064 = vpop.permute.xlu0 %1063
        %v1065 = vsel %vm756, %v1060, %v1062
        %v1066 = vsel %vm756, %v1062, %v1064
        %v1068 = vsel %vm658, %v1050, 0
        %v1071 = vsel %vm662, %v1065, 0
        %v1074 = vsel %vm662, %v1066, 0
        %1076 = vmatpush.bf16.msra.mxu0 0
        %1077 = vmatpush.bf16.msra.mxu0 0
        %1078 = vmatpush.bf16.msra.mxu0 0
        %1079 = vmatpush.bf16.msra.mxu0 0
        %1080 = vmatpush.bf16.msra.mxu0 0
        %1081 = vmatpush.bf16.msra.mxu0 0
        %1082 = vmatpush.bf16.msra.mxu0 0
        %1083 = vmatpush.bf16.msra.mxu0 %v1071
        %1084 = vmatmul.bf16.gmra.mxu0 %v1068
        %v1085 = vpop.f32.mrf.mxu0
        %v1086 = vadd.f32 0.0, %v1085
        %v1087 = vpop.f32.mrf.mxu0
        %1088 = vdwg.mxu0
        %1089 = vmatpush.bf16.msra.mxu0 0
        %1090 = vmatpush.bf16.msra.mxu0 0
        %1091 = vmatpush.bf16.msra.mxu0 0
        %1092 = vmatpush.bf16.msra.mxu0 0
        %1093 = vmatpush.bf16.msra.mxu0 0
        %1094 = vmatpush.bf16.msra.mxu0 0
        %1095 = vmatpush.bf16.msra.mxu0 0
        %1096 = vmatpush.bf16.msra.mxu0 %v1074
        %1097 = vmatmul.bf16.gmra.mxu0 %v1068
        %v1098 = vpop.f32.mrf.mxu0
        %v1099 = vadd.f32 0.0, %v1098
        %v1100 = vpop.f32.mrf.mxu0
        %1101 = vdwg.mxu0
        %v1102 = vadd.f32 %v1027, %v1086
        %v1103 = vadd.f32 %v1028, %v1099
        %s1104 = scalar_lea.vmem [#allocation4], 28
        %v1105 = vld [vmem:[%s1104] sm:$0xf]
        %v1108 = vunpack.c.l.b16 %v952
        %v1109 = vunpack.c.h.b16 %v952
        %v1110 = vunpack.c.l.b16 %v953
        %v1111 = vpack.c.b16 %v1108, %v1108
        %v1112 = vpack.c.b16 %v1109, %v1109
        %v1113 = vpack.c.b16 %v1110, %v1110
        %1114 = vrot.lane.b32.xlu0 %v1111, 112
        %v1115 = vpop.permute.xlu0 %1114
        %1116 = vrot.lane.b32.xlu0 %v1112, 112
        %v1117 = vpop.permute.xlu0 %1116
        %1118 = vrot.lane.b32.xlu0 %v1113, 112
        %v1119 = vpop.permute.xlu0 %1118
        %vm1120 = vcmask 916480
        %v1121 = vsel %vm1120, %v1115, %v1117
        %v1122 = vsel %vm1120, %v1117, %v1119
        %v1124 = vsel %vm658, %v1105, 0
        %v1127 = vsel %vm662, %v1121, 0
        %v1130 = vsel %vm662, %v1122, 0
        %1132 = vmatpush.bf16.msra.mxu0 0
        %1133 = vmatpush.bf16.msra.mxu0 0
        %1134 = vmatpush.bf16.msra.mxu0 0
        %1135 = vmatpush.bf16.msra.mxu0 0
        %1136 = vmatpush.bf16.msra.mxu0 0
        %1137 = vmatpush.bf16.msra.mxu0 0
        %1138 = vmatpush.bf16.msra.mxu0 0
        %1139 = vmatpush.bf16.msra.mxu0 %v1127
        %1140 = vmatmul.bf16.gmra.mxu0 %v1124
        %v1141 = vpop.f32.mrf.mxu0
        %v1142 = vadd.f32 0.0, %v1141
        %v1143 = vpop.f32.mrf.mxu0
        %1144 = vdwg.mxu0
        %1145 = vmatpush.bf16.msra.mxu0 0
        %1146 = vmatpush.bf16.msra.mxu0 0
        %1147 = vmatpush.bf16.msra.mxu0 0
        %1148 = vmatpush.bf16.msra.mxu0 0
        %1149 = vmatpush.bf16.msra.mxu0 0
        %1150 = vmatpush.bf16.msra.mxu0 0
        %1151 = vmatpush.bf16.msra.mxu0 0
        %1152 = vmatpush.bf16.msra.mxu0 %v1130
        %1153 = vmatmul.bf16.gmra.mxu0 %v1124
        %v1154 = vpop.f32.mrf.mxu0
        %v1155 = vadd.f32 0.0, %v1154
        %v1156 = vpop.f32.mrf.mxu0
        %1157 = vdwg.mxu0
        %v1158 = vadd.f32 %v1102, %v1142
        %v1159 = vadd.f32 %v1103, %v1155
        %1160 = vrot.lane.b32.xlu0 %v752, 17
        %v1161 = vpop.permute.xlu0 %1160
        %v1162 = vrot.slane %v1161, 4
        %v1163 = vsel %vm709, %v1162, %v1161
        %v1164 = vunpack.c.l.b16 %v1163
        %v1165 = vunpack.c.h.b16 %v1163
        %v1166 = vunpack.c.l.b16 0
        %v1167 = vunpack.c.h.b16 0
        %vm1168 = vcmp.ne.s32.totalorder %v1164, %v1166
        %vm1169 = vcmp.ne.s32.totalorder %v1165, %v1167
        %vm1170 = vmpackc.low %vm1169, %vm1168
        %v1171 = vunpack.c.l.b16 %v1162
        %v1172 = vunpack.c.h.b16 %v1162
        %v1173 = vunpack.c.l.b16 0
        %v1174 = vunpack.c.h.b16 0
        %vm1175 = vcmp.ne.s32.totalorder %v1171, %v1173
        %vm1176 = vcmp.ne.s32.totalorder %v1172, %v1174
        %vm1177 = vmpackc.low %vm1176, %vm1175
        %v1178 = vsel %vm1170, %v952, 0
        %v1179 = vsel %vm1177, %v953, 0
        %s1180 = scalar_lea.vmem [#allocation4], 32
        %v1181 = vld [vmem:[%s1180] sm:$0xf]
        %v1184 = vunpack.c.l.b16 %v1178
        %v1185 = vunpack.c.h.b16 %v1178
        %v1186 = vunpack.c.l.b16 %v1179
        %v1187 = vpack.c.b16 %v1184, %v1184
        %v1188 = vpack.c.b16 %v1185, %v1185
        %v1189 = vpack.c.b16 %v1186, %v1186
        %1190 = vrot.lane.b32.xlu0 %v1187, 111
        %v1191 = vpop.permute.xlu0 %1190
        %1192 = vrot.lane.b32.xlu0 %v1188, 111
        %v1193 = vpop.permute.xlu0 %1192
        %1194 = vrot.lane.b32.xlu0 %v1189, 111
        %v1195 = vpop.permute.xlu0 %1194
        %v1196 = vsel %vm620, %v1191, %v1193
        %v1197 = vsel %vm620, %v1193, %v1195
        %v1199 = vsel %vm658, %v1181, 0
        %v1202 = vsel %vm662, %v1196, 0
        %v1205 = vsel %vm662, %v1197, 0
        %1207 = vmatpush.bf16.msra.mxu0 0
        %1208 = vmatpush.bf16.msra.mxu0 0
        %1209 = vmatpush.bf16.msra.mxu0 0
        %1210 = vmatpush.bf16.msra.mxu0 0
        %1211 = vmatpush.bf16.msra.mxu0 0
        %1212 = vmatpush.bf16.msra.mxu0 0
        %1213 = vmatpush.bf16.msra.mxu0 0
        %1214 = vmatpush.bf16.msra.mxu0 %v1202
        %1215 = vmatmul.bf16.gmra.mxu0 %v1199
        %v1216 = vpop.f32.mrf.mxu0
        %v1217 = vadd.f32 0.0, %v1216
        %v1218 = vpop.f32.mrf.mxu0
        %1219 = vdwg.mxu0
        %1220 = vmatpush.bf16.msra.mxu0 0
        %1221 = vmatpush.bf16.msra.mxu0 0
        %1222 = vmatpush.bf16.msra.mxu0 0
        %1223 = vmatpush.bf16.msra.mxu0 0
        %1224 = vmatpush.bf16.msra.mxu0 0
        %1225 = vmatpush.bf16.msra.mxu0 0
        %1226 = vmatpush.bf16.msra.mxu0 0
        %1227 = vmatpush.bf16.msra.mxu0 %v1205
        %1228 = vmatmul.bf16.gmra.mxu0 %v1199
        %v1229 = vpop.f32.mrf.mxu0
        %v1230 = vadd.f32 0.0, %v1229
        %v1231 = vpop.f32.mrf.mxu0
        %1232 = vdwg.mxu0
        %v1233 = vadd.f32 %v1158, %v1217
        %v1234 = vadd.f32 %v1159, %v1230
        %v1235 = vld [vmem:[#allocation6] sm:$0xff]
        %1237 = vset.pattern.permute.xlu0 0
        %1238 = vperm.xlu0 %1237, %v1235
        %v1239 = vpop.permute.xlu0 %1238
        %v1241 = vadd.f32 %v1233, %v1239
        %v1242 = vadd.f32 %v1234, %v1239
        %vm1243 = vcmp.ge.f32.partialorder %v1241, 0.0
        %vm1244 = vcmp.ge.f32.partialorder %v1242, 0.0
        %v1245 = vmul.f32 %v1241, 0.2
        %v1246 = vmul.f32 %v1242, 0.2
        %v1247 = vsel %vm1243, %v1241, %v1245
        %v1248 = vsel %vm1244, %v1242, %v1246
        %v1249 = vlaneseq
        %v1250 = vshrl.u32 %v1249, 7
        %v1251 = vadd.s32 %v1250, 8
        %v1252 = vadd.s32 %v1250, 16
        %v1253 = vadd.s32 %v1250, 24
        %v1254 = vadd.s32 %v1250, 32
        %v1255 = vadd.s32 %v1250, 40
        %v1256 = vadd.s32 %v1250, 48
        %v1257 = vadd.s32 %v1250, 56
        %v1258 = vadd.s32 %v1250, 64
        %v1259 = vadd.s32 %v1250, 72
        %v1260 = vadd.s32 %v1250, 80
        %v1261 = vadd.s32 %v1250, 88
        %v1262 = vadd.s32 %v1250, 96
        %v1263 = vadd.s32 %v1250, 104
        %v1264 = vadd.s32 %v1250, 112
        %v1265 = vadd.s32 %v1250, 120
        %v1266 = vadd.s32 %v1250, 128
        %v1267 = vadd.s32 %v1250, 136
        %v1268 = vadd.s32 %v1250, 144
        %v1269 = vadd.s32 %v1250, 152
        %v1270 = vadd.s32 %v1250, 160
        %v1271 = vadd.s32 %v1250, 168
        %v1272 = vadd.s32 %v1250, 176
        %v1273 = vadd.s32 %v1250, 184
        %v1274 = vadd.s32 %v1250, 192
        %v1275 = vadd.s32 %v1250, 200
        %v1276 = vadd.s32 %v1250, 208
        %v1277 = vadd.s32 %v1250, 216
        %v1278 = vadd.s32 %v1250, 224
        %v1279 = vadd.s32 %v1250, 232
        %v1280 = vadd.s32 %v1250, 240
        %v1281 = vadd.s32 %v1250, 248
        %v1282 = vshra.s32 %v1250, 4
        %v1283 = vshra.s32 %v1251, 4
        %v1284 = vshra.s32 %v1252, 4
        %v1285 = vshra.s32 %v1253, 4
        %v1286 = vshra.s32 %v1254, 4
        %v1287 = vshra.s32 %v1255, 4
        %v1288 = vshra.s32 %v1256, 4
        %v1289 = vshra.s32 %v1257, 4
        %v1290 = vshra.s32 %v1258, 4
        %v1291 = vshra.s32 %v1259, 4
        %v1292 = vshra.s32 %v1260, 4
        %v1293 = vshra.s32 %v1261, 4
        %v1294 = vshra.s32 %v1262, 4
        %v1295 = vshra.s32 %v1263, 4
        %v1296 = vshra.s32 %v1264, 4
        %v1297 = vshra.s32 %v1265, 4
        %v1298 = vshra.s32 %v1266, 4
        %v1299 = vshra.s32 %v1267, 4
        %v1300 = vshra.s32 %v1268, 4
        %v1301 = vshra.s32 %v1269, 4
        %v1302 = vshra.s32 %v1270, 4
        %v1303 = vshra.s32 %v1271, 4
        %v1304 = vshra.s32 %v1272, 4
        %v1305 = vshra.s32 %v1273, 4
        %v1306 = vshra.s32 %v1274, 4
        %v1307 = vshra.s32 %v1275, 4
        %v1308 = vshra.s32 %v1276, 4
        %v1309 = vshra.s32 %v1277, 4
        %v1310 = vshra.s32 %v1278, 4
        %v1311 = vshra.s32 %v1279, 4
        %v1312 = vshra.s32 %v1280, 4
        %v1313 = vshra.s32 %v1281, 4
        %v1314 = vand.u32 %v1250, 15
        %v1315 = vand.u32 %v1251, 15
        %v1316 = vand.u32 %v1252, 15
        %v1317 = vand.u32 %v1253, 15
        %v1318 = vand.u32 %v1254, 15
        %v1319 = vand.u32 %v1255, 15
        %v1320 = vand.u32 %v1256, 15
        %v1321 = vand.u32 %v1257, 15
        %v1322 = vand.u32 %v1258, 15
        %v1323 = vand.u32 %v1259, 15
        %v1324 = vand.u32 %v1260, 15
        %v1325 = vand.u32 %v1261, 15
        %v1326 = vand.u32 %v1262, 15
        %v1327 = vand.u32 %v1263, 15
        %v1328 = vand.u32 %v1264, 15
        %v1329 = vand.u32 %v1265, 15
        %v1330 = vand.u32 %v1266, 15
        %v1331 = vand.u32 %v1267, 15
        %v1332 = vand.u32 %v1268, 15
        %v1333 = vand.u32 %v1269, 15
        %v1334 = vand.u32 %v1270, 15
        %v1335 = vand.u32 %v1271, 15
        %v1336 = vand.u32 %v1272, 15
        %v1337 = vand.u32 %v1273, 15
        %v1338 = vand.u32 %v1274, 15
        %v1339 = vand.u32 %v1275, 15
        %v1340 = vand.u32 %v1276, 15
        %v1341 = vand.u32 %v1277, 15
        %v1342 = vand.u32 %v1278, 15
        %v1343 = vand.u32 %v1279, 15
        %v1344 = vand.u32 %v1280, 15
        %v1345 = vand.u32 %v1281, 15
        %v1346 = vshra.s32 %v601, 3
        %v1347 = vand.u32 %v601, 7
        %v1348 = vshra.s32 %v1282, 1
        %v1349 = vshra.s32 %v1283, 1
        %v1350 = vshra.s32 %v1284, 1
        %v1351 = vshra.s32 %v1285, 1
        %v1352 = vshra.s32 %v1286, 1
        %v1353 = vshra.s32 %v1287, 1
        %v1354 = vshra.s32 %v1288, 1
        %v1355 = vshra.s32 %v1289, 1
        %v1356 = vshra.s32 %v1290, 1
        %v1357 = vshra.s32 %v1291, 1
        %v1358 = vshra.s32 %v1292, 1
        %v1359 = vshra.s32 %v1293, 1
        %v1360 = vshra.s32 %v1294, 1
        %v1361 = vshra.s32 %v1295, 1
        %v1362 = vshra.s32 %v1296, 1
        %v1363 = vshra.s32 %v1297, 1
        %v1364 = vshra.s32 %v1298, 1
        %v1365 = vshra.s32 %v1299, 1
        %v1366 = vshra.s32 %v1300, 1
        %v1367 = vshra.s32 %v1301, 1
        %v1368 = vshra.s32 %v1302, 1
        %v1369 = vshra.s32 %v1303, 1
        %v1370 = vshra.s32 %v1304, 1
        %v1371 = vshra.s32 %v1305, 1
        %v1372 = vshra.s32 %v1306, 1
        %v1373 = vshra.s32 %v1307, 1
        %v1374 = vshra.s32 %v1308, 1
        %v1375 = vshra.s32 %v1309, 1
        %v1376 = vshra.s32 %v1310, 1
        %v1377 = vshra.s32 %v1311, 1
        %v1378 = vshra.s32 %v1312, 1
        %v1379 = vshra.s32 %v1313, 1
        %vm1380 = vcmp.eq.s32.totalorder %v1348, %v1346
        %vm1381 = vcmp.eq.s32.totalorder %v1349, %v1346
        %vm1382 = vcmp.eq.s32.totalorder %v1350, %v1346
        %vm1383 = vcmp.eq.s32.totalorder %v1351, %v1346
        %vm1384 = vcmp.eq.s32.totalorder %v1352, %v1346
        %vm1385 = vcmp.eq.s32.totalorder %v1353, %v1346
        %vm1386 = vcmp.eq.s32.totalorder %v1354, %v1346
        %vm1387 = vcmp.eq.s32.totalorder %v1355, %v1346
        %vm1388 = vcmp.eq.s32.totalorder %v1356, %v1346
        %vm1389 = vcmp.eq.s32.totalorder %v1357, %v1346
        %vm1390 = vcmp.eq.s32.totalorder %v1358, %v1346
        %vm1391 = vcmp.eq.s32.totalorder %v1359, %v1346
        %vm1392 = vcmp.eq.s32.totalorder %v1360, %v1346
        %vm1393 = vcmp.eq.s32.totalorder %v1361, %v1346
        %vm1394 = vcmp.eq.s32.totalorder %v1362, %v1346
        %vm1395 = vcmp.eq.s32.totalorder %v1363, %v1346
        %vm1396 = vcmp.eq.s32.totalorder %v1364, %v1346
        %vm1397 = vcmp.eq.s32.totalorder %v1365, %v1346
        %vm1398 = vcmp.eq.s32.totalorder %v1366, %v1346
        %vm1399 = vcmp.eq.s32.totalorder %v1367, %v1346
        %vm1400 = vcmp.eq.s32.totalorder %v1368, %v1346
        %vm1401 = vcmp.eq.s32.totalorder %v1369, %v1346
        %vm1402 = vcmp.eq.s32.totalorder %v1370, %v1346
        %vm1403 = vcmp.eq.s32.totalorder %v1371, %v1346
        %vm1404 = vcmp.eq.s32.totalorder %v1372, %v1346
        %vm1405 = vcmp.eq.s32.totalorder %v1373, %v1346
        %vm1406 = vcmp.eq.s32.totalorder %v1374, %v1346
        %vm1407 = vcmp.eq.s32.totalorder %v1375, %v1346
        %vm1408 = vcmp.eq.s32.totalorder %v1376, %v1346
        %vm1409 = vcmp.eq.s32.totalorder %v1377, %v1346
        %vm1410 = vcmp.eq.s32.totalorder %v1378, %v1346
        %vm1411 = vcmp.eq.s32.totalorder %v1379, %v1346
        %v1412 = vshra.s32 %v1314, 1
        %v1413 = vshra.s32 %v1315, 1
        %v1414 = vshra.s32 %v1316, 1
        %v1415 = vshra.s32 %v1317, 1
        %v1416 = vshra.s32 %v1318, 1
        %v1417 = vshra.s32 %v1319, 1
        %v1418 = vshra.s32 %v1320, 1
        %v1419 = vshra.s32 %v1321, 1
        %v1420 = vshra.s32 %v1322, 1
        %v1421 = vshra.s32 %v1323, 1
        %v1422 = vshra.s32 %v1324, 1
        %v1423 = vshra.s32 %v1325, 1
        %v1424 = vshra.s32 %v1326, 1
        %v1425 = vshra.s32 %v1327, 1
        %v1426 = vshra.s32 %v1328, 1
        %v1427 = vshra.s32 %v1329, 1
        %v1428 = vshra.s32 %v1330, 1
        %v1429 = vshra.s32 %v1331, 1
        %v1430 = vshra.s32 %v1332, 1
        %v1431 = vshra.s32 %v1333, 1
        %v1432 = vshra.s32 %v1334, 1
        %v1433 = vshra.s32 %v1335, 1
        %v1434 = vshra.s32 %v1336, 1
        %v1435 = vshra.s32 %v1337, 1
        %v1436 = vshra.s32 %v1338, 1
        %v1437 = vshra.s32 %v1339, 1
        %v1438 = vshra.s32 %v1340, 1
        %v1439 = vshra.s32 %v1341, 1
        %v1440 = vshra.s32 %v1342, 1
        %v1441 = vshra.s32 %v1343, 1
        %v1442 = vshra.s32 %v1344, 1
        %v1443 = vshra.s32 %v1345, 1
        %vm1444 = vcmp.eq.s32.totalorder %v1412, %v1347
        %vm1445 = vcmp.eq.s32.totalorder %v1413, %v1347
        %vm1446 = vcmp.eq.s32.totalorder %v1414, %v1347
        %vm1447 = vcmp.eq.s32.totalorder %v1415, %v1347
        %vm1448 = vcmp.eq.s32.totalorder %v1416, %v1347
        %vm1449 = vcmp.eq.s32.totalorder %v1417, %v1347
        %vm1450 = vcmp.eq.s32.totalorder %v1418, %v1347
        %vm1451 = vcmp.eq.s32.totalorder %v1419, %v1347
        %vm1452 = vcmp.eq.s32.totalorder %v1420, %v1347
        %vm1453 = vcmp.eq.s32.totalorder %v1421, %v1347
        %vm1454 = vcmp.eq.s32.totalorder %v1422, %v1347
        %vm1455 = vcmp.eq.s32.totalorder %v1423, %v1347
        %vm1456 = vcmp.eq.s32.totalorder %v1424, %v1347
        %vm1457 = vcmp.eq.s32.totalorder %v1425, %v1347
        %vm1458 = vcmp.eq.s32.totalorder %v1426, %v1347
        %vm1459 = vcmp.eq.s32.totalorder %v1427, %v1347
        %vm1460 = vcmp.eq.s32.totalorder %v1428, %v1347
        %vm1461 = vcmp.eq.s32.totalorder %v1429, %v1347
        %vm1462 = vcmp.eq.s32.totalorder %v1430, %v1347
        %vm1463 = vcmp.eq.s32.totalorder %v1431, %v1347
        %vm1464 = vcmp.eq.s32.totalorder %v1432, %v1347
        %vm1465 = vcmp.eq.s32.totalorder %v1433, %v1347
        %vm1466 = vcmp.eq.s32.totalorder %v1434, %v1347
        %vm1467 = vcmp.eq.s32.totalorder %v1435, %v1347
        %vm1468 = vcmp.eq.s32.totalorder %v1436, %v1347
        %vm1469 = vcmp.eq.s32.totalorder %v1437, %v1347
        %vm1470 = vcmp.eq.s32.totalorder %v1438, %v1347
        %vm1471 = vcmp.eq.s32.totalorder %v1439, %v1347
        %vm1472 = vcmp.eq.s32.totalorder %v1440, %v1347
        %vm1473 = vcmp.eq.s32.totalorder %v1441, %v1347
        %vm1474 = vcmp.eq.s32.totalorder %v1442, %v1347
        %vm1475 = vcmp.eq.s32.totalorder %v1443, %v1347
        %vm1476 = vmand %vm1380, %vm1444
        %vm1477 = vmand %vm1381, %vm1445
        %vm1478 = vmand %vm1382, %vm1446
        %vm1479 = vmand %vm1383, %vm1447
        %vm1480 = vmand %vm1384, %vm1448
        %vm1481 = vmand %vm1385, %vm1449
        %vm1482 = vmand %vm1386, %vm1450
        %vm1483 = vmand %vm1387, %vm1451
        %vm1484 = vmand %vm1388, %vm1452
        %vm1485 = vmand %vm1389, %vm1453
        %vm1486 = vmand %vm1390, %vm1454
        %vm1487 = vmand %vm1391, %vm1455
        %vm1488 = vmand %vm1392, %vm1456
        %vm1489 = vmand %vm1393, %vm1457
        %vm1490 = vmand %vm1394, %vm1458
        %vm1491 = vmand %vm1395, %vm1459
        %vm1492 = vmand %vm1396, %vm1460
        %vm1493 = vmand %vm1397, %vm1461
        %vm1494 = vmand %vm1398, %vm1462
        %vm1495 = vmand %vm1399, %vm1463
        %vm1496 = vmand %vm1400, %vm1464
        %vm1497 = vmand %vm1401, %vm1465
        %vm1498 = vmand %vm1402, %vm1466
        %vm1499 = vmand %vm1403, %vm1467
        %vm1500 = vmand %vm1404, %vm1468
        %vm1501 = vmand %vm1405, %vm1469
        %vm1502 = vmand %vm1406, %vm1470
        %vm1503 = vmand %vm1407, %vm1471
        %vm1504 = vmand %vm1408, %vm1472
        %vm1505 = vmand %vm1409, %vm1473
        %vm1506 = vmand %vm1410, %vm1474
        %vm1507 = vmand %vm1411, %vm1475
        %v1508 = vsel %vm1476, 0.25, 0.0
        %v1509 = vsel %vm1477, 0.25, 0.0
        %v1510 = vsel %vm1478, 0.25, 0.0
        %v1511 = vsel %vm1479, 0.25, 0.0
        %v1512 = vsel %vm1480, 0.25, 0.0
        %v1513 = vsel %vm1481, 0.25, 0.0
        %v1514 = vsel %vm1482, 0.25, 0.0
        %v1515 = vsel %vm1483, 0.25, 0.0
        %v1516 = vsel %vm1484, 0.25, 0.0
        %v1517 = vsel %vm1485, 0.25, 0.0
        %v1518 = vsel %vm1486, 0.25, 0.0
        %v1519 = vsel %vm1487, 0.25, 0.0
        %v1520 = vsel %vm1488, 0.25, 0.0
        %v1521 = vsel %vm1489, 0.25, 0.0
        %v1522 = vsel %vm1490, 0.25, 0.0
        %v1523 = vsel %vm1491, 0.25, 0.0
        %v1524 = vsel %vm1492, 0.25, 0.0
        %v1525 = vsel %vm1493, 0.25, 0.0
        %v1526 = vsel %vm1494, 0.25, 0.0
        %v1527 = vsel %vm1495, 0.25, 0.0
        %v1528 = vsel %vm1496, 0.25, 0.0
        %v1529 = vsel %vm1497, 0.25, 0.0
        %v1530 = vsel %vm1498, 0.25, 0.0
        %v1531 = vsel %vm1499, 0.25, 0.0
        %v1532 = vsel %vm1500, 0.25, 0.0
        %v1533 = vsel %vm1501, 0.25, 0.0
        %v1534 = vsel %vm1502, 0.25, 0.0
        %v1535 = vsel %vm1503, 0.25, 0.0
        %v1536 = vsel %vm1504, 0.25, 0.0
        %v1537 = vsel %vm1505, 0.25, 0.0
        %v1538 = vsel %vm1506, 0.25, 0.0
        %v1539 = vsel %vm1507, 0.25, 0.0
        %v1540 = vcvt.s32.f32 %v1346
        %v1541 = vmul.f32 %v1540, 2.142857
        %v1542 = vcvt.s32.f32 %v1347
        %v1543 = vmul.f32 %v1542, 2.142857
        %v1544 = vcvt.s32.f32 %v1282
        %v1545 = vcvt.s32.f32 %v1283
        %v1546 = vcvt.s32.f32 %v1284
        %v1547 = vcvt.s32.f32 %v1285
        %v1548 = vcvt.s32.f32 %v1286
        %v1549 = vcvt.s32.f32 %v1287
        %v1550 = vcvt.s32.f32 %v1288
        %v1551 = vcvt.s32.f32 %v1289
        %v1552 = vcvt.s32.f32 %v1290
        %v1553 = vcvt.s32.f32 %v1291
        %v1554 = vcvt.s32.f32 %v1292
        %v1555 = vcvt.s32.f32 %v1293
        %v1556 = vcvt.s32.f32 %v1294
        %v1557 = vcvt.s32.f32 %v1295
        %v1558 = vcvt.s32.f32 %v1296
        %v1559 = vcvt.s32.f32 %v1297
        %v1560 = vcvt.s32.f32 %v1298
        %v1561 = vcvt.s32.f32 %v1299
        %v1562 = vcvt.s32.f32 %v1300
        %v1563 = vcvt.s32.f32 %v1301
        %v1564 = vcvt.s32.f32 %v1302
        %v1565 = vcvt.s32.f32 %v1303
        %v1566 = vcvt.s32.f32 %v1304
        %v1567 = vcvt.s32.f32 %v1305
        %v1568 = vcvt.s32.f32 %v1306
        %v1569 = vcvt.s32.f32 %v1307
        %v1570 = vcvt.s32.f32 %v1308
        %v1571 = vcvt.s32.f32 %v1309
        %v1572 = vcvt.s32.f32 %v1310
        %v1573 = vcvt.s32.f32 %v1311
        %v1574 = vcvt.s32.f32 %v1312
        %v1575 = vcvt.s32.f32 %v1313
        %v1576 = vsub.f32 %v1544, %v1541
        %v1577 = vsub.f32 %v1545, %v1541
        %v1578 = vsub.f32 %v1546, %v1541
        %v1579 = vsub.f32 %v1547, %v1541
        %v1580 = vsub.f32 %v1548, %v1541
        %v1581 = vsub.f32 %v1549, %v1541
        %v1582 = vsub.f32 %v1550, %v1541
        %v1583 = vsub.f32 %v1551, %v1541
        %v1584 = vsub.f32 %v1552, %v1541
        %v1585 = vsub.f32 %v1553, %v1541
        %v1586 = vsub.f32 %v1554, %v1541
        %v1587 = vsub.f32 %v1555, %v1541
        %v1588 = vsub.f32 %v1556, %v1541
        %v1589 = vsub.f32 %v1557, %v1541
        %v1590 = vsub.f32 %v1558, %v1541
        %v1591 = vsub.f32 %v1559, %v1541
        %v1592 = vsub.f32 %v1560, %v1541
        %v1593 = vsub.f32 %v1561, %v1541
        %v1594 = vsub.f32 %v1562, %v1541
        %v1595 = vsub.f32 %v1563, %v1541
        %v1596 = vsub.f32 %v1564, %v1541
        %v1597 = vsub.f32 %v1565, %v1541
        %v1598 = vsub.f32 %v1566, %v1541
        %v1599 = vsub.f32 %v1567, %v1541
        %v1600 = vsub.f32 %v1568, %v1541
        %v1601 = vsub.f32 %v1569, %v1541
        %v1602 = vsub.f32 %v1570, %v1541
        %v1603 = vsub.f32 %v1571, %v1541
        %v1604 = vsub.f32 %v1572, %v1541
        %v1605 = vsub.f32 %v1573, %v1541
        %v1606 = vsub.f32 %v1574, %v1541
        %v1607 = vsub.f32 %v1575, %v1541
        %v1608 = vand.u32 2147483647, %v1576
        %v1609 = vand.u32 2147483647, %v1577
        %v1610 = vand.u32 2147483647, %v1578
        %v1611 = vand.u32 2147483647, %v1579
        %v1612 = vand.u32 2147483647, %v1580
        %v1613 = vand.u32 2147483647, %v1581
        %v1614 = vand.u32 2147483647, %v1582
        %v1615 = vand.u32 2147483647, %v1583
        %v1616 = vand.u32 2147483647, %v1584
        %v1617 = vand.u32 2147483647, %v1585
        %v1618 = vand.u32 2147483647, %v1586
        %v1619 = vand.u32 2147483647, %v1587
        %v1620 = vand.u32 2147483647, %v1588
        %v1621 = vand.u32 2147483647, %v1589
        %v1622 = vand.u32 2147483647, %v1590
        %v1623 = vand.u32 2147483647, %v1591
        %v1624 = vand.u32 2147483647, %v1592
        %v1625 = vand.u32 2147483647, %v1593
        %v1626 = vand.u32 2147483647, %v1594
        %v1627 = vand.u32 2147483647, %v1595
        %v1628 = vand.u32 2147483647, %v1596
        %v1629 = vand.u32 2147483647, %v1597
        %v1630 = vand.u32 2147483647, %v1598
        %v1631 = vand.u32 2147483647, %v1599
        %v1632 = vand.u32 2147483647, %v1600
        %v1633 = vand.u32 2147483647, %v1601
        %v1634 = vand.u32 2147483647, %v1602
        %v1635 = vand.u32 2147483647, %v1603
        %v1636 = vand.u32 2147483647, %v1604
        %v1637 = vand.u32 2147483647, %v1605
        %v1638 = vand.u32 2147483647, %v1606
        %v1639 = vand.u32 2147483647, %v1607
        %v1640 = vsub.f32 1.0, %v1608
        %v1641 = vsub.f32 1.0, %v1609
        %v1642 = vsub.f32 1.0, %v1610
        %v1643 = vsub.f32 1.0, %v1611
        %v1644 = vsub.f32 1.0, %v1612
        %v1645 = vsub.f32 1.0, %v1613
        %v1646 = vsub.f32 1.0, %v1614
        %v1647 = vsub.f32 1.0, %v1615
        %v1648 = vsub.f32 1.0, %v1616
        %v1649 = vsub.f32 1.0, %v1617
        %v1650 = vsub.f32 1.0, %v1618
        %v1651 = vsub.f32 1.0, %v1619
        %v1652 = vsub.f32 1.0, %v1620
        %v1653 = vsub.f32 1.0, %v1621
        %v1654 = vsub.f32 1.0, %v1622
        %v1655 = vsub.f32 1.0, %v1623
        %v1656 = vsub.f32 1.0, %v1624
        %v1657 = vsub.f32 1.0, %v1625
        %v1658 = vsub.f32 1.0, %v1626
        %v1659 = vsub.f32 1.0, %v1627
        %v1660 = vsub.f32 1.0, %v1628
        %v1661 = vsub.f32 1.0, %v1629
        %v1662 = vsub.f32 1.0, %v1630
        %v1663 = vsub.f32 1.0, %v1631
        %v1664 = vsub.f32 1.0, %v1632
        %v1665 = vsub.f32 1.0, %v1633
        %v1666 = vsub.f32 1.0, %v1634
        %v1667 = vsub.f32 1.0, %v1635
        %v1668 = vsub.f32 1.0, %v1636
        %v1669 = vsub.f32 1.0, %v1637
        %v1670 = vsub.f32 1.0, %v1638
        %v1671 = vsub.f32 1.0, %v1639
        %v1672 = vmax.f32 %v1640, 0.0
        %v1673 = vmax.f32 %v1641, 0.0
        %v1674 = vmax.f32 %v1642, 0.0
        %v1675 = vmax.f32 %v1643, 0.0
        %v1676 = vmax.f32 %v1644, 0.0
        %v1677 = vmax.f32 %v1645, 0.0
        %v1678 = vmax.f32 %v1646, 0.0
        %v1679 = vmax.f32 %v1647, 0.0
        %v1680 = vmax.f32 %v1648, 0.0
        %v1681 = vmax.f32 %v1649, 0.0
        %v1682 = vmax.f32 %v1650, 0.0
        %v1683 = vmax.f32 %v1651, 0.0
        %v1684 = vmax.f32 %v1652, 0.0
        %v1685 = vmax.f32 %v1653, 0.0
        %v1686 = vmax.f32 %v1654, 0.0
        %v1687 = vmax.f32 %v1655, 0.0
        %v1688 = vmax.f32 %v1656, 0.0
        %v1689 = vmax.f32 %v1657, 0.0
        %v1690 = vmax.f32 %v1658, 0.0
        %v1691 = vmax.f32 %v1659, 0.0
        %v1692 = vmax.f32 %v1660, 0.0
        %v1693 = vmax.f32 %v1661, 0.0
        %v1694 = vmax.f32 %v1662, 0.0
        %v1695 = vmax.f32 %v1663, 0.0
        %v1696 = vmax.f32 %v1664, 0.0
        %v1697 = vmax.f32 %v1665, 0.0
        %v1698 = vmax.f32 %v1666, 0.0
        %v1699 = vmax.f32 %v1667, 0.0
        %v1700 = vmax.f32 %v1668, 0.0
        %v1701 = vmax.f32 %v1669, 0.0
        %v1702 = vmax.f32 %v1670, 0.0
        %v1703 = vmax.f32 %v1671, 0.0
        %v1704 = vcvt.s32.f32 %v1314
        %v1705 = vcvt.s32.f32 %v1315
        %v1706 = vcvt.s32.f32 %v1316
        %v1707 = vcvt.s32.f32 %v1317
        %v1708 = vcvt.s32.f32 %v1318
        %v1709 = vcvt.s32.f32 %v1319
        %v1710 = vcvt.s32.f32 %v1320
        %v1711 = vcvt.s32.f32 %v1321
        %v1712 = vcvt.s32.f32 %v1322
        %v1713 = vcvt.s32.f32 %v1323
        %v1714 = vcvt.s32.f32 %v1324
        %v1715 = vcvt.s32.f32 %v1325
        %v1716 = vcvt.s32.f32 %v1326
        %v1717 = vcvt.s32.f32 %v1327
        %v1718 = vcvt.s32.f32 %v1328
        %v1719 = vcvt.s32.f32 %v1329
        %v1720 = vcvt.s32.f32 %v1330
        %v1721 = vcvt.s32.f32 %v1331
        %v1722 = vcvt.s32.f32 %v1332
        %v1723 = vcvt.s32.f32 %v1333
        %v1724 = vcvt.s32.f32 %v1334
        %v1725 = vcvt.s32.f32 %v1335
        %v1726 = vcvt.s32.f32 %v1336
        %v1727 = vcvt.s32.f32 %v1337
        %v1728 = vcvt.s32.f32 %v1338
        %v1729 = vcvt.s32.f32 %v1339
        %v1730 = vcvt.s32.f32 %v1340
        %v1731 = vcvt.s32.f32 %v1341
        %v1732 = vcvt.s32.f32 %v1342
        %v1733 = vcvt.s32.f32 %v1343
        %v1734 = vcvt.s32.f32 %v1344
        %v1735 = vcvt.s32.f32 %v1345
        %v1736 = vsub.f32 %v1704, %v1543
        %v1737 = vsub.f32 %v1705, %v1543
        %v1738 = vsub.f32 %v1706, %v1543
        %v1739 = vsub.f32 %v1707, %v1543
        %v1740 = vsub.f32 %v1708, %v1543
        %v1741 = vsub.f32 %v1709, %v1543
        %v1742 = vsub.f32 %v1710, %v1543
        %v1743 = vsub.f32 %v1711, %v1543
        %v1744 = vsub.f32 %v1712, %v1543
        %v1745 = vsub.f32 %v1713, %v1543
        %v1746 = vsub.f32 %v1714, %v1543
        %v1747 = vsub.f32 %v1715, %v1543
        %v1748 = vsub.f32 %v1716, %v1543
        %v1749 = vsub.f32 %v1717, %v1543
        %v1750 = vsub.f32 %v1718, %v1543
        %v1751 = vsub.f32 %v1719, %v1543
        %v1752 = vsub.f32 %v1720, %v1543
        %v1753 = vsub.f32 %v1721, %v1543
        %v1754 = vsub.f32 %v1722, %v1543
        %v1755 = vsub.f32 %v1723, %v1543
        %v1756 = vsub.f32 %v1724, %v1543
        %v1757 = vsub.f32 %v1725, %v1543
        %v1758 = vsub.f32 %v1726, %v1543
        %v1759 = vsub.f32 %v1727, %v1543
        %v1760 = vsub.f32 %v1728, %v1543
        %v1761 = vsub.f32 %v1729, %v1543
        %v1762 = vsub.f32 %v1730, %v1543
        %v1763 = vsub.f32 %v1731, %v1543
        %v1764 = vsub.f32 %v1732, %v1543
        %v1765 = vsub.f32 %v1733, %v1543
        %v1766 = vsub.f32 %v1734, %v1543
        %v1767 = vsub.f32 %v1735, %v1543
        %v1768 = vand.u32 2147483647, %v1736
        %v1769 = vand.u32 2147483647, %v1737
        %v1770 = vand.u32 2147483647, %v1738
        %v1771 = vand.u32 2147483647, %v1739
        %v1772 = vand.u32 2147483647, %v1740
        %v1773 = vand.u32 2147483647, %v1741
        %v1774 = vand.u32 2147483647, %v1742
        %v1775 = vand.u32 2147483647, %v1743
        %v1776 = vand.u32 2147483647, %v1744
        %v1777 = vand.u32 2147483647, %v1745
        %v1778 = vand.u32 2147483647, %v1746
        %v1779 = vand.u32 2147483647, %v1747
        %v1780 = vand.u32 2147483647, %v1748
        %v1781 = vand.u32 2147483647, %v1749
        %v1782 = vand.u32 2147483647, %v1750
        %v1783 = vand.u32 2147483647, %v1751
        %v1784 = vand.u32 2147483647, %v1752
        %v1785 = vand.u32 2147483647, %v1753
        %v1786 = vand.u32 2147483647, %v1754
        %v1787 = vand.u32 2147483647, %v1755
        %v1788 = vand.u32 2147483647, %v1756
        %v1789 = vand.u32 2147483647, %v1757
        %v1790 = vand.u32 2147483647, %v1758
        %v1791 = vand.u32 2147483647, %v1759
        %v1792 = vand.u32 2147483647, %v1760
        %v1793 = vand.u32 2147483647, %v1761
        %v1794 = vand.u32 2147483647, %v1762
        %v1795 = vand.u32 2147483647, %v1763
        %v1796 = vand.u32 2147483647, %v1764
        %v1797 = vand.u32 2147483647, %v1765
        %v1798 = vand.u32 2147483647, %v1766
        %v1799 = vand.u32 2147483647, %v1767
        %v1800 = vsub.f32 1.0, %v1768
        %v1801 = vsub.f32 1.0, %v1769
        %v1802 = vsub.f32 1.0, %v1770
        %v1803 = vsub.f32 1.0, %v1771
        %v1804 = vsub.f32 1.0, %v1772
        %v1805 = vsub.f32 1.0, %v1773
        %v1806 = vsub.f32 1.0, %v1774
        %v1807 = vsub.f32 1.0, %v1775
        %v1808 = vsub.f32 1.0, %v1776
        %v1809 = vsub.f32 1.0, %v1777
        %v1810 = vsub.f32 1.0, %v1778
        %v1811 = vsub.f32 1.0, %v1779
        %v1812 = vsub.f32 1.0, %v1780
        %v1813 = vsub.f32 1.0, %v1781
        %v1814 = vsub.f32 1.0, %v1782
        %v1815 = vsub.f32 1.0, %v1783
        %v1816 = vsub.f32 1.0, %v1784
        %v1817 = vsub.f32 1.0, %v1785
        %v1818 = vsub.f32 1.0, %v1786
        %v1819 = vsub.f32 1.0, %v1787
        %v1820 = vsub.f32 1.0, %v1788
        %v1821 = vsub.f32 1.0, %v1789
        %v1822 = vsub.f32 1.0, %v1790
        %v1823 = vsub.f32 1.0, %v1791
        %v1824 = vsub.f32 1.0, %v1792
        %v1825 = vsub.f32 1.0, %v1793
        %v1826 = vsub.f32 1.0, %v1794
        %v1827 = vsub.f32 1.0, %v1795
        %v1828 = vsub.f32 1.0, %v1796
        %v1829 = vsub.f32 1.0, %v1797
        %v1830 = vsub.f32 1.0, %v1798
        %v1831 = vsub.f32 1.0, %v1799
        %v1832 = vmax.f32 %v1800, 0.0
        %v1833 = vmax.f32 %v1801, 0.0
        %v1834 = vmax.f32 %v1802, 0.0
        %v1835 = vmax.f32 %v1803, 0.0
        %v1836 = vmax.f32 %v1804, 0.0
        %v1837 = vmax.f32 %v1805, 0.0
        %v1838 = vmax.f32 %v1806, 0.0
        %v1839 = vmax.f32 %v1807, 0.0
        %v1840 = vmax.f32 %v1808, 0.0
        %v1841 = vmax.f32 %v1809, 0.0
        %v1842 = vmax.f32 %v1810, 0.0
        %v1843 = vmax.f32 %v1811, 0.0
        %v1844 = vmax.f32 %v1812, 0.0
        %v1845 = vmax.f32 %v1813, 0.0
        %v1846 = vmax.f32 %v1814, 0.0
        %v1847 = vmax.f32 %v1815, 0.0
        %v1848 = vmax.f32 %v1816, 0.0
        %v1849 = vmax.f32 %v1817, 0.0
        %v1850 = vmax.f32 %v1818, 0.0
        %v1851 = vmax.f32 %v1819, 0.0
        %v1852 = vmax.f32 %v1820, 0.0
        %v1853 = vmax.f32 %v1821, 0.0
        %v1854 = vmax.f32 %v1822, 0.0
        %v1855 = vmax.f32 %v1823, 0.0
        %v1856 = vmax.f32 %v1824, 0.0
        %v1857 = vmax.f32 %v1825, 0.0
        %v1858 = vmax.f32 %v1826, 0.0
        %v1859 = vmax.f32 %v1827, 0.0
        %v1860 = vmax.f32 %v1828, 0.0
        %v1861 = vmax.f32 %v1829, 0.0
        %v1862 = vmax.f32 %v1830, 0.0
        %v1863 = vmax.f32 %v1831, 0.0
        %v1864 = vmul.f32 %v1672, %v1832
        %v1865 = vmul.f32 %v1673, %v1833
        %v1866 = vmul.f32 %v1674, %v1834
        %v1867 = vmul.f32 %v1675, %v1835
        %v1868 = vmul.f32 %v1676, %v1836
        %v1869 = vmul.f32 %v1677, %v1837
        %v1870 = vmul.f32 %v1678, %v1838
        %v1871 = vmul.f32 %v1679, %v1839
        %v1872 = vmul.f32 %v1680, %v1840
        %v1873 = vmul.f32 %v1681, %v1841
        %v1874 = vmul.f32 %v1682, %v1842
        %v1875 = vmul.f32 %v1683, %v1843
        %v1876 = vmul.f32 %v1684, %v1844
        %v1877 = vmul.f32 %v1685, %v1845
        %v1878 = vmul.f32 %v1686, %v1846
        %v1879 = vmul.f32 %v1687, %v1847
        %v1880 = vmul.f32 %v1688, %v1848
        %v1881 = vmul.f32 %v1689, %v1849
        %v1882 = vmul.f32 %v1690, %v1850
        %v1883 = vmul.f32 %v1691, %v1851
        %v1884 = vmul.f32 %v1692, %v1852
        %v1885 = vmul.f32 %v1693, %v1853
        %v1886 = vmul.f32 %v1694, %v1854
        %v1887 = vmul.f32 %v1695, %v1855
        %v1888 = vmul.f32 %v1696, %v1856
        %v1889 = vmul.f32 %v1697, %v1857
        %v1890 = vmul.f32 %v1698, %v1858
        %v1891 = vmul.f32 %v1699, %v1859
        %v1892 = vmul.f32 %v1700, %v1860
        %v1893 = vmul.f32 %v1701, %v1861
        %v1894 = vmul.f32 %v1702, %v1862
        %v1895 = vmul.f32 %v1703, %v1863
        %1896 = vmatpush.msra.mxu0 %v1523
        %1897 = vmatpush.msra.mxu0 %v1522
        %1898 = vmatpush.msra.mxu0 %v1521
        %1899 = vmatpush.msra.mxu0 %v1520
        %1900 = vmatpush.msra.mxu0 %v1519
        %1901 = vmatpush.msra.mxu0 %v1518
        %1902 = vmatpush.msra.mxu0 %v1517
        %1903 = vmatpush.msra.mxu0 %v1516
        %1904 = vmatpush.msra.mxu0 %v1515
        %1905 = vmatpush.msra.mxu0 %v1514
        %1906 = vmatpush.msra.mxu0 %v1513
        %1907 = vmatpush.msra.mxu0 %v1512
        %1908 = vmatpush.msra.mxu0 %v1511
        %1909 = vmatpush.msra.mxu0 %v1510
        %1910 = vmatpush.msra.mxu0 %v1509
        %1911 = vmatpush.msra.mxu0 %v1508
        %1912 = vmatmul.f32.gmra.mxu0 %v1247
        %v1913 = vpop.f32.mrf.mxu0
        %v1914 = vadd.f32 0.0, %v1913
        %1915 = vdwg.mxu0
        %1916 = vmatpush.msra.mxu0 %v1539
        %1917 = vmatpush.msra.mxu0 %v1538
        %1918 = vmatpush.msra.mxu0 %v1537
        %1919 = vmatpush.msra.mxu0 %v1536
        %1920 = vmatpush.msra.mxu0 %v1535
        %1921 = vmatpush.msra.mxu0 %v1534
        %1922 = vmatpush.msra.mxu0 %v1533
        %1923 = vmatpush.msra.mxu0 %v1532
        %1924 = vmatpush.msra.mxu0 %v1531
        %1925 = vmatpush.msra.mxu0 %v1530
        %1926 = vmatpush.msra.mxu0 %v1529
        %1927 = vmatpush.msra.mxu0 %v1528
        %1928 = vmatpush.msra.mxu0 %v1527
        %1929 = vmatpush.msra.mxu0 %v1526
        %1930 = vmatpush.msra.mxu0 %v1525
        %1931 = vmatpush.msra.mxu0 %v1524
        %1932 = vmatmul.f32.gmra.mxu0 %v1248
        %v1933 = vpop.f32.mrf.mxu0
        %v1934 = vadd.f32 %v1914, %v1933
        %1935 = vdwg.mxu0
        %1936 = vmatpush.msra.mxu0 %v1879
        %1937 = vmatpush.msra.mxu0 %v1878
        %1938 = vmatpush.msra.mxu0 %v1877
        %1939 = vmatpush.msra.mxu0 %v1876
        %1940 = vmatpush.msra.mxu0 %v1875
        %1941 = vmatpush.msra.mxu0 %v1874
        %1942 = vmatpush.msra.mxu0 %v1873
        %1943 = vmatpush.msra.mxu0 %v1872
        %1944 = vmatpush.msra.mxu0 %v1871
        %1945 = vmatpush.msra.mxu0 %v1870
        %1946 = vmatpush.msra.mxu0 %v1869
        %1947 = vmatpush.msra.mxu0 %v1868
        %1948 = vmatpush.msra.mxu0 %v1867
        %1949 = vmatpush.msra.mxu0 %v1866
        %1950 = vmatpush.msra.mxu0 %v1865
        %1951 = vmatpush.msra.mxu0 %v1864
        %1952 = vmatmul.f32.gmra.mxu0 %v1247
        %v1953 = vpop.f32.mrf.mxu0
        %v1954 = vadd.f32 0.0, %v1953
        %1955 = vdwg.mxu0
        %1956 = vmatpush.msra.mxu0 %v1895
        %1957 = vmatpush.msra.mxu0 %v1894
        %1958 = vmatpush.msra.mxu0 %v1893
        %1959 = vmatpush.msra.mxu0 %v1892
        %1960 = vmatpush.msra.mxu0 %v1891
        %1961 = vmatpush.msra.mxu0 %v1890
        %1962 = vmatpush.msra.mxu0 %v1889
        %1963 = vmatpush.msra.mxu0 %v1888
        %1964 = vmatpush.msra.mxu0 %v1887
        %1965 = vmatpush.msra.mxu0 %v1886
        %1966 = vmatpush.msra.mxu0 %v1885
        %1967 = vmatpush.msra.mxu0 %v1884
        %1968 = vmatpush.msra.mxu0 %v1883
        %1969 = vmatpush.msra.mxu0 %v1882
        %1970 = vmatpush.msra.mxu0 %v1881
        %1971 = vmatpush.msra.mxu0 %v1880
        %1972 = vmatmul.f32.gmra.mxu0 %v1248
        %v1973 = vpop.f32.mrf.mxu0
        %v1974 = vadd.f32 %v1954, %v1973
        %1975 = vdwg.mxu0
        %v1976 = vpack.c.bf16 %v1934, %v1934
        %1977 = vst [vmem:[#allocation2] sm:$0xff] 0
        %1978 = vst [vmem:[#allocation2 + $0x8] sm:$0xff] 0
        %1979 = vst [vmem:[#allocation2 + $0x10] sm:$0xff] 0
        %1980 = vst [vmem:[#allocation2 + $0x18] sm:$0xff] 0
        %vm1981 = vcmask 519168
        %1982 = vst.msk [vmem:[#allocation2 + $0x4] sm:$0xf] %vm1981, %v1976
        %vm1983 = vcmp.ge.s32.totalorder %v1347, 1
        %vm1984 = vcmp.le.s32.totalorder %v1347, 6
        %v1985 = vld [vmem:[#allocation2] sm:$0xff]
        %v1986 = vsel %vm1983, 1, 0
        %vm1987 = vcmp.eq.s32.totalorder %v1986, 1
        %vm1988 = vmpackc.low %vm1987, %vm1987
        %v1989 = vsel %vm1988, 65537, 0
        %1990 = vrot.lane.b32.xlu0 %v1989, 119
        %v1991 = vpop.permute.xlu0 %1990
        %v1992 = vrot.slane %v1991, 4
        %vm1993 = vcmask 973824
        %v1994 = vsel %vm1993, %v1992, %v1991
        %v1995 = vunpack.c.l.b16 %v1994
        %v1996 = vunpack.c.h.b16 %v1994
        %v1997 = vunpack.c.l.b16 0
        %v1998 = vunpack.c.h.b16 0
        %vm1999 = vcmp.ne.s32.totalorder %v1995, %v1997
        %vm2000 = vcmp.ne.s32.totalorder %v1996, %v1998
        %vm2001 = vmpackc.low %vm2000, %vm1999
        %v2002 = vsel %vm2001, %v1985, 0
        %v2003 = vld [vmem:[#allocation8] sm:$0xf]
        %s2004 = scalar_lea.vmem [#allocation8], 4
        %v2005 = vld [vmem:[%s2004] sm:$0xf]
        %v2007 = vunpack.c.l.b16 %v1985
        %v2008 = vunpack.c.h.b16 %v1985
        %v2009 = vpack.c.b16 %v2007, %v2007
        %v2010 = vpack.c.b16 %v2008, %v2008
        %2011 = vrot.lane.b32.xlu0 %v2009, 8
        %v2012 = vpop.permute.xlu0 %2011
        %2013 = vrot.lane.b32.xlu0 %v2010, 8
        %v2014 = vpop.permute.xlu0 %2013
        %vm2015 = vcmask 64512
        %v2016 = vsel %vm2015, %v2012, %v2014
        %vm2017 = vcmask 64512
        %v2019 = vsel %vm2017, %v2005, 0
        %vm2021 = vcmask 1043456
        %v2023 = vsel %vm2021, %v2016, 0
        %2025 = vmatpush.bf16.msra.mxu0 0
        %2026 = vmatpush.bf16.msra.mxu0 0
        %2027 = vmatpush.bf16.msra.mxu0 0
        %2028 = vmatpush.bf16.msra.mxu0 0
        %2029 = vmatpush.bf16.msra.mxu0 0
        %2030 = vmatpush.bf16.msra.mxu0 0
        %2031 = vmatpush.bf16.msra.mxu0 0
        %2032 = vmatpush.bf16.msra.mxu0 %v2023
        %2033 = vmatmul.bf16.gmra.mxu0 %v2019
        %v2034 = vpop.f32.mrf.mxu0
        %v2035 = vadd.f32 0.0, %v2034
        %v2036 = vpop.f32.mrf.mxu0
        %2037 = vdwg.mxu0
        %v2039 = vunpack.c.l.b16 %v2002
        %v2040 = vunpack.c.h.b16 %v2002
        %v2041 = vpack.c.b16 %v2039, %v2039
        %v2042 = vpack.c.b16 %v2040, %v2040
        %2043 = vrot.lane.b32.xlu0 %v2041, 9
        %v2044 = vpop.permute.xlu0 %2043
        %2045 = vrot.lane.b32.xlu0 %v2042, 9
        %v2046 = vpop.permute.xlu0 %2045
        %vm2047 = vcmask 72704
        %v2048 = vsel %vm2047, %v2044, %v2046
        %v2050 = vsel %vm2017, %v2003, 0
        %v2053 = vsel %vm2021, %v2048, 0
        %2055 = vmatpush.bf16.msra.mxu0 0
        %2056 = vmatpush.bf16.msra.mxu0 0
        %2057 = vmatpush.bf16.msra.mxu0 0
        %2058 = vmatpush.bf16.msra.mxu0 0
        %2059 = vmatpush.bf16.msra.mxu0 0
        %2060 = vmatpush.bf16.msra.mxu0 0
        %2061 = vmatpush.bf16.msra.mxu0 0
        %2062 = vmatpush.bf16.msra.mxu0 %v2053
        %2063 = vmatmul.bf16.gmra.mxu0 %v2050
        %v2064 = vpop.f32.mrf.mxu0
        %v2065 = vadd.f32 %v2035, %v2064
        %v2066 = vpop.f32.mrf.mxu0
        %2067 = vdwg.mxu0
        %v2068 = vsel %vm1984, 1, 0
        %vm2069 = vcmp.eq.s32.totalorder %v2068, 1
        %vm2070 = vmpackc.low %vm2069, %vm2069
        %v2071 = vsel %vm2070, 65537, 0
        %2072 = vrot.lane.b32.xlu0 %v2071, 121
        %v2073 = vpop.permute.xlu0 %2072
        %v2074 = vrot.slane %v2073, 4
        %vm2075 = vcmask 990208
        %v2076 = vsel %vm2075, %v2074, %v2073
        %v2077 = vunpack.c.l.b16 %v2076
        %v2078 = vunpack.c.h.b16 %v2076
        %v2079 = vunpack.c.l.b16 0
        %v2080 = vunpack.c.h.b16 0
        %vm2081 = vcmp.ne.s32.totalorder %v2077, %v2079
        %vm2082 = vcmp.ne.s32.totalorder %v2078, %v2080
        %vm2083 = vmpackc.low %vm2082, %vm2081
        %v2084 = vsel %vm2083, %v1985, 0
        %s2085 = scalar_lea.vmem [#allocation8], 8
        %v2086 = vld [vmem:[%s2085] sm:$0xf]
        %v2088 = vunpack.c.l.b16 %v2084
        %v2089 = vunpack.c.h.b16 %v2084
        %v2090 = vpack.c.b16 %v2088, %v2088
        %v2091 = vpack.c.b16 %v2089, %v2089
        %2092 = vrot.lane.b32.xlu0 %v2090, 7
        %v2093 = vpop.permute.xlu0 %2092
        %2094 = vrot.lane.b32.xlu0 %v2091, 7
        %v2095 = vpop.permute.xlu0 %2094
        %vm2096 = vcmask 56320
        %v2097 = vsel %vm2096, %v2093, %v2095
        %v2099 = vsel %vm2017, %v2086, 0
        %v2102 = vsel %vm2021, %v2097, 0
        %2104 = vmatpush.bf16.msra.mxu0 0
        %2105 = vmatpush.bf16.msra.mxu0 0
        %2106 = vmatpush.bf16.msra.mxu0 0
        %2107 = vmatpush.bf16.msra.mxu0 0
        %2108 = vmatpush.bf16.msra.mxu0 0
        %2109 = vmatpush.bf16.msra.mxu0 0
        %2110 = vmatpush.bf16.msra.mxu0 0
        %2111 = vmatpush.bf16.msra.mxu0 %v2102
        %2112 = vmatmul.bf16.gmra.mxu0 %v2099
        %v2113 = vpop.f32.mrf.mxu0
        %v2114 = vadd.f32 0.0, %v2113
        %v2115 = vpop.f32.mrf.mxu0
        %2116 = vdwg.mxu0
        %v2117 = vadd.f32 %v2065, %v2114
        %2118 = vrot.lane.b32.xlu0 %v1989, 127
        %v2119 = vpop.permute.xlu0 %2118
        %v2120 = vrot.slane %v2119, 4
        %v2121 = vsel %vm833, %v2120, %v2119
        %v2122 = vunpack.c.l.b16 %v2121
        %v2123 = vunpack.c.h.b16 %v2121
        %v2124 = vunpack.c.l.b16 0
        %v2125 = vunpack.c.h.b16 0
        %vm2126 = vcmp.ne.s32.totalorder %v2122, %v2124
        %vm2127 = vcmp.ne.s32.totalorder %v2123, %v2125
        %vm2128 = vmpackc.low %vm2127, %vm2126
        %v2129 = vsel %vm2128, %v1985, 0
        %s2130 = scalar_lea.vmem [#allocation8], 12
        %v2131 = vld [vmem:[%s2130] sm:$0xf]
        %v2133 = vunpack.c.l.b16 %v2129
        %v2134 = vunpack.c.h.b16 %v2129
        %v2135 = vpack.c.b16 %v2133, %v2133
        %v2136 = vpack.c.b16 %v2134, %v2134
        %2137 = vrot.lane.b32.xlu0 %v2135, 1
        %v2138 = vpop.permute.xlu0 %2137
        %2139 = vrot.lane.b32.xlu0 %v2136, 1
        %v2140 = vpop.permute.xlu0 %2139
        %v2141 = vsel %vm867, %v2138, %v2140
        %v2143 = vsel %vm2017, %v2131, 0
        %v2146 = vsel %vm2021, %v2141, 0
        %2148 = vmatpush.bf16.msra.mxu0 0
        %2149 = vmatpush.bf16.msra.mxu0 0
        %2150 = vmatpush.bf16.msra.mxu0 0
        %2151 = vmatpush.bf16.msra.mxu0 0
        %2152 = vmatpush.bf16.msra.mxu0 0
        %2153 = vmatpush.bf16.msra.mxu0 0
        %2154 = vmatpush.bf16.msra.mxu0 0
        %2155 = vmatpush.bf16.msra.mxu0 %v2146
        %2156 = vmatmul.bf16.gmra.mxu0 %v2143
        %v2157 = vpop.f32.mrf.mxu0
        %v2158 = vadd.f32 0.0, %v2157
        %v2159 = vpop.f32.mrf.mxu0
        %2160 = vdwg.mxu0
        %v2161 = vadd.f32 %v2117, %v2158
        %v2162 = vld [vmem:[#allocation2 + $0x4] sm:$0xf]
        %s2163 = scalar_lea.vmem [#allocation8], 16
        %v2164 = vld [vmem:[%s2163] sm:$0xf]
        %v2166 = vsel %vm2017, %v2164, 0
        %v2169 = vsel %vm2021, %v2162, 0
        %2171 = vmatpush.bf16.msra.mxu0 0
        %2172 = vmatpush.bf16.msra.mxu0 0
        %2173 = vmatpush.bf16.msra.mxu0 0
        %2174 = vmatpush.bf16.msra.mxu0 0
        %2175 = vmatpush.bf16.msra.mxu0 0
        %2176 = vmatpush.bf16.msra.mxu0 0
        %2177 = vmatpush.bf16.msra.mxu0 0
        %2178 = vmatpush.bf16.msra.mxu0 %v2169
        %2179 = vmatmul.bf16.gmra.mxu0 %v2166
        %v2180 = vpop.f32.mrf.mxu0
        %v2181 = vadd.f32 0.0, %v2180
        %v2182 = vpop.f32.mrf.mxu0
        %2183 = vdwg.mxu0
        %v2184 = vadd.f32 %v2161, %v2181
        %2185 = vrot.lane.b32.xlu0 %v2071, 1
        %v2186 = vpop.permute.xlu0 %2185
        %v2187 = vunpack.c.l.b16 %v2186
        %v2188 = vunpack.c.h.b16 %v2186
        %v2189 = vunpack.c.l.b16 0
        %v2190 = vunpack.c.h.b16 0
        %vm2191 = vcmp.ne.s32.totalorder %v2187, %v2189
        %vm2192 = vcmp.ne.s32.totalorder %v2188, %v2190
        %vm2193 = vmpackc.low %vm2192, %vm2191
        %v2194 = vsel %vm2193, %v2162, 0
        %s2195 = scalar_lea.vmem [#allocation8], 20
        %v2196 = vld [vmem:[%s2195] sm:$0xf]
        %v2198 = vunpack.c.l.b16 %v2194
        %v2199 = vpack.c.b16 %v2198, %v2198
        %2200 = vrot.lane.b32.xlu0 %v2199, 127
        %v2201 = vpop.permute.xlu0 %2200
        %v2203 = vsel %vm2017, %v2196, 0
        %v2206 = vsel %vm2021, %v2201, 0
        %2208 = vmatpush.bf16.msra.mxu0 0
        %2209 = vmatpush.bf16.msra.mxu0 0
        %2210 = vmatpush.bf16.msra.mxu0 0
        %2211 = vmatpush.bf16.msra.mxu0 0
        %2212 = vmatpush.bf16.msra.mxu0 0
        %2213 = vmatpush.bf16.msra.mxu0 0
        %2214 = vmatpush.bf16.msra.mxu0 0
        %2215 = vmatpush.bf16.msra.mxu0 %v2206
        %2216 = vmatmul.bf16.gmra.mxu0 %v2203
        %v2217 = vpop.f32.mrf.mxu0
        %v2218 = vadd.f32 0.0, %v2217
        %v2219 = vpop.f32.mrf.mxu0
        %2220 = vdwg.mxu0
        %v2221 = vadd.f32 %v2184, %v2218
        %2222 = vrot.lane.b32.xlu0 %v1989, 7
        %v2223 = vpop.permute.xlu0 %2222
        %v2224 = vunpack.c.l.b16 %v2223
        %v2225 = vunpack.c.h.b16 %v2223
        %v2226 = vunpack.c.l.b16 0
        %v2227 = vunpack.c.h.b16 0
        %vm2228 = vcmp.ne.s32.totalorder %v2224, %v2226
        %vm2229 = vcmp.ne.s32.totalorder %v2225, %v2227
        %vm2230 = vmpackc.low %vm2229, %vm2228
        %v2231 = vsel %vm2230, %v2162, 0
        %s2232 = scalar_lea.vmem [#allocation8], 24
        %v2233 = vld [vmem:[%s2232] sm:$0xf]
        %v2235 = vunpack.c.l.b16 %v2231
        %v2236 = vpack.c.b16 %v2235, %v2235
        %2237 = vrot.lane.b32.xlu0 %v2236, 121
        %v2238 = vpop.permute.xlu0 %2237
        %v2240 = vsel %vm2017, %v2233, 0
        %v2243 = vsel %vm2021, %v2238, 0
        %2245 = vmatpush.bf16.msra.mxu0 0
        %2246 = vmatpush.bf16.msra.mxu0 0
        %2247 = vmatpush.bf16.msra.mxu0 0
        %2248 = vmatpush.bf16.msra.mxu0 0
        %2249 = vmatpush.bf16.msra.mxu0 0
        %2250 = vmatpush.bf16.msra.mxu0 0
        %2251 = vmatpush.bf16.msra.mxu0 0
        %2252 = vmatpush.bf16.msra.mxu0 %v2243
        %2253 = vmatmul.bf16.gmra.mxu0 %v2240
        %v2254 = vpop.f32.mrf.mxu0
        %v2255 = vadd.f32 0.0, %v2254
        %v2256 = vpop.f32.mrf.mxu0
        %2257 = vdwg.mxu0
        %v2258 = vadd.f32 %v2221, %v2255
        %s2259 = scalar_lea.vmem [#allocation8], 28
        %v2260 = vld [vmem:[%s2259] sm:$0xf]
        %v2262 = vunpack.c.l.b16 %v2162
        %v2263 = vpack.c.b16 %v2262, %v2262
        %2264 = vrot.lane.b32.xlu0 %v2263, 120
        %v2265 = vpop.permute.xlu0 %2264
        %v2267 = vsel %vm2017, %v2260, 0
        %v2270 = vsel %vm2021, %v2265, 0
        %2272 = vmatpush.bf16.msra.mxu0 0
        %2273 = vmatpush.bf16.msra.mxu0 0
        %2274 = vmatpush.bf16.msra.mxu0 0
        %2275 = vmatpush.bf16.msra.mxu0 0
        %2276 = vmatpush.bf16.msra.mxu0 0
        %2277 = vmatpush.bf16.msra.mxu0 0
        %2278 = vmatpush.bf16.msra.mxu0 0
        %2279 = vmatpush.bf16.msra.mxu0 %v2270
        %2280 = vmatmul.bf16.gmra.mxu0 %v2267
        %v2281 = vpop.f32.mrf.mxu0
        %v2282 = vadd.f32 0.0, %v2281
        %v2283 = vpop.f32.mrf.mxu0
        %2284 = vdwg.mxu0
        %v2285 = vadd.f32 %v2258, %v2282
        %2286 = vrot.lane.b32.xlu0 %v2071, 9
        %v2287 = vpop.permute.xlu0 %2286
        %v2288 = vunpack.c.l.b16 %v2287
        %v2289 = vunpack.c.h.b16 %v2287
        %v2290 = vunpack.c.l.b16 0
        %v2291 = vunpack.c.h.b16 0
        %vm2292 = vcmp.ne.s32.totalorder %v2288, %v2290
        %vm2293 = vcmp.ne.s32.totalorder %v2289, %v2291
        %vm2294 = vmpackc.low %vm2293, %vm2292
        %v2295 = vsel %vm2294, %v2162, 0
        %s2296 = scalar_lea.vmem [#allocation8], 32
        %v2297 = vld [vmem:[%s2296] sm:$0xf]
        %v2299 = vunpack.c.l.b16 %v2295
        %v2300 = vpack.c.b16 %v2299, %v2299
        %2301 = vrot.lane.b32.xlu0 %v2300, 119
        %v2302 = vpop.permute.xlu0 %2301
        %v2304 = vsel %vm2017, %v2297, 0
        %v2307 = vsel %vm2021, %v2302, 0
        %2309 = vmatpush.bf16.msra.mxu0 0
        %2310 = vmatpush.bf16.msra.mxu0 0
        %2311 = vmatpush.bf16.msra.mxu0 0
        %2312 = vmatpush.bf16.msra.mxu0 0
        %2313 = vmatpush.bf16.msra.mxu0 0
        %2314 = vmatpush.bf16.msra.mxu0 0
        %2315 = vmatpush.bf16.msra.mxu0 0
        %2316 = vmatpush.bf16.msra.mxu0 %v2307
        %2317 = vmatmul.bf16.gmra.mxu0 %v2304
        %v2318 = vpop.f32.mrf.mxu0
        %v2319 = vadd.f32 0.0, %v2318
        %v2320 = vpop.f32.mrf.mxu0
        %2321 = vdwg.mxu0
        %v2322 = vadd.f32 %v2285, %v2319
        %v2323 = vld [vmem:[#allocation9] sm:$0xff]
        %2325 = vset.pattern.permute.xlu0 0
        %2326 = vperm.xlu0 %2325, %v2323
        %v2327 = vpop.permute.xlu0 %2326
        %v2329 = vadd.f32 %v2322, %v2327
        %vm2330 = vcmp.ge.f32.partialorder %v2329, 0.0
        %v2331 = vmul.f32 %v2329, 0.2
        %v2332 = vsel %vm2330, %v2329, %v2331
        %v2333 = vadd.f32 %v2332, %v1974
        %v2334 = vpack.c.bf16 %v2333, %v2333
        %2335 = vst [vmem:[#allocation2] sm:$0xff] 0
        %2336 = vst [vmem:[#allocation2 + $0x8] sm:$0xff] 0
        %2337 = vst [vmem:[#allocation2 + $0x10] sm:$0xff] 0
        %2338 = vst [vmem:[#allocation2 + $0x18] sm:$0xff] 0
        %2339 = vst.msk [vmem:[#allocation2 + $0x4] sm:$0xf] %vm1981, %v2334
        %v2340 = vld [vmem:[#allocation2] sm:$0xff]
        %v2341 = vsel %vm2001, %v2340, 0
        %v2342 = vld [vmem:[%s5] sm:$0xf]
        %v2343 = vld [vmem:[%s5 + $0x4] sm:$0xf]
        %s2344 = scalar_lea.vmem %s5, 8
        %v2345 = vld [vmem:[%s2344] sm:$0xf]
        %v2346 = vld [vmem:[%s2344 + $0x4] sm:$0xf]
        %v2349 = vunpack.c.l.b16 %v2345
        %v2350 = vunpack.c.l.b16 %v2346
        %v2351 = vpack.c.b16 %v2350, %v2349
        %v2353 = vunpack.c.l.b16 %v2340
        %v2354 = vunpack.c.h.b16 %v2340
        %v2355 = vpack.c.b16 %v2353, %v2353
        %v2356 = vpack.c.b16 %v2354, %v2354
        %2357 = vrot.lane.b32.xlu0 %v2355, 8
        %v2358 = vpop.permute.xlu0 %2357
        %2359 = vrot.lane.b32.xlu0 %v2356, 8
        %v2360 = vpop.permute.xlu0 %2359
        %v2361 = vsel %vm2015, %v2358, %v2360
        %v2363 = vsel %vm2017, %v2351, 0
        %v2366 = vsel %vm2021, %v2361, 0
        %2368 = vmatpush.bf16.msra.mxu0 0
        %2369 = vmatpush.bf16.msra.mxu0 0
        %2370 = vmatpush.bf16.msra.mxu0 0
        %2371 = vmatpush.bf16.msra.mxu0 0
        %2372 = vmatpush.bf16.msra.mxu0 0
        %2373 = vmatpush.bf16.msra.mxu0 0
        %2374 = vmatpush.bf16.msra.mxu0 0
        %2375 = vmatpush.bf16.msra.mxu0 %v2366
        %2376 = vmatmul.bf16.gmra.mxu0 %v2363
        %v2377 = vpop.f32.mrf.mxu0
        %v2378 = vadd.f32 0.0, %v2377
        %v2379 = vpop.f32.mrf.mxu0
        %v2380 = vadd.f32 0.0, %v2379
        %2381 = vdwg.mxu0
        %v2384 = vunpack.c.l.b16 %v2342
        %v2385 = vunpack.c.l.b16 %v2343
        %v2386 = vpack.c.b16 %v2385, %v2384
        %v2388 = vunpack.c.l.b16 %v2341
        %v2389 = vunpack.c.h.b16 %v2341
        %v2390 = vpack.c.b16 %v2388, %v2388
        %v2391 = vpack.c.b16 %v2389, %v2389
        %2392 = vrot.lane.b32.xlu0 %v2390, 9
        %v2393 = vpop.permute.xlu0 %2392
        %2394 = vrot.lane.b32.xlu0 %v2391, 9
        %v2395 = vpop.permute.xlu0 %2394
        %v2396 = vsel %vm2047, %v2393, %v2395
        %v2398 = vsel %vm2017, %v2386, 0
        %v2401 = vsel %vm2021, %v2396, 0
        %2403 = vmatpush.bf16.msra.mxu0 0
        %2404 = vmatpush.bf16.msra.mxu0 0
        %2405 = vmatpush.bf16.msra.mxu0 0
        %2406 = vmatpush.bf16.msra.mxu0 0
        %2407 = vmatpush.bf16.msra.mxu0 0
        %2408 = vmatpush.bf16.msra.mxu0 0
        %2409 = vmatpush.bf16.msra.mxu0 0
        %2410 = vmatpush.bf16.msra.mxu0 %v2401
        %2411 = vmatmul.bf16.gmra.mxu0 %v2398
        %v2412 = vpop.f32.mrf.mxu0
        %v2413 = vadd.f32 %v2378, %v2412
        %v2414 = vpop.f32.mrf.mxu0
        %v2415 = vadd.f32 %v2380, %v2414
        %2416 = vdwg.mxu0
        %v2417 = vsel %vm2083, %v2340, 0
        %s2418 = scalar_lea.vmem %s5, 16
        %v2419 = vld [vmem:[%s2418] sm:$0xf]
        %v2420 = vld [vmem:[%s2418 + $0x4] sm:$0xf]
        %v2423 = vunpack.c.l.b16 %v2419
        %v2424 = vunpack.c.l.b16 %v2420
        %v2425 = vpack.c.b16 %v2424, %v2423
        %v2427 = vunpack.c.l.b16 %v2417
        %v2428 = vunpack.c.h.b16 %v2417
        %v2429 = vpack.c.b16 %v2427, %v2427
        %v2430 = vpack.c.b16 %v2428, %v2428
        %2431 = vrot.lane.b32.xlu0 %v2429, 7
        %v2432 = vpop.permute.xlu0 %2431
        %2433 = vrot.lane.b32.xlu0 %v2430, 7
        %v2434 = vpop.permute.xlu0 %2433
        %v2435 = vsel %vm2096, %v2432, %v2434
        %v2437 = vsel %vm2017, %v2425, 0
        %v2440 = vsel %vm2021, %v2435, 0
        %2442 = vmatpush.bf16.msra.mxu0 0
        %2443 = vmatpush.bf16.msra.mxu0 0
        %2444 = vmatpush.bf16.msra.mxu0 0
        %2445 = vmatpush.bf16.msra.mxu0 0
        %2446 = vmatpush.bf16.msra.mxu0 0
        %2447 = vmatpush.bf16.msra.mxu0 0
        %2448 = vmatpush.bf16.msra.mxu0 0
        %2449 = vmatpush.bf16.msra.mxu0 %v2440
        %2450 = vmatmul.bf16.gmra.mxu0 %v2437
        %v2451 = vpop.f32.mrf.mxu0
        %v2452 = vadd.f32 0.0, %v2451
        %v2453 = vpop.f32.mrf.mxu0
        %v2454 = vadd.f32 0.0, %v2453
        %2455 = vdwg.mxu0
        %v2456 = vadd.f32 %v2413, %v2452
        %v2457 = vadd.f32 %v2415, %v2454
        %v2458 = vsel %vm2128, %v2340, 0
        %s2459 = scalar_lea.vmem %s5, 24
        %v2460 = vld [vmem:[%s2459] sm:$0xf]
        %v2461 = vld [vmem:[%s2459 + $0x4] sm:$0xf]
        %v2464 = vunpack.c.l.b16 %v2460
        %v2465 = vunpack.c.l.b16 %v2461
        %v2466 = vpack.c.b16 %v2465, %v2464
        %v2468 = vunpack.c.l.b16 %v2458
        %v2469 = vunpack.c.h.b16 %v2458
        %v2470 = vpack.c.b16 %v2468, %v2468
        %v2471 = vpack.c.b16 %v2469, %v2469
        %2472 = vrot.lane.b32.xlu0 %v2470, 1
        %v2473 = vpop.permute.xlu0 %2472
        %2474 = vrot.lane.b32.xlu0 %v2471, 1
        %v2475 = vpop.permute.xlu0 %2474
        %v2476 = vsel %vm867, %v2473, %v2475
        %v2478 = vsel %vm2017, %v2466, 0
        %v2481 = vsel %vm2021, %v2476, 0
        %2483 = vmatpush.bf16.msra.mxu0 0
        %2484 = vmatpush.bf16.msra.mxu0 0
        %2485 = vmatpush.bf16.msra.mxu0 0
        %2486 = vmatpush.bf16.msra.mxu0 0
        %2487 = vmatpush.bf16.msra.mxu0 0
        %2488 = vmatpush.bf16.msra.mxu0 0
        %2489 = vmatpush.bf16.msra.mxu0 0
        %2490 = vmatpush.bf16.msra.mxu0 %v2481
        %2491 = vmatmul.bf16.gmra.mxu0 %v2478
        %v2492 = vpop.f32.mrf.mxu0
        %v2493 = vadd.f32 0.0, %v2492
        %v2494 = vpop.f32.mrf.mxu0
        %v2495 = vadd.f32 0.0, %v2494
        %2496 = vdwg.mxu0
        %v2497 = vadd.f32 %v2456, %v2493
        %v2498 = vadd.f32 %v2457, %v2495
        %v2499 = vld [vmem:[#allocation2 + $0x4] sm:$0xf]
        %s2500 = scalar_lea.vmem %s5, 32
        %v2501 = vld [vmem:[%s2500] sm:$0xf]
        %v2502 = vld [vmem:[%s2500 + $0x4] sm:$0xf]
        %v2505 = vunpack.c.l.b16 %v2501
        %v2506 = vunpack.c.l.b16 %v2502
        %v2507 = vpack.c.b16 %v2506, %v2505
        %v2509 = vsel %vm2017, %v2507, 0
        %v2512 = vsel %vm2021, %v2499, 0
        %2514 = vmatpush.bf16.msra.mxu0 0
        %2515 = vmatpush.bf16.msra.mxu0 0
        %2516 = vmatpush.bf16.msra.mxu0 0
        %2517 = vmatpush.bf16.msra.mxu0 0
        %2518 = vmatpush.bf16.msra.mxu0 0
        %2519 = vmatpush.bf16.msra.mxu0 0
        %2520 = vmatpush.bf16.msra.mxu0 0
        %2521 = vmatpush.bf16.msra.mxu0 %v2512
        %2522 = vmatmul.bf16.gmra.mxu0 %v2509
        %v2523 = vpop.f32.mrf.mxu0
        %v2524 = vadd.f32 0.0, %v2523
        %v2525 = vpop.f32.mrf.mxu0
        %v2526 = vadd.f32 0.0, %v2525
        %2527 = vdwg.mxu0
        %v2528 = vadd.f32 %v2497, %v2524
        %v2529 = vadd.f32 %v2498, %v2526
        %v2530 = vsel %vm2193, %v2499, 0
        %s2531 = scalar_lea.vmem %s5, 40
        %v2532 = vld [vmem:[%s2531] sm:$0xf]
        %v2533 = vld [vmem:[%s2531 + $0x4] sm:$0xf]
        %v2536 = vunpack.c.l.b16 %v2532
        %v2537 = vunpack.c.l.b16 %v2533
        %v2538 = vpack.c.b16 %v2537, %v2536
        %v2540 = vunpack.c.l.b16 %v2530
        %v2541 = vpack.c.b16 %v2540, %v2540
        %2542 = vrot.lane.b32.xlu0 %v2541, 127
        %v2543 = vpop.permute.xlu0 %2542
        %v2545 = vsel %vm2017, %v2538, 0
        %v2548 = vsel %vm2021, %v2543, 0
        %2550 = vmatpush.bf16.msra.mxu0 0
        %2551 = vmatpush.bf16.msra.mxu0 0
        %2552 = vmatpush.bf16.msra.mxu0 0
        %2553 = vmatpush.bf16.msra.mxu0 0
        %2554 = vmatpush.bf16.msra.mxu0 0
        %2555 = vmatpush.bf16.msra.mxu0 0
        %2556 = vmatpush.bf16.msra.mxu0 0
        %2557 = vmatpush.bf16.msra.mxu0 %v2548
        %2558 = vmatmul.bf16.gmra.mxu0 %v2545
        %v2559 = vpop.f32.mrf.mxu0
        %v2560 = vadd.f32 0.0, %v2559
        %v2561 = vpop.f32.mrf.mxu0
        %v2562 = vadd.f32 0.0, %v2561
        %2563 = vdwg.mxu0
        %v2564 = vadd.f32 %v2528, %v2560
        %v2565 = vadd.f32 %v2529, %v2562
        %v2566 = vsel %vm2230, %v2499, 0
        %s2567 = scalar_lea.vmem %s5, 48
        %v2568 = vld [vmem:[%s2567] sm:$0xf]
        %v2569 = vld [vmem:[%s2567 + $0x4] sm:$0xf]
        %v2572 = vunpack.c.l.b16 %v2568
        %v2573 = vunpack.c.l.b16 %v2569
        %v2574 = vpack.c.b16 %v2573, %v2572
        %v2576 = vunpack.c.l.b16 %v2566
        %v2577 = vpack.c.b16 %v2576, %v2576
        %2578 = vrot.lane.b32.xlu0 %v2577, 121
        %v2579 = vpop.permute.xlu0 %2578
        %v2581 = vsel %vm2017, %v2574, 0
        %v2584 = vsel %vm2021, %v2579, 0
        %2586 = vmatpush.bf16.msra.mxu0 0
        %2587 = vmatpush.bf16.msra.mxu0 0
        %2588 = vmatpush.bf16.msra.mxu0 0
        %2589 = vmatpush.bf16.msra.mxu0 0
        %2590 = vmatpush.bf16.msra.mxu0 0
        %2591 = vmatpush.bf16.msra.mxu0 0
        %2592 = vmatpush.bf16.msra.mxu0 0
        %2593 = vmatpush.bf16.msra.mxu0 %v2584
        %2594 = vmatmul.bf16.gmra.mxu0 %v2581
        %v2595 = vpop.f32.mrf.mxu0
        %v2596 = vadd.f32 0.0, %v2595
        %v2597 = vpop.f32.mrf.mxu0
        %v2598 = vadd.f32 0.0, %v2597
        %2599 = vdwg.mxu0
        %v2600 = vadd.f32 %v2564, %v2596
        %v2601 = vadd.f32 %v2565, %v2598
        %s2602 = scalar_lea.vmem %s5, 56
        %v2603 = vld [vmem:[%s2602] sm:$0xf]
        %v2604 = vld [vmem:[%s2602 + $0x4] sm:$0xf]
        %v2607 = vunpack.c.l.b16 %v2603
        %v2608 = vunpack.c.l.b16 %v2604
        %v2609 = vpack.c.b16 %v2608, %v2607
        %v2611 = vunpack.c.l.b16 %v2499
        %v2612 = vpack.c.b16 %v2611, %v2611
        %2613 = vrot.lane.b32.xlu0 %v2612, 120
        %v2614 = vpop.permute.xlu0 %2613
        %v2616 = vsel %vm2017, %v2609, 0
        %v2619 = vsel %vm2021, %v2614, 0
        %2621 = vmatpush.bf16.msra.mxu0 0
        %2622 = vmatpush.bf16.msra.mxu0 0
        %2623 = vmatpush.bf16.msra.mxu0 0
        %2624 = vmatpush.bf16.msra.mxu0 0
        %2625 = vmatpush.bf16.msra.mxu0 0
        %2626 = vmatpush.bf16.msra.mxu0 0
        %2627 = vmatpush.bf16.msra.mxu0 0
        %2628 = vmatpush.bf16.msra.mxu0 %v2619
        %2629 = vmatmul.bf16.gmra.mxu0 %v2616
        %v2630 = vpop.f32.mrf.mxu0
        %v2631 = vadd.f32 0.0, %v2630
        %v2632 = vpop.f32.mrf.mxu0
        %v2633 = vadd.f32 0.0, %v2632
        %2634 = vdwg.mxu0
        %v2635 = vadd.f32 %v2600, %v2631
        %v2636 = vadd.f32 %v2601, %v2633
        %v2637 = vsel %vm2294, %v2499, 0
        %s2638 = scalar_lea.vmem %s5, 64
        %v2639 = vld [vmem:[%s2638] sm:$0xf]
        %v2640 = vld [vmem:[%s2638 + $0x4] sm:$0xf]
        %v2643 = vunpack.c.l.b16 %v2639
        %v2644 = vunpack.c.l.b16 %v2640
        %v2645 = vpack.c.b16 %v2644, %v2643
        %v2647 = vunpack.c.l.b16 %v2637
        %v2648 = vpack.c.b16 %v2647, %v2647
        %2649 = vrot.lane.b32.xlu0 %v2648, 119
        %v2650 = vpop.permute.xlu0 %2649
        %v2652 = vsel %vm2017, %v2645, 0
        %v2655 = vsel %vm2021, %v2650, 0
        %2657 = vmatpush.bf16.msra.mxu0 0
        %2658 = vmatpush.bf16.msra.mxu0 0
        %2659 = vmatpush.bf16.msra.mxu0 0
        %2660 = vmatpush.bf16.msra.mxu0 0
        %2661 = vmatpush.bf16.msra.mxu0 0
        %2662 = vmatpush.bf16.msra.mxu0 0
        %2663 = vmatpush.bf16.msra.mxu0 0
        %2664 = vmatpush.bf16.msra.mxu0 %v2655
        %2665 = vmatmul.bf16.gmra.mxu0 %v2652
        %v2666 = vpop.f32.mrf.mxu0
        %v2667 = vadd.f32 0.0, %v2666
        %v2668 = vpop.f32.mrf.mxu0
        %v2669 = vadd.f32 0.0, %v2668
        %2670 = vdwg.mxu0
        %v2671 = vadd.f32 %v2635, %v2667
        %v2672 = vadd.f32 %v2636, %v2669
        %v2673 = vld [vmem:[#allocation11] sm:$0xff]
        %v2674 = vld [vmem:[#allocation11 + $0x8] sm:$0xff]
        %2676 = vset.pattern.permute.xlu0 0
        %2677 = vperm.xlu0 %2676, %v2673
        %v2678 = vpop.permute.xlu0 %2677
        %2681 = vset.pattern.permute.xlu0 0
        %2682 = vperm.xlu0 %2681, %v2674
        %v2683 = vpop.permute.xlu0 %2682
        %v2685 = vadd.f32 %v2671, %v2678
        %v2686 = vadd.f32 %v2672, %v2683
        %vm2687 = vcmp.ge.f32.partialorder %v2685, 0.0
        %vm2688 = vcmp.ge.f32.partialorder %v2686, 0.0
        %v2689 = vmul.f32 %v2685, 0.2
        %v2690 = vmul.f32 %v2686, 0.2
        %v2691 = vsel %vm2687, %v2685, %v2689
        %v2692 = vsel %vm2688, %v2686, %v2690
        %v2693 = vshra.s32 %v1250, 3
        %v2694 = vshra.s32 %v1251, 3
        %v2695 = vshra.s32 %v1252, 3
        %v2696 = vshra.s32 %v1253, 3
        %v2697 = vshra.s32 %v1254, 3
        %v2698 = vshra.s32 %v1255, 3
        %v2699 = vshra.s32 %v1256, 3
        %v2700 = vshra.s32 %v1257, 3
        %v2701 = vand.u32 %v1250, 7
        %v2702 = vand.u32 %v1251, 7
        %v2703 = vand.u32 %v1252, 7
        %v2704 = vand.u32 %v1253, 7
        %v2705 = vand.u32 %v1254, 7
        %v2706 = vand.u32 %v1255, 7
        %v2707 = vand.u32 %v1256, 7
        %v2708 = vand.u32 %v1257, 7
        %v2709 = vshra.s32 %v601, 2
        %v2710 = vand.u32 %v601, 3
        %v2711 = vshra.s32 %v2693, 1
        %v2712 = vshra.s32 %v2694, 1
        %v2713 = vshra.s32 %v2695, 1
        %v2714 = vshra.s32 %v2696, 1
        %v2715 = vshra.s32 %v2697, 1
        %v2716 = vshra.s32 %v2698, 1
        %v2717 = vshra.s32 %v2699, 1
        %v2718 = vshra.s32 %v2700, 1
        %vm2719 = vcmp.eq.s32.totalorder %v2711, %v2709
        %vm2720 = vcmp.eq.s32.totalorder %v2712, %v2709
        %vm2721 = vcmp.eq.s32.totalorder %v2713, %v2709
        %vm2722 = vcmp.eq.s32.totalorder %v2714, %v2709
        %vm2723 = vcmp.eq.s32.totalorder %v2715, %v2709
        %vm2724 = vcmp.eq.s32.totalorder %v2716, %v2709
        %vm2725 = vcmp.eq.s32.totalorder %v2717, %v2709
        %vm2726 = vcmp.eq.s32.totalorder %v2718, %v2709
        %v2727 = vshra.s32 %v2701, 1
        %v2728 = vshra.s32 %v2702, 1
        %v2729 = vshra.s32 %v2703, 1
        %v2730 = vshra.s32 %v2704, 1
        %v2731 = vshra.s32 %v2705, 1
        %v2732 = vshra.s32 %v2706, 1
        %v2733 = vshra.s32 %v2707, 1
        %v2734 = vshra.s32 %v2708, 1
        %vm2735 = vcmp.eq.s32.totalorder %v2727, %v2710
        %vm2736 = vcmp.eq.s32.totalorder %v2728, %v2710
        %vm2737 = vcmp.eq.s32.totalorder %v2729, %v2710
        %vm2738 = vcmp.eq.s32.totalorder %v2730, %v2710
        %vm2739 = vcmp.eq.s32.totalorder %v2731, %v2710
        %vm2740 = vcmp.eq.s32.totalorder %v2732, %v2710
        %vm2741 = vcmp.eq.s32.totalorder %v2733, %v2710
        %vm2742 = vcmp.eq.s32.totalorder %v2734, %v2710
        %vm2743 = vmand %vm2719, %vm2735
        %vm2744 = vmand %vm2720, %vm2736
        %vm2745 = vmand %vm2721, %vm2737
        %vm2746 = vmand %vm2722, %vm2738
        %vm2747 = vmand %vm2723, %vm2739
        %vm2748 = vmand %vm2724, %vm2740
        %vm2749 = vmand %vm2725, %vm2741
        %vm2750 = vmand %vm2726, %vm2742
        %v2751 = vsel %vm2743, 0.25, 0.0
        %v2752 = vsel %vm2744, 0.25, 0.0
        %v2753 = vsel %vm2745, 0.25, 0.0
        %v2754 = vsel %vm2746, 0.25, 0.0
        %v2755 = vsel %vm2747, 0.25, 0.0
        %v2756 = vsel %vm2748, 0.25, 0.0
        %v2757 = vsel %vm2749, 0.25, 0.0
        %v2758 = vsel %vm2750, 0.25, 0.0
        %v2759 = vcvt.s32.f32 %v2709
        %v2760 = vmul.f32 %v2759, 2.3333333
        %v2761 = vcvt.s32.f32 %v2710
        %v2762 = vmul.f32 %v2761, 2.3333333
        %v2763 = vcvt.s32.f32 %v2693
        %v2764 = vcvt.s32.f32 %v2694
        %v2765 = vcvt.s32.f32 %v2695
        %v2766 = vcvt.s32.f32 %v2696
        %v2767 = vcvt.s32.f32 %v2697
        %v2768 = vcvt.s32.f32 %v2698
        %v2769 = vcvt.s32.f32 %v2699
        %v2770 = vcvt.s32.f32 %v2700
        %v2771 = vsub.f32 %v2763, %v2760
        %v2772 = vsub.f32 %v2764, %v2760
        %v2773 = vsub.f32 %v2765, %v2760
        %v2774 = vsub.f32 %v2766, %v2760
        %v2775 = vsub.f32 %v2767, %v2760
        %v2776 = vsub.f32 %v2768, %v2760
        %v2777 = vsub.f32 %v2769, %v2760
        %v2778 = vsub.f32 %v2770, %v2760
        %v2779 = vand.u32 2147483647, %v2771
        %v2780 = vand.u32 2147483647, %v2772
        %v2781 = vand.u32 2147483647, %v2773
        %v2782 = vand.u32 2147483647, %v2774
        %v2783 = vand.u32 2147483647, %v2775
        %v2784 = vand.u32 2147483647, %v2776
        %v2785 = vand.u32 2147483647, %v2777
        %v2786 = vand.u32 2147483647, %v2778
        %v2787 = vsub.f32 1.0, %v2779
        %v2788 = vsub.f32 1.0, %v2780
        %v2789 = vsub.f32 1.0, %v2781
        %v2790 = vsub.f32 1.0, %v2782
        %v2791 = vsub.f32 1.0, %v2783
        %v2792 = vsub.f32 1.0, %v2784
        %v2793 = vsub.f32 1.0, %v2785
        %v2794 = vsub.f32 1.0, %v2786
        %v2795 = vmax.f32 %v2787, 0.0
        %v2796 = vmax.f32 %v2788, 0.0
        %v2797 = vmax.f32 %v2789, 0.0
        %v2798 = vmax.f32 %v2790, 0.0
        %v2799 = vmax.f32 %v2791, 0.0
        %v2800 = vmax.f32 %v2792, 0.0
        %v2801 = vmax.f32 %v2793, 0.0
        %v2802 = vmax.f32 %v2794, 0.0
        %v2803 = vcvt.s32.f32 %v2701
        %v2804 = vcvt.s32.f32 %v2702
        %v2805 = vcvt.s32.f32 %v2703
        %v2806 = vcvt.s32.f32 %v2704
        %v2807 = vcvt.s32.f32 %v2705
        %v2808 = vcvt.s32.f32 %v2706
        %v2809 = vcvt.s32.f32 %v2707
        %v2810 = vcvt.s32.f32 %v2708
        %v2811 = vsub.f32 %v2803, %v2762
        %v2812 = vsub.f32 %v2804, %v2762
        %v2813 = vsub.f32 %v2805, %v2762
        %v2814 = vsub.f32 %v2806, %v2762
        %v2815 = vsub.f32 %v2807, %v2762
        %v2816 = vsub.f32 %v2808, %v2762
        %v2817 = vsub.f32 %v2809, %v2762
        %v2818 = vsub.f32 %v2810, %v2762
        %v2819 = vand.u32 2147483647, %v2811
        %v2820 = vand.u32 2147483647, %v2812
        %v2821 = vand.u32 2147483647, %v2813
        %v2822 = vand.u32 2147483647, %v2814
        %v2823 = vand.u32 2147483647, %v2815
        %v2824 = vand.u32 2147483647, %v2816
        %v2825 = vand.u32 2147483647, %v2817
        %v2826 = vand.u32 2147483647, %v2818
        %v2827 = vsub.f32 1.0, %v2819
        %v2828 = vsub.f32 1.0, %v2820
        %v2829 = vsub.f32 1.0, %v2821
        %v2830 = vsub.f32 1.0, %v2822
        %v2831 = vsub.f32 1.0, %v2823
        %v2832 = vsub.f32 1.0, %v2824
        %v2833 = vsub.f32 1.0, %v2825
        %v2834 = vsub.f32 1.0, %v2826
        %v2835 = vmax.f32 %v2827, 0.0
        %v2836 = vmax.f32 %v2828, 0.0
        %v2837 = vmax.f32 %v2829, 0.0
        %v2838 = vmax.f32 %v2830, 0.0
        %v2839 = vmax.f32 %v2831, 0.0
        %v2840 = vmax.f32 %v2832, 0.0
        %v2841 = vmax.f32 %v2833, 0.0
        %v2842 = vmax.f32 %v2834, 0.0
        %v2843 = vmul.f32 %v2795, %v2835
        %v2844 = vmul.f32 %v2796, %v2836
        %v2845 = vmul.f32 %v2797, %v2837
        %v2846 = vmul.f32 %v2798, %v2838
        %v2847 = vmul.f32 %v2799, %v2839
        %v2848 = vmul.f32 %v2800, %v2840
        %v2849 = vmul.f32 %v2801, %v2841
        %v2850 = vmul.f32 %v2802, %v2842
        %vm2851 = vcmask 523264
        %v2853 = vsel %vm2851, %v2691, 0
        %v2856 = vsel %vm2851, %v2692, 0
        %2858 = vmatpush.msra.mxu0 0.0
        %2859 = vmatpush.msra.mxu0 0.0
        %2860 = vmatpush.msra.mxu0 0.0
        %2861 = vmatpush.msra.mxu0 0.0
        %2862 = vmatpush.msra.mxu0 0.0
        %2863 = vmatpush.msra.mxu0 0.0
        %2864 = vmatpush.msra.mxu0 0.0
        %2865 = vmatpush.msra.mxu0 0.0
        %2866 = vmatpush.msra.mxu0 %v2758
        %2867 = vmatpush.msra.mxu0 %v2757
        %2868 = vmatpush.msra.mxu0 %v2756
        %2869 = vmatpush.msra.mxu0 %v2755
        %2870 = vmatpush.msra.mxu0 %v2754
        %2871 = vmatpush.msra.mxu0 %v2753
        %2872 = vmatpush.msra.mxu0 %v2752
        %2873 = vmatpush.msra.mxu0 %v2751
        %2874 = vmatmul.f32.gmra.mxu0 %v2853
        %v2875 = vpop.f32.mrf.mxu0
        %v2876 = vadd.f32 0.0, %v2875
        %2877 = vmatmul.f32.gmra.mxu0 %v2856
        %v2878 = vpop.f32.mrf.mxu0
        %v2879 = vadd.f32 0.0, %v2878
        %2880 = vdwg.mxu0
        %2881 = vmatpush.msra.mxu0 0.0
        %2882 = vmatpush.msra.mxu0 0.0
        %2883 = vmatpush.msra.mxu0 0.0
        %2884 = vmatpush.msra.mxu0 0.0
        %2885 = vmatpush.msra.mxu0 0.0
        %2886 = vmatpush.msra.mxu0 0.0
        %2887 = vmatpush.msra.mxu0 0.0
        %2888 = vmatpush.msra.mxu0 0.0
        %2889 = vmatpush.msra.mxu0 %v2850
        %2890 = vmatpush.msra.mxu0 %v2849
        %2891 = vmatpush.msra.mxu0 %v2848
        %2892 = vmatpush.msra.mxu0 %v2847
        %2893 = vmatpush.msra.mxu0 %v2846
        %2894 = vmatpush.msra.mxu0 %v2845
        %2895 = vmatpush.msra.mxu0 %v2844
        %2896 = vmatpush.msra.mxu0 %v2843
        %2897 = vmatmul.f32.gmra.mxu0 %v2853
        %v2898 = vpop.f32.mrf.mxu0
        %v2899 = vadd.f32 0.0, %v2898
        %2900 = vmatmul.f32.gmra.mxu0 %v2856
        %v2901 = vpop.f32.mrf.mxu0
        %v2902 = vadd.f32 0.0, %v2901
        %2903 = vdwg.mxu0
        %v2904 = vpack.c.bf16 %v2876, %v2876
        %v2905 = vpack.c.bf16 %v2879, %v2879
        %2906 = vst [vmem:[#allocation2] sm:$0xff] 0
        %2907 = vst [vmem:[#allocation2 + $0x8] sm:$0xff] 0
        %2908 = vst [vmem:[#allocation2 + $0x10] sm:$0xff] 0
        %2909 = vst [vmem:[#allocation2 + $0x18] sm:$0xff] 0
        %vm2910 = vcmask 125952
        %2911 = vst.msk [vmem:[#allocation2 + $0x4] sm:$0xf] %vm2910, %v2904
        %2912 = vst.msk [vmem:[#allocation2 + $0x14] sm:$0xf] %vm2910, %v2905
        %vm2913 = vcmp.ge.s32.totalorder %v2710, 1
        %vm2914 = vcmp.le.s32.totalorder %v2710, 2
        %v2915 = vld [vmem:[#allocation2] sm:$0xff]
        %v2916 = vld [vmem:[#allocation2 + $0x10] sm:$0xff]
        %v2917 = vsel %vm2913, 1, 0
        %vm2918 = vcmp.eq.s32.totalorder %v2917, 1
        %vm2919 = vmpackc.low %vm2918, %vm2918
        %v2920 = vsel %vm2919, 65537, 0
        %2921 = vrot.lane.b32.xlu0 %v2920, 123
        %v2922 = vpop.permute.xlu0 %2921
        %v2923 = vrot.slane %v2922, 4
        %vm2924 = vcmask 1006592
        %v2925 = vsel %vm2924, %v2923, %v2922
        %v2926 = vunpack.c.l.b16 %v2925
        %v2927 = vunpack.c.h.b16 %v2925
        %v2928 = vunpack.c.l.b16 0
        %v2929 = vunpack.c.h.b16 0
        %vm2930 = vcmp.ne.s32.totalorder %v2926, %v2928
        %vm2931 = vcmp.ne.s32.totalorder %v2927, %v2929
        %vm2932 = vmpackc.low %vm2931, %vm2930
        %v2933 = vsel %vm2932, %v2915, 0
        %v2934 = vsel %vm2932, %v2916, 0
        %v2935 = vld [vmem:[%s7] sm:$0xf]
        %v2936 = vld [vmem:[%s7 + $0x4] sm:$0xf]
        %s2937 = scalar_lea.vmem %s7, 8
        %v2938 = vld [vmem:[%s2937] sm:$0xf]
        %v2939 = vld [vmem:[%s2937 + $0x4] sm:$0xf]
        %v2942 = vunpack.c.l.b16 %v2938
        %v2943 = vunpack.c.l.b16 %v2939
        %v2944 = vpack.c.b16 %v2943, %v2942
        %v2947 = vunpack.c.l.b16 %v2915
        %v2948 = vunpack.c.h.b16 %v2915
        %v2949 = vunpack.c.l.b16 %v2916
        %v2950 = vunpack.c.h.b16 %v2916
        %v2951 = vpack.c.b16 %v2949, %v2947
        %v2952 = vpack.c.b16 %v2950, %v2948
        %2953 = vrot.lane.b32.xlu0 %v2951, 4
        %v2954 = vpop.permute.xlu0 %2953
        %2955 = vrot.lane.b32.xlu0 %v2952, 4
        %v2956 = vpop.permute.xlu0 %2955
        %vm2957 = vcmask 31744
        %v2958 = vsel %vm2957, %v2954, %v2956
        %vm2960 = vcmask 130048
        %v2962 = vsel %vm2960, %v2944, 0
        %2964 = vmatpush.bf16.msra.mxu0 0
        %2965 = vmatpush.bf16.msra.mxu0 0
        %2966 = vmatpush.bf16.msra.mxu0 0
        %2967 = vmatpush.bf16.msra.mxu0 0
        %2968 = vmatpush.bf16.msra.mxu0 0
        %2969 = vmatpush.bf16.msra.mxu0 0
        %2970 = vmatpush.bf16.msra.mxu0 0
        %2971 = vmatpush.bf16.msra.mxu0 %v2958
        %2972 = vmatmul.bf16.gmra.mxu0 %v2962
        %v2973 = vpop.f32.mrf.mxu0
        %v2974 = vadd.f32 0.0, %v2973
        %v2975 = vpop.f32.mrf.mxu0
        %v2976 = vadd.f32 0.0, %v2975
        %2977 = vdwg.mxu0
        %v2980 = vunpack.c.l.b16 %v2935
        %v2981 = vunpack.c.l.b16 %v2936
        %v2982 = vpack.c.b16 %v2981, %v2980
        %v2985 = vunpack.c.l.b16 %v2933
        %v2986 = vunpack.c.h.b16 %v2933
        %v2987 = vunpack.c.l.b16 %v2934
        %v2988 = vunpack.c.h.b16 %v2934
        %v2989 = vpack.c.b16 %v2987, %v2985
        %v2990 = vpack.c.b16 %v2988, %v2986
        %2991 = vrot.lane.b32.xlu0 %v2989, 5
        %v2992 = vpop.permute.xlu0 %2991
        %2993 = vrot.lane.b32.xlu0 %v2990, 5
        %v2994 = vpop.permute.xlu0 %2993
        %vm2995 = vcmask 39936
        %v2996 = vsel %vm2995, %v2992, %v2994
        %v2999 = vsel %vm2960, %v2982, 0
        %3001 = vmatpush.bf16.msra.mxu0 0
        %3002 = vmatpush.bf16.msra.mxu0 0
        %3003 = vmatpush.bf16.msra.mxu0 0
        %3004 = vmatpush.bf16.msra.mxu0 0
        %3005 = vmatpush.bf16.msra.mxu0 0
        %3006 = vmatpush.bf16.msra.mxu0 0
        %3007 = vmatpush.bf16.msra.mxu0 0
        %3008 = vmatpush.bf16.msra.mxu0 %v2996
        %3009 = vmatmul.bf16.gmra.mxu0 %v2999
        %v3010 = vpop.f32.mrf.mxu0
        %v3011 = vadd.f32 %v2974, %v3010
        %v3012 = vpop.f32.mrf.mxu0
        %v3013 = vadd.f32 %v2976, %v3012
        %3014 = vdwg.mxu0
        %v3015 = vsel %vm2914, 1, 0
        %vm3016 = vcmp.eq.s32.totalorder %v3015, 1
        %vm3017 = vmpackc.low %vm3016, %vm3016
        %v3018 = vsel %vm3017, 65537, 0
        %3019 = vrot.lane.b32.xlu0 %v3018, 125
        %v3020 = vpop.permute.xlu0 %3019
        %v3021 = vrot.slane %v3020, 4
        %vm3022 = vcmask 1022976
        %v3023 = vsel %vm3022, %v3021, %v3020
        %v3024 = vunpack.c.l.b16 %v3023
        %v3025 = vunpack.c.h.b16 %v3023
        %v3026 = vunpack.c.l.b16 0
        %v3027 = vunpack.c.h.b16 0
        %vm3028 = vcmp.ne.s32.totalorder %v3024, %v3026
        %vm3029 = vcmp.ne.s32.totalorder %v3025, %v3027
        %vm3030 = vmpackc.low %vm3029, %vm3028
        %v3031 = vsel %vm3030, %v2915, 0
        %v3032 = vsel %vm3030, %v2916, 0
        %s3033 = scalar_lea.vmem %s7, 16
        %v3034 = vld [vmem:[%s3033] sm:$0xf]
        %v3035 = vld [vmem:[%s3033 + $0x4] sm:$0xf]
        %v3038 = vunpack.c.l.b16 %v3034
        %v3039 = vunpack.c.l.b16 %v3035
        %v3040 = vpack.c.b16 %v3039, %v3038
        %v3043 = vunpack.c.l.b16 %v3031
        %v3044 = vunpack.c.h.b16 %v3031
        %v3045 = vunpack.c.l.b16 %v3032
        %v3046 = vunpack.c.h.b16 %v3032
        %v3047 = vpack.c.b16 %v3045, %v3043
        %v3048 = vpack.c.b16 %v3046, %v3044
        %3049 = vrot.lane.b32.xlu0 %v3047, 3
        %v3050 = vpop.permute.xlu0 %3049
        %3051 = vrot.lane.b32.xlu0 %v3048, 3
        %v3052 = vpop.permute.xlu0 %3051
        %vm3053 = vcmask 23552
        %v3054 = vsel %vm3053, %v3050, %v3052
        %v3057 = vsel %vm2960, %v3040, 0
        %3059 = vmatpush.bf16.msra.mxu0 0
        %3060 = vmatpush.bf16.msra.mxu0 0
        %3061 = vmatpush.bf16.msra.mxu0 0
        %3062 = vmatpush.bf16.msra.mxu0 0
        %3063 = vmatpush.bf16.msra.mxu0 0
        %3064 = vmatpush.bf16.msra.mxu0 0
        %3065 = vmatpush.bf16.msra.mxu0 0
        %3066 = vmatpush.bf16.msra.mxu0 %v3054
        %3067 = vmatmul.bf16.gmra.mxu0 %v3057
        %v3068 = vpop.f32.mrf.mxu0
        %v3069 = vadd.f32 0.0, %v3068
        %v3070 = vpop.f32.mrf.mxu0
        %v3071 = vadd.f32 0.0, %v3070
        %3072 = vdwg.mxu0
        %v3073 = vadd.f32 %v3011, %v3069
        %v3074 = vadd.f32 %v3013, %v3071
        %3075 = vrot.lane.b32.xlu0 %v2920, 127
        %v3076 = vpop.permute.xlu0 %3075
        %v3077 = vrot.slane %v3076, 4
        %v3078 = vsel %vm833, %v3077, %v3076
        %v3079 = vunpack.c.l.b16 %v3078
        %v3080 = vunpack.c.h.b16 %v3078
        %v3081 = vunpack.c.l.b16 0
        %v3082 = vunpack.c.h.b16 0
        %vm3083 = vcmp.ne.s32.totalorder %v3079, %v3081
        %vm3084 = vcmp.ne.s32.totalorder %v3080, %v3082
        %vm3085 = vmpackc.low %vm3084, %vm3083
        %v3086 = vsel %vm3085, %v2915, 0
        %v3087 = vsel %vm3085, %v2916, 0
        %s3088 = scalar_lea.vmem %s7, 24
        %v3089 = vld [vmem:[%s3088] sm:$0xf]
        %v3090 = vld [vmem:[%s3088 + $0x4] sm:$0xf]
        %v3093 = vunpack.c.l.b16 %v3089
        %v3094 = vunpack.c.l.b16 %v3090
        %v3095 = vpack.c.b16 %v3094, %v3093
        %v3098 = vunpack.c.l.b16 %v3086
        %v3099 = vunpack.c.h.b16 %v3086
        %v3100 = vunpack.c.l.b16 %v3087
        %v3101 = vunpack.c.h.b16 %v3087
        %v3102 = vpack.c.b16 %v3100, %v3098
        %v3103 = vpack.c.b16 %v3101, %v3099
        %3104 = vrot.lane.b32.xlu0 %v3102, 1
        %v3105 = vpop.permute.xlu0 %3104
        %3106 = vrot.lane.b32.xlu0 %v3103, 1
        %v3107 = vpop.permute.xlu0 %3106
        %v3108 = vsel %vm867, %v3105, %v3107
        %v3111 = vsel %vm2960, %v3095, 0
        %3113 = vmatpush.bf16.msra.mxu0 0
        %3114 = vmatpush.bf16.msra.mxu0 0
        %3115 = vmatpush.bf16.msra.mxu0 0
        %3116 = vmatpush.bf16.msra.mxu0 0
        %3117 = vmatpush.bf16.msra.mxu0 0
        %3118 = vmatpush.bf16.msra.mxu0 0
        %3119 = vmatpush.bf16.msra.mxu0 0
        %3120 = vmatpush.bf16.msra.mxu0 %v3108
        %3121 = vmatmul.bf16.gmra.mxu0 %v3111
        %v3122 = vpop.f32.mrf.mxu0
        %v3123 = vadd.f32 0.0, %v3122
        %v3124 = vpop.f32.mrf.mxu0
        %v3125 = vadd.f32 0.0, %v3124
        %3126 = vdwg.mxu0
        %v3127 = vadd.f32 %v3073, %v3123
        %v3128 = vadd.f32 %v3074, %v3125
        %v3129 = vld [vmem:[#allocation2 + $0x4] sm:$0xf]
        %v3130 = vld [vmem:[#allocation2 + $0x14] sm:$0xf]
        %s3131 = scalar_lea.vmem %s7, 32
        %v3132 = vld [vmem:[%s3131] sm:$0xf]
        %v3133 = vld [vmem:[%s3131 + $0x4] sm:$0xf]
        %v3136 = vunpack.c.l.b16 %v3132
        %v3137 = vunpack.c.l.b16 %v3133
        %v3138 = vpack.c.b16 %v3137, %v3136
        %v3141 = vunpack.c.l.b16 %v3129
        %v3142 = vunpack.c.l.b16 %v3130
        %v3143 = vpack.c.b16 %v3142, %v3141
        %v3146 = vsel %vm2960, %v3138, 0
        %3148 = vmatpush.bf16.msra.mxu0 0
        %3149 = vmatpush.bf16.msra.mxu0 0
        %3150 = vmatpush.bf16.msra.mxu0 0
        %3151 = vmatpush.bf16.msra.mxu0 0
        %3152 = vmatpush.bf16.msra.mxu0 0
        %3153 = vmatpush.bf16.msra.mxu0 0
        %3154 = vmatpush.bf16.msra.mxu0 0
        %3155 = vmatpush.bf16.msra.mxu0 %v3143
        %3156 = vmatmul.bf16.gmra.mxu0 %v3146
        %v3157 = vpop.f32.mrf.mxu0
        %v3158 = vadd.f32 0.0, %v3157
        %v3159 = vpop.f32.mrf.mxu0
        %v3160 = vadd.f32 0.0, %v3159
        %3161 = vdwg.mxu0
        %v3162 = vadd.f32 %v3127, %v3158
        %v3163 = vadd.f32 %v3128, %v3160
        %3164 = vrot.lane.b32.xlu0 %v3018, 1
        %v3165 = vpop.permute.xlu0 %3164
        %v3166 = vunpack.c.l.b16 %v3165
        %v3167 = vunpack.c.h.b16 %v3165
        %v3168 = vunpack.c.l.b16 0
        %v3169 = vunpack.c.h.b16 0
        %vm3170 = vcmp.ne.s32.totalorder %v3166, %v3168
        %vm3171 = vcmp.ne.s32.totalorder %v3167, %v3169
        %vm3172 = vmpackc.low %vm3171, %vm3170
        %v3173 = vsel %vm3172, %v3129, 0
        %v3174 = vsel %vm3172, %v3130, 0
        %s3175 = scalar_lea.vmem %s7, 40
        %v3176 = vld [vmem:[%s3175] sm:$0xf]
        %v3177 = vld [vmem:[%s3175 + $0x4] sm:$0xf]
        %v3180 = vunpack.c.l.b16 %v3176
        %v3181 = vunpack.c.l.b16 %v3177
        %v3182 = vpack.c.b16 %v3181, %v3180
        %v3185 = vunpack.c.l.b16 %v3173
        %v3186 = vunpack.c.l.b16 %v3174
        %v3187 = vpack.c.b16 %v3186, %v3185
        %3188 = vrot.lane.b32.xlu0 %v3187, 127
        %v3189 = vpop.permute.xlu0 %3188
        %v3192 = vsel %vm2960, %v3182, 0
        %3194 = vmatpush.bf16.msra.mxu0 0
        %3195 = vmatpush.bf16.msra.mxu0 0
        %3196 = vmatpush.bf16.msra.mxu0 0
        %3197 = vmatpush.bf16.msra.mxu0 0
        %3198 = vmatpush.bf16.msra.mxu0 0
        %3199 = vmatpush.bf16.msra.mxu0 0
        %3200 = vmatpush.bf16.msra.mxu0 0
        %3201 = vmatpush.bf16.msra.mxu0 %v3189
        %3202 = vmatmul.bf16.gmra.mxu0 %v3192
        %v3203 = vpop.f32.mrf.mxu0
        %v3204 = vadd.f32 0.0, %v3203
        %v3205 = vpop.f32.mrf.mxu0
        %v3206 = vadd.f32 0.0, %v3205
        %3207 = vdwg.mxu0
        %v3208 = vadd.f32 %v3162, %v3204
        %v3209 = vadd.f32 %v3163, %v3206
        %3210 = vrot.lane.b32.xlu0 %v2920, 3
        %v3211 = vpop.permute.xlu0 %3210
        %v3212 = vunpack.c.l.b16 %v3211
        %v3213 = vunpack.c.h.b16 %v3211
        %v3214 = vunpack.c.l.b16 0
        %v3215 = vunpack.c.h.b16 0
        %vm3216 = vcmp.ne.s32.totalorder %v3212, %v3214
        %vm3217 = vcmp.ne.s32.totalorder %v3213, %v3215
        %vm3218 = vmpackc.low %vm3217, %vm3216
        %v3219 = vsel %vm3218, %v3129, 0
        %v3220 = vsel %vm3218, %v3130, 0
        %s3221 = scalar_lea.vmem %s7, 48
        %v3222 = vld [vmem:[%s3221] sm:$0xf]
        %v3223 = vld [vmem:[%s3221 + $0x4] sm:$0xf]
        %v3226 = vunpack.c.l.b16 %v3222
        %v3227 = vunpack.c.l.b16 %v3223
        %v3228 = vpack.c.b16 %v3227, %v3226
        %v3231 = vunpack.c.l.b16 %v3219
        %v3232 = vunpack.c.l.b16 %v3220
        %v3233 = vpack.c.b16 %v3232, %v3231
        %3234 = vrot.lane.b32.xlu0 %v3233, 125
        %v3235 = vpop.permute.xlu0 %3234
        %v3238 = vsel %vm2960, %v3228, 0
        %3240 = vmatpush.bf16.msra.mxu0 0
        %3241 = vmatpush.bf16.msra.mxu0 0
        %3242 = vmatpush.bf16.msra.mxu0 0
        %3243 = vmatpush.bf16.msra.mxu0 0
        %3244 = vmatpush.bf16.msra.mxu0 0
        %3245 = vmatpush.bf16.msra.mxu0 0
        %3246 = vmatpush.bf16.msra.mxu0 0
        %3247 = vmatpush.bf16.msra.mxu0 %v3235
        %3248 = vmatmul.bf16.gmra.mxu0 %v3238
        %v3249 = vpop.f32.mrf.mxu0
        %v3250 = vadd.f32 0.0, %v3249
        %v3251 = vpop.f32.mrf.mxu0
        %v3252 = vadd.f32 0.0, %v3251
        %3253 = vdwg.mxu0
        %v3254 = vadd.f32 %v3208, %v3250
        %v3255 = vadd.f32 %v3209, %v3252
        %s3256 = scalar_lea.vmem %s7, 56
        %v3257 = vld [vmem:[%s3256] sm:$0xf]
        %v3258 = vld [vmem:[%s3256 + $0x4] sm:$0xf]
        %v3261 = vunpack.c.l.b16 %v3257
        %v3262 = vunpack.c.l.b16 %v3258
        %v3263 = vpack.c.b16 %v3262, %v3261
        %3264 = vrot.lane.b32.xlu0 %v3143, 124
        %v3265 = vpop.permute.xlu0 %3264
        %v3268 = vsel %vm2960, %v3263, 0
        %3270 = vmatpush.bf16.msra.mxu0 0
        %3271 = vmatpush.bf16.msra.mxu0 0
        %3272 = vmatpush.bf16.msra.mxu0 0
        %3273 = vmatpush.bf16.msra.mxu0 0
        %3274 = vmatpush.bf16.msra.mxu0 0
        %3275 = vmatpush.bf16.msra.mxu0 0
        %3276 = vmatpush.bf16.msra.mxu0 0
        %3277 = vmatpush.bf16.msra.mxu0 %v3265
        %3278 = vmatmul.bf16.gmra.mxu0 %v3268
        %v3279 = vpop.f32.mrf.mxu0
        %v3280 = vadd.f32 0.0, %v3279
        %v3281 = vpop.f32.mrf.mxu0
        %v3282 = vadd.f32 0.0, %v3281
        %3283 = vdwg.mxu0
        %v3284 = vadd.f32 %v3254, %v3280
        %v3285 = vadd.f32 %v3255, %v3282
        %3286 = vrot.lane.b32.xlu0 %v3018, 5
        %v3287 = vpop.permute.xlu0 %3286
        %v3288 = vunpack.c.l.b16 %v3287
        %v3289 = vunpack.c.h.b16 %v3287
        %v3290 = vunpack.c.l.b16 0
        %v3291 = vunpack.c.h.b16 0
        %vm3292 = vcmp.ne.s32.totalorder %v3288, %v3290
        %vm3293 = vcmp.ne.s32.totalorder %v3289, %v3291
        %vm3294 = vmpackc.low %vm3293, %vm3292
        %v3295 = vsel %vm3294, %v3129, 0
        %v3296 = vsel %vm3294, %v3130, 0
        %s3297 = scalar_lea.vmem %s7, 64
        %v3298 = vld [vmem:[%s3297] sm:$0xf]
        %v3299 = vld [vmem:[%s3297 + $0x4] sm:$0xf]
        %v3302 = vunpack.c.l.b16 %v3298
        %v3303 = vunpack.c.l.b16 %v3299
        %v3304 = vpack.c.b16 %v3303, %v3302
        %v3307 = vunpack.c.l.b16 %v3295
        %v3308 = vunpack.c.l.b16 %v3296
        %v3309 = vpack.c.b16 %v3308, %v3307
        %3310 = vrot.lane.b32.xlu0 %v3309, 123
        %v3311 = vpop.permute.xlu0 %3310
        %v3314 = vsel %vm2960, %v3304, 0
        %3316 = vmatpush.bf16.msra.mxu0 0
        %3317 = vmatpush.bf16.msra.mxu0 0
        %3318 = vmatpush.bf16.msra.mxu0 0
        %3319 = vmatpush.bf16.msra.mxu0 0
        %3320 = vmatpush.bf16.msra.mxu0 0
        %3321 = vmatpush.bf16.msra.mxu0 0
        %3322 = vmatpush.bf16.msra.mxu0 0
        %3323 = vmatpush.bf16.msra.mxu0 %v3311
        %3324 = vmatmul.bf16.gmra.mxu0 %v3314
        %v3325 = vpop.f32.mrf.mxu0
        %v3326 = vadd.f32 0.0, %v3325
        %v3327 = vpop.f32.mrf.mxu0
        %v3328 = vadd.f32 0.0, %v3327
        %3329 = vdwg.mxu0
        %v3330 = vadd.f32 %v3284, %v3326
        %v3331 = vadd.f32 %v3285, %v3328
        %v3332 = vld [vmem:[#allocation12] sm:$0xff]
        %v3333 = vld [vmem:[#allocation12 + $0x8] sm:$0xff]
        %3335 = vset.pattern.permute.xlu0 0
        %3336 = vperm.xlu0 %3335, %v3332
        %v3337 = vpop.permute.xlu0 %3336
        %3340 = vset.pattern.permute.xlu0 0
        %3341 = vperm.xlu0 %3340, %v3333
        %v3342 = vpop.permute.xlu0 %3341
        %v3344 = vadd.f32 %v3330, %v3337
        %v3345 = vadd.f32 %v3331, %v3342
        %vm3346 = vcmp.ge.f32.partialorder %v3344, 0.0
        %vm3347 = vcmp.ge.f32.partialorder %v3345, 0.0
        %v3348 = vmul.f32 %v3344, 0.2
        %v3349 = vmul.f32 %v3345, 0.2
        %v3350 = vsel %vm3346, %v3344, %v3348
        %v3351 = vsel %vm3347, %v3345, %v3349
        %v3352 = vadd.f32 %v3350, %v2899
        %v3353 = vadd.f32 %v3351, %v2902
        %v3354 = vpack.c.bf16 %v3352, %v3352
        %v3355 = vpack.c.bf16 %v3353, %v3353
        %3356 = vst [vmem:[#allocation2] sm:$0xff] 0
        %3357 = vst [vmem:[#allocation2 + $0x8] sm:$0xff] 0
        %3358 = vst [vmem:[#allocation2 + $0x10] sm:$0xff] 0
        %3359 = vst [vmem:[#allocation2 + $0x18] sm:$0xff] 0
        %3360 = vst.msk [vmem:[#allocation2 + $0x4] sm:$0xf] %vm2910, %v3354
        %3361 = vst.msk [vmem:[#allocation2 + $0x14] sm:$0xf] %vm2910, %v3355
        %v3362 = vld [vmem:[#allocation2] sm:$0xff]
        %v3363 = vld [vmem:[#allocation2 + $0x10] sm:$0xff]
        %v3364 = vsel %vm2932, %v3362, 0
        %v3365 = vsel %vm2932, %v3363, 0
        %v3366 = vld [vmem:[#allocation14] sm:$0xf]
        %v3367 = vld [vmem:[#allocation14 + $0x4] sm:$0xf]
        %s3368 = scalar_lea.vmem [#allocation14], 8
        %v3369 = vld [vmem:[%s3368] sm:$0xf]
        %v3370 = vld [vmem:[%s3368 + $0x4] sm:$0xf]
        %v3373 = vunpack.c.l.b16 %v3369
        %v3374 = vunpack.c.l.b16 %v3370
        %v3375 = vpack.c.b16 %v3374, %v3373
        %v3378 = vunpack.c.l.b16 %v3362
        %v3379 = vunpack.c.h.b16 %v3362
        %v3380 = vunpack.c.l.b16 %v3363
        %v3381 = vunpack.c.h.b16 %v3363
        %v3382 = vpack.c.b16 %v3380, %v3378
        %v3383 = vpack.c.b16 %v3381, %v3379
        %3384 = vrot.lane.b32.xlu0 %v3382, 4
        %v3385 = vpop.permute.xlu0 %3384
        %3386 = vrot.lane.b32.xlu0 %v3383, 4
        %v3387 = vpop.permute.xlu0 %3386
        %v3388 = vsel %vm2957, %v3385, %v3387
        %v3391 = vsel %vm2960, %v3375, 0
        %3393 = vmatpush.bf16.msra.mxu0 0
        %3394 = vmatpush.bf16.msra.mxu0 0
        %3395 = vmatpush.bf16.msra.mxu0 0
        %3396 = vmatpush.bf16.msra.mxu0 0
        %3397 = vmatpush.bf16.msra.mxu0 0
        %3398 = vmatpush.bf16.msra.mxu0 0
        %3399 = vmatpush.bf16.msra.mxu0 0
        %3400 = vmatpush.bf16.msra.mxu0 %v3388
        %3401 = vmatmul.bf16.gmra.mxu0 %v3391
        %v3402 = vpop.f32.mrf.mxu0
        %v3403 = vadd.f32 0.0, %v3402
        %v3404 = vpop.f32.mrf.mxu0
        %v3405 = vadd.f32 0.0, %v3404
        %3406 = vdwg.mxu0
        %v3409 = vunpack.c.l.b16 %v3366
        %v3410 = vunpack.c.l.b16 %v3367
        %v3411 = vpack.c.b16 %v3410, %v3409
        %v3414 = vunpack.c.l.b16 %v3364
        %v3415 = vunpack.c.h.b16 %v3364
        %v3416 = vunpack.c.l.b16 %v3365
        %v3417 = vunpack.c.h.b16 %v3365
        %v3418 = vpack.c.b16 %v3416, %v3414
        %v3419 = vpack.c.b16 %v3417, %v3415
        %3420 = vrot.lane.b32.xlu0 %v3418, 5
        %v3421 = vpop.permute.xlu0 %3420
        %3422 = vrot.lane.b32.xlu0 %v3419, 5
        %v3423 = vpop.permute.xlu0 %3422
        %v3424 = vsel %vm2995, %v3421, %v3423
        %v3427 = vsel %vm2960, %v3411, 0
        %3429 = vmatpush.bf16.msra.mxu0 0
        %3430 = vmatpush.bf16.msra.mxu0 0
        %3431 = vmatpush.bf16.msra.mxu0 0
        %3432 = vmatpush.bf16.msra.mxu0 0
        %3433 = vmatpush.bf16.msra.mxu0 0
        %3434 = vmatpush.bf16.msra.mxu0 0
        %3435 = vmatpush.bf16.msra.mxu0 0
        %3436 = vmatpush.bf16.msra.mxu0 %v3424
        %3437 = vmatmul.bf16.gmra.mxu0 %v3427
        %v3438 = vpop.f32.mrf.mxu0
        %v3439 = vadd.f32 %v3403, %v3438
        %v3440 = vpop.f32.mrf.mxu0
        %v3441 = vadd.f32 %v3405, %v3440
        %3442 = vdwg.mxu0
        %v3443 = vsel %vm3030, %v3362, 0
        %v3444 = vsel %vm3030, %v3363, 0
        %s3445 = scalar_lea.vmem [#allocation14], 16
        %v3446 = vld [vmem:[%s3445] sm:$0xf]
        %v3447 = vld [vmem:[%s3445 + $0x4] sm:$0xf]
        %v3450 = vunpack.c.l.b16 %v3446
        %v3451 = vunpack.c.l.b16 %v3447
        %v3452 = vpack.c.b16 %v3451, %v3450
        %v3455 = vunpack.c.l.b16 %v3443
        %v3456 = vunpack.c.h.b16 %v3443
        %v3457 = vunpack.c.l.b16 %v3444
        %v3458 = vunpack.c.h.b16 %v3444
        %v3459 = vpack.c.b16 %v3457, %v3455
        %v3460 = vpack.c.b16 %v3458, %v3456
        %3461 = vrot.lane.b32.xlu0 %v3459, 3
        %v3462 = vpop.permute.xlu0 %3461
        %3463 = vrot.lane.b32.xlu0 %v3460, 3
        %v3464 = vpop.permute.xlu0 %3463
        %v3465 = vsel %vm3053, %v3462, %v3464
        %v3468 = vsel %vm2960, %v3452, 0
        %3470 = vmatpush.bf16.msra.mxu0 0
        %3471 = vmatpush.bf16.msra.mxu0 0
        %3472 = vmatpush.bf16.msra.mxu0 0
        %3473 = vmatpush.bf16.msra.mxu0 0
        %3474 = vmatpush.bf16.msra.mxu0 0
        %3475 = vmatpush.bf16.msra.mxu0 0
        %3476 = vmatpush.bf16.msra.mxu0 0
        %3477 = vmatpush.bf16.msra.mxu0 %v3465
        %3478 = vmatmul.bf16.gmra.mxu0 %v3468
        %v3479 = vpop.f32.mrf.mxu0
        %v3480 = vadd.f32 0.0, %v3479
        %v3481 = vpop.f32.mrf.mxu0
        %v3482 = vadd.f32 0.0, %v3481
        %3483 = vdwg.mxu0
        %v3484 = vadd.f32 %v3439, %v3480
        %v3485 = vadd.f32 %v3441, %v3482
        %v3486 = vsel %vm3085, %v3362, 0
        %v3487 = vsel %vm3085, %v3363, 0
        %s3488 = scalar_lea.vmem [#allocation14], 24
        %v3489 = vld [vmem:[%s3488] sm:$0xf]
        %v3490 = vld [vmem:[%s3488 + $0x4] sm:$0xf]
        %v3493 = vunpack.c.l.b16 %v3489
        %v3494 = vunpack.c.l.b16 %v3490
        %v3495 = vpack.c.b16 %v3494, %v3493
        %v3498 = vunpack.c.l.b16 %v3486
        %v3499 = vunpack.c.h.b16 %v3486
        %v3500 = vunpack.c.l.b16 %v3487
        %v3501 = vunpack.c.h.b16 %v3487
        %v3502 = vpack.c.b16 %v3500, %v3498
        %v3503 = vpack.c.b16 %v3501, %v3499
        %3504 = vrot.lane.b32.xlu0 %v3502, 1
        %v3505 = vpop.permute.xlu0 %3504
        %3506 = vrot.lane.b32.xlu0 %v3503, 1
        %v3507 = vpop.permute.xlu0 %3506
        %v3508 = vsel %vm867, %v3505, %v3507
        %v3511 = vsel %vm2960, %v3495, 0
        %3513 = vmatpush.bf16.msra.mxu0 0
        %3514 = vmatpush.bf16.msra.mxu0 0
        %3515 = vmatpush.bf16.msra.mxu0 0
        %3516 = vmatpush.bf16.msra.mxu0 0
        %3517 = vmatpush.bf16.msra.mxu0 0
        %3518 = vmatpush.bf16.msra.mxu0 0
        %3519 = vmatpush.bf16.msra.mxu0 0
        %3520 = vmatpush.bf16.msra.mxu0 %v3508
        %3521 = vmatmul.bf16.gmra.mxu0 %v3511
        %v3522 = vpop.f32.mrf.mxu0
        %v3523 = vadd.f32 0.0, %v3522
        %v3524 = vpop.f32.mrf.mxu0
        %v3525 = vadd.f32 0.0, %v3524
        %3526 = vdwg.mxu0
        %v3527 = vadd.f32 %v3484, %v3523
        %v3528 = vadd.f32 %v3485, %v3525
        %v3529 = vld [vmem:[#allocation2 + $0x4] sm:$0xf]
        %v3530 = vld [vmem:[#allocation2 + $0x14] sm:$0xf]
        %s3531 = scalar_lea.vmem [#allocation14], 32
        %v3532 = vld [vmem:[%s3531] sm:$0xf]
        %v3533 = vld [vmem:[%s3531 + $0x4] sm:$0xf]
        %v3536 = vunpack.c.l.b16 %v3532
        %v3537 = vunpack.c.l.b16 %v3533
        %v3538 = vpack.c.b16 %v3537, %v3536
        %v3541 = vunpack.c.l.b16 %v3529
        %v3542 = vunpack.c.l.b16 %v3530
        %v3543 = vpack.c.b16 %v3542, %v3541
        %v3546 = vsel %vm2960, %v3538, 0
        %3548 = vmatpush.bf16.msra.mxu0 0
        %3549 = vmatpush.bf16.msra.mxu0 0
        %3550 = vmatpush.bf16.msra.mxu0 0
        %3551 = vmatpush.bf16.msra.mxu0 0
        %3552 = vmatpush.bf16.msra.mxu0 0
        %3553 = vmatpush.bf16.msra.mxu0 0
        %3554 = vmatpush.bf16.msra.mxu0 0
        %3555 = vmatpush.bf16.msra.mxu0 %v3543
        %3556 = vmatmul.bf16.gmra.mxu0 %v3546
        %v3557 = vpop.f32.mrf.mxu0
        %v3558 = vadd.f32 0.0, %v3557
        %v3559 = vpop.f32.mrf.mxu0
        %v3560 = vadd.f32 0.0, %v3559
        %3561 = vdwg.mxu0
        %v3562 = vadd.f32 %v3527, %v3558
        %v3563 = vadd.f32 %v3528, %v3560
        %v3564 = vsel %vm3172, %v3529, 0
        %v3565 = vsel %vm3172, %v3530, 0
        %s3566 = scalar_lea.vmem [#allocation14], 40
        %v3567 = vld [vmem:[%s3566] sm:$0xf]
        %v3568 = vld [vmem:[%s3566 + $0x4] sm:$0xf]
        %v3571 = vunpack.c.l.b16 %v3567
        %v3572 = vunpack.c.l.b16 %v3568
        %v3573 = vpack.c.b16 %v3572, %v3571
        %v3576 = vunpack.c.l.b16 %v3564
        %v3577 = vunpack.c.l.b16 %v3565
        %v3578 = vpack.c.b16 %v3577, %v3576
        %3579 = vrot.lane.b32.xlu0 %v3578, 127
        %v3580 = vpop.permute.xlu0 %3579
        %v3583 = vsel %vm2960, %v3573, 0
        %3585 = vmatpush.bf16.msra.mxu0 0
        %3586 = vmatpush.bf16.msra.mxu0 0
        %3587 = vmatpush.bf16.msra.mxu0 0
        %3588 = vmatpush.bf16.msra.mxu0 0
        %3589 = vmatpush.bf16.msra.mxu0 0
        %3590 = vmatpush.bf16.msra.mxu0 0
        %3591 = vmatpush.bf16.msra.mxu0 0
        %3592 = vmatpush.bf16.msra.mxu0 %v3580
        %3593 = vmatmul.bf16.gmra.mxu0 %v3583
        %v3594 = vpop.f32.mrf.mxu0
        %v3595 = vadd.f32 0.0, %v3594
        %v3596 = vpop.f32.mrf.mxu0
        %v3597 = vadd.f32 0.0, %v3596
        %3598 = vdwg.mxu0
        %v3599 = vadd.f32 %v3562, %v3595
        %v3600 = vadd.f32 %v3563, %v3597
        %v3601 = vsel %vm3218, %v3529, 0
        %v3602 = vsel %vm3218, %v3530, 0
        %s3603 = scalar_lea.vmem [#allocation14], 48
        %v3604 = vld [vmem:[%s3603] sm:$0xf]
        %v3605 = vld [vmem:[%s3603 + $0x4] sm:$0xf]
        %v3608 = vunpack.c.l.b16 %v3604
        %v3609 = vunpack.c.l.b16 %v3605
        %v3610 = vpack.c.b16 %v3609, %v3608
        %v3613 = vunpack.c.l.b16 %v3601
        %v3614 = vunpack.c.l.b16 %v3602
        %v3615 = vpack.c.b16 %v3614, %v3613
        %3616 = vrot.lane.b32.xlu0 %v3615, 125
        %v3617 = vpop.permute.xlu0 %3616
        %v3620 = vsel %vm2960, %v3610, 0
        %3622 = vmatpush.bf16.msra.mxu0 0
        %3623 = vmatpush.bf16.msra.mxu0 0
        %3624 = vmatpush.bf16.msra.mxu0 0
        %3625 = vmatpush.bf16.msra.mxu0 0
        %3626 = vmatpush.bf16.msra.mxu0 0
        %3627 = vmatpush.bf16.msra.mxu0 0
        %3628 = vmatpush.bf16.msra.mxu0 0
        %3629 = vmatpush.bf16.msra.mxu0 %v3617
        %3630 = vmatmul.bf16.gmra.mxu0 %v3620
        %v3631 = vpop.f32.mrf.mxu0
        %v3632 = vadd.f32 0.0, %v3631
        %v3633 = vpop.f32.mrf.mxu0
        %v3634 = vadd.f32 0.0, %v3633
        %3635 = vdwg.mxu0
        %v3636 = vadd.f32 %v3599, %v3632
        %v3637 = vadd.f32 %v3600, %v3634
        %s3638 = scalar_lea.vmem [#allocation14], 56
        %v3639 = vld [vmem:[%s3638] sm:$0xf]
        %v3640 = vld [vmem:[%s3638 + $0x4] sm:$0xf]
        %v3643 = vunpack.c.l.b16 %v3639
        %v3644 = vunpack.c.l.b16 %v3640
        %v3645 = vpack.c.b16 %v3644, %v3643
        %3646 = vrot.lane.b32.xlu0 %v3543, 124
        %v3647 = vpop.permute.xlu0 %3646
        %v3650 = vsel %vm2960, %v3645, 0
        %3652 = vmatpush.bf16.msra.mxu0 0
        %3653 = vmatpush.bf16.msra.mxu0 0
        %3654 = vmatpush.bf16.msra.mxu0 0
        %3655 = vmatpush.bf16.msra.mxu0 0
        %3656 = vmatpush.bf16.msra.mxu0 0
        %3657 = vmatpush.bf16.msra.mxu0 0
        %3658 = vmatpush.bf16.msra.mxu0 0
        %3659 = vmatpush.bf16.msra.mxu0 %v3647
        %3660 = vmatmul.bf16.gmra.mxu0 %v3650
        %v3661 = vpop.f32.mrf.mxu0
        %v3662 = vadd.f32 0.0, %v3661
        %v3663 = vpop.f32.mrf.mxu0
        %v3664 = vadd.f32 0.0, %v3663
        %3665 = vdwg.mxu0
        %v3666 = vadd.f32 %v3636, %v3662
        %v3667 = vadd.f32 %v3637, %v3664
        %v3668 = vsel %vm3294, %v3529, 0
        %v3669 = vsel %vm3294, %v3530, 0
        %s3670 = scalar_lea.vmem [#allocation14], 64
        %v3671 = vld [vmem:[%s3670] sm:$0xf]
        %v3672 = vld [vmem:[%s3670 + $0x4] sm:$0xf]
        %v3675 = vunpack.c.l.b16 %v3671
        %v3676 = vunpack.c.l.b16 %v3672
        %v3677 = vpack.c.b16 %v3676, %v3675
        %v3680 = vunpack.c.l.b16 %v3668
        %v3681 = vunpack.c.l.b16 %v3669
        %v3682 = vpack.c.b16 %v3681, %v3680
        %3683 = vrot.lane.b32.xlu0 %v3682, 123
        %v3684 = vpop.permute.xlu0 %3683
        %v3687 = vsel %vm2960, %v3677, 0
        %3689 = vmatpush.bf16.msra.mxu0 0
        %3690 = vmatpush.bf16.msra.mxu0 0
        %3691 = vmatpush.bf16.msra.mxu0 0
        %3692 = vmatpush.bf16.msra.mxu0 0
        %3693 = vmatpush.bf16.msra.mxu0 0
        %3694 = vmatpush.bf16.msra.mxu0 0
        %3695 = vmatpush.bf16.msra.mxu0 0
        %3696 = vmatpush.bf16.msra.mxu0 %v3684
        %3697 = vmatmul.bf16.gmra.mxu0 %v3687
        %v3698 = vpop.f32.mrf.mxu0
        %v3699 = vadd.f32 0.0, %v3698
        %v3700 = vpop.f32.mrf.mxu0
        %v3701 = vadd.f32 0.0, %v3700
        %3702 = vdwg.mxu0
        %v3703 = vadd.f32 %v3666, %v3699
        %v3704 = vadd.f32 %v3667, %v3701
        %v3705 = vld [vmem:[#allocation15] sm:$0xff]
        %v3706 = vld [vmem:[#allocation15 + $0x8] sm:$0xff]
        %3708 = vset.pattern.permute.xlu0 0
        %3709 = vperm.xlu0 %3708, %v3705
        %v3710 = vpop.permute.xlu0 %3709
        %3713 = vset.pattern.permute.xlu0 0
        %3714 = vperm.xlu0 %3713, %v3706
        %v3715 = vpop.permute.xlu0 %3714
        %v3717 = vadd.f32 %v3703, %v3710
        %v3718 = vadd.f32 %v3704, %v3715
        %vm3719 = vcmp.ge.f32.partialorder %v3717, 0.0
        %vm3720 = vcmp.ge.f32.partialorder %v3718, 0.0
        %v3721 = vmul.f32 %v3717, 0.2
        %v3722 = vmul.f32 %v3718, 0.2
        %v3723 = vsel %vm3719, %v3717, %v3721
        %v3724 = vsel %vm3720, %v3718, %v3722
        %v3725 = vld [vmem:[#allocation17] sm:$0xff]
        %v3726 = vld [vmem:[#allocation17 + $0x8] sm:$0xff]
        %3728 = vset.pattern.permute.xlu0 0
        %3729 = vperm.xlu0 %3728, %v3725
        %v3730 = vpop.permute.xlu0 %3729
        %3733 = vset.pattern.permute.xlu0 0
        %3734 = vperm.xlu0 %3733, %v3726
        %v3735 = vpop.permute.xlu0 %3734
        %v3737 = vmul.f32 %v3723, %v3730
        %v3738 = vmul.f32 %v3724, %v3735
        %v3739 = vsel %vm2960, %v3737, 0.0
        %3740 = vadd.xlane.f32.xlu0 %v3739
        %v3741 = vpop.xlane.xlu0 %3740
        %v3742 = vsel %vm2960, %v3738, 0.0
        %3743 = vadd.xlane.f32.xlu0 %v3742
        %v3744 = vpop.xlane.xlu0 %3743
        %v3745 = vadd.f32 %v3741, %v3744
        %v3746 = vrot.slane %v3745, 4
        %v3747 = vadd.f32 %v3745, %v3746
        %v3748 = vrot.slane %v3747, 2
        %v3749 = vadd.f32 %v3747, %v3748
        %v3750 = vrot.slane %v3749, 1
        %v3751 = vadd.f32 %v3749, %v3750
        %v3752 = vmul.f32 %v3751, 0.0625
        %v3753 = vld [vmem:[#allocation3] sm:$0x1]
        %v3754 = vadd.f32 %v3752, %v3753
        %vm3755 = vcmask 0
        %3756 = vst.msk [vmem:[%s583] sm:$0x1] %vm3755, %v3754
        %p3757 = scmp.lt.s32.totalorder %s31, 1
        %s3758 = scalar_select %p3757, %s31, 1
        %s3759 = scalar_lea.vmem %s13, %s3758
        // Predicated region
        $region109: #{_lambda_.1} parent=71 // pred_check
          %p3760 = pneg %p327
        $region110: #{_lambda_.1} parent=71 // pred_check_branch
          %3762 = sbr.rel (%p3760) target = $region112
        $region111: #{_lambda_.1} parent=71 // pred_region
          _
        $region112: #{_lambda_.1} parent=71 // pred_fallthru
          _
      $region72: #{_lambda_.1} parent=5 // pred_fallthru
        _
      %p3763 = scmp.le.s32.totalorder 2, %s26
      // Predicated region
      $region113: #{_lambda_.1} parent=5 // pred_check
        %p3764 = pneg %p3763
      $region114: #{_lambda_.1} parent=5 // pred_check_branch
        %3766 = sbr.rel (%p3764) target = $region116
      $region115: #{_lambda_.1} parent=5 // pred_region
        %s3767 = ssub.s32 %s26, 2
        // Predicated region
        $region117: #{_lambda_.1} parent=115 // pred_check
          %p3768 = pneg %p333
        $region118: #{_lambda_.1} parent=115 // pred_check_branch
          %3770 = sbr.rel (%p3768) target = $region120
        $region119: #{_lambda_.1} parent=115 // pred_region
          %p3771 = scmp.lt.s32.totalorder %s32, 1
          %s3772 = scalar_select %p3771, %s32, 1
          %s3773 = scalar_lea.vmem %s13, %s3772
        $region120: #{_lambda_.1} parent=115 // pred_fallthru
          _
      $region116: #{_lambda_.1} parent=5 // pred_fallthru
        _
    $region6: #{_lambda_.1} parent=1 // loop_footer
      %s30 = sadd.s32 1, %s26
    $region7: #{_lambda_.1} parent=1 // loop_footer_branch
      %25 = sbr.rel target = $region3
    $region8: #{_lambda_.1} parent=1 // loop_exit
      _
    %3774 = vsyncpa [#allocation5], 1
    %s3775 = scalar_lea.sflag [#allocation5], 1
    %3776 = vsyncpa %s3775, 1
    %3777 = vsyncpa [#allocation7], 1
    %3778 = vsyncpa [#allocation10], 1
    %3779 = vsyncpa [#allocation13], 1
    %3780 = vsyncpa [#allocation16], 1

</llo_original>
